<compile_context>
chip_gen: v5e
topology: v5e:2x2
jax: 0.10.0
libtpu: 0.0.40
codegen_flags: <defaults>
</compile_context>

<pallas_src>
import functools

import jax
import jax.numpy as jnp
from jax.experimental import pallas as pl
from jax.experimental.pallas import tpu as pltpu

EPS = 1e-5          # PyTorch nn.LayerNorm default eps
NEG_INF = -1e30     # finite causal-mask value
LANE = 128


def _round_up(x, m):
    return (x + m - 1) // m * m


def _vmem_limit_bytes():
    cap = 64 * 1024 * 1024
    try:
        cap = int(pltpu.get_tpu_info().vmem_capacity_bytes)
    except Exception:
        pass
    return max(32 * 1024 * 1024, min(cap * 3 // 4, 100 * 1024 * 1024))


def _layer_norm_f32(x, g, b, c_true):
    """LayerNorm over the padded last axis. Padded lanes of x / g / b are zero, so the
    statistics over the true `c_true` channels are exact and padded lanes stay zero."""
    cp = x.shape[-1]
    inv_c = 1.0 / c_true
    mu = jnp.sum(x, axis=-1, keepdims=True) * inv_c
    d = x - mu
    # padded lanes each contribute mu^2 to sum(d*d); remove that contribution.
    var = (jnp.sum(d * d, axis=-1, keepdims=True) - (cp - c_true) * mu * mu) * inv_c
    return d * jax.lax.rsqrt(var + EPS) * g + b


# ---------------------------------------------------------------------------
# Fused all-layers kernel: grid = (n_layers,). The whole-batch residual stream lives
# in a VMEM scratch across the layer axis; each layer's weights are DMA'd once.
# The final LayerNorm is fused at layer == L-1 and written as the (bf16) output.
# ---------------------------------------------------------------------------
def blocks_kernel(c_true,
                  x_ref,
                  ln1_g_ref, ln1_b_ref,
                  wqkv_ref, bqkv_ref, wo_ref, bo_ref,
                  ln2_g_ref, ln2_b_ref,
                  w1_ref, b1_ref, w2_ref, b2_ref,
                  lnf_g_ref, lnf_b_ref,
                  o_ref, resid_ref):
    layer = pl.program_id(0)
    n_layers = pl.num_programs(0)
    bsz = resid_ref.shape[0]
    n_head = wqkv_ref.shape[0]
    hd_p = wqkv_ref.shape[-1] // 3

    @pl.when(layer == 0)
    def _():
        resid_ref[...] = x_ref[...].astype(jnp.float32)

    for b in range(bsz):
        x = resid_ref[b]                              # (T, Cp) f32; padded lanes == 0
        T = x.shape[0]

        # ---------------- attention sublayer ----------------
        xn = _layer_norm_f32(x, ln1_g_ref[...], ln1_b_ref[...], c_true).astype(jnp.bfloat16)
        xnh = jnp.broadcast_to(xn, (n_head,) + xn.shape)                  # (h, T, Cp) bf16
        # Fused, head-batched QKV projection (1/sqrt(hd) folded into Wq/bq at init).
        qkv = jnp.einsum("htc,hcd->htd", xnh, wqkv_ref[...],
                         preferred_element_type=jnp.float32) + bqkv_ref[...]
        q = qkv[..., :hd_p].astype(jnp.bfloat16)                          # (h, T, hd_p)
        k = qkv[..., hd_p:2 * hd_p].astype(jnp.bfloat16)
        v = qkv[..., 2 * hd_p:].astype(jnp.bfloat16)

        s = jnp.einsum("hqd,hkd->hqk", q, k, preferred_element_type=jnp.float32)
        row = jax.lax.broadcasted_iota(jnp.int32, (T, T), 0)
        col = jax.lax.broadcasted_iota(jnp.int32, (T, T), 1)
        s = jnp.where((row >= col)[None, :, :], s, NEG_INF)
        s = s - jnp.max(s, axis=-1, keepdims=True)
        p = jnp.exp(s)
        p = p * pl.reciprocal(jnp.sum(p, axis=-1, keepdims=True), approx=True)

        o3 = jnp.einsum("hqk,hkd->hqd", p.astype(jnp.bfloat16), v,
                        preferred_element_type=jnp.float32)               # (h, T, hd_p)
        projh = jnp.einsum("htd,hdc->htc", o3.astype(jnp.bfloat16), wo_ref[...],
                           preferred_element_type=jnp.float32)            # (h, T, Cp)
        x = x + jnp.sum(projh, axis=0) + bo_ref[...]

        # ---------------- MLP sublayer ----------------
        xn2 = _layer_norm_f32(x, ln2_g_ref[...], ln2_b_ref[...], c_true).astype(jnp.bfloat16)
        h1 = jnp.dot(xn2, w1_ref[...], preferred_element_type=jnp.float32) + b1_ref[...]
        h1 = jnp.maximum(h1, 0.0).astype(jnp.bfloat16)
        x = x + jnp.dot(h1, w2_ref[...], preferred_element_type=jnp.float32) + b2_ref[...]

        resid_ref[b] = x

    @pl.when(layer == n_layers - 1)
    def _():
        for b in range(bsz):
            o_ref[b] = _layer_norm_f32(resid_ref[b], lnf_g_ref[...], lnf_b_ref[...],
                                       c_true).astype(o_ref.dtype)


# ---------------------------------------------------------------------------
# lm_head: vocab-tiled matmul on the already-normalized (bf16) activations.
# ---------------------------------------------------------------------------
def head_kernel(x_ref, w_ref, b_ref, o_ref):
    o_ref[...] = (jnp.dot(x_ref[...], w_ref[...], preferred_element_type=jnp.float32)
                  + b_ref[...]).astype(o_ref.dtype)


# ---------------------------------------------------------------------------
# Wrappers
# ---------------------------------------------------------------------------
def run_blocks(x, p, c_true):
    B, T, Cp = x.shape
    L = p["wqkv"].shape[0]
    n_head = p["wqkv"].shape[1]
    hd3 = p["wqkv"].shape[3]
    hd_p = hd3 // 3
    Hp = p["w1"].shape[2]

    def whole(shape):
        return pl.BlockSpec(shape, lambda l: (0,) * len(shape))

    def per_layer(shape):
        return pl.BlockSpec((None,) + shape, lambda l: (l,) + (0,) * len(shape))

    in_specs = [
        whole((B, T, Cp)),                                       # x (embedded)
        per_layer((1, Cp)), per_layer((1, Cp)),                  # ln1 g/b
        per_layer((n_head, Cp, hd3)),                            # fused head-batched Wqkv
        per_layer((n_head, 1, hd3)),                             # bqkv
        per_layer((n_head, hd_p, Cp)), per_layer((1, Cp)),       # Wo (head-batched), bo
        per_layer((1, Cp)), per_layer((1, Cp)),                  # ln2 g/b
        per_layer((Cp, Hp)), per_layer((1, Hp)),                 # W1 b1
        per_layer((Hp, Cp)), per_layer((1, Cp)),                 # W2 b2
        whole((1, Cp)), whole((1, Cp)),                          # final LN g/b
    ]
    return pl.pallas_call(
        functools.partial(blocks_kernel, c_true),
        grid=(L,),
        in_specs=in_specs,
        out_specs=whole((B, T, Cp)),
        out_shape=jax.ShapeDtypeStruct((B, T, Cp), jnp.bfloat16),
        scratch_shapes=[pltpu.VMEM((B, T, Cp), jnp.float32)],    # resident residual
        compiler_params=pltpu.CompilerParams(
            dimension_semantics=("arbitrary",),
            vmem_limit_bytes=_vmem_limit_bytes()),
    )(x, p["ln1_g"], p["ln1_b"],
      p["wqkv"], p["bqkv"], p["wo"], p["bo"],
      p["ln2_g"], p["ln2_b"], p["w1"], p["b1"], p["w2"], p["b2"],
      p["ln_f_g"], p["ln_f_b"])


def _pick_vocab_tile(vp):
    for cand in (2048, 1024, 512, 256, 128):
        if vp % cand == 0:
            return cand
    return vp


def run_lm_head(xn2d, w, bias, v_true):
    BT, Cp = xn2d.shape
    Vp = w.shape[1]
    tv = _pick_vocab_tile(Vp)
    logits = pl.pallas_call(
        head_kernel,
        grid=(Vp // tv,),
        in_specs=[pl.BlockSpec((BT, Cp), lambda j: (0, 0)),      # resident activations
                  pl.BlockSpec((Cp, tv), lambda j: (0, j)),
                  pl.BlockSpec((1, tv), lambda j: (0, j))],
        out_specs=pl.BlockSpec((BT, tv), lambda j: (0, j)),
        out_shape=jax.ShapeDtypeStruct((BT, Vp), jnp.float32),
        compiler_params=pltpu.CompilerParams(
            dimension_semantics=("parallel",),
            vmem_limit_bytes=_vmem_limit_bytes()),
    )(xn2d, w, bias)
    return logits[:, :v_true]


def transformer_forward(idx, params):
    """idx: int32 [B, T] token indices -> logits float32 [B, T, vocab_size]."""
    B, T = idx.shape
    ctx = params["position_embed"].shape[0]
    assert T <= ctx, f"sequence length {T} exceeds context_length {ctx}"
    c_true, v_true = params["c_true"], params["v_true"]

    # Embedding gather (plain-JAX glue); tables are zero-padded along the embed dim.
    tok = jnp.take(params["token_embed"], idx, axis=0)           # (B, T, Cp)
    pos = params["position_embed"][:T][None, :, :]               # (1, T, Cp)
    x = (tok + pos).astype(jnp.float32)

    xn = run_blocks(x, params, c_true)                           # (B, T, Cp) bf16, ln_f applied
    Cp = xn.shape[-1]
    logits = run_lm_head(xn.reshape(B * T, Cp), params["lm_w"], params["lm_b"], v_true)
    return logits.reshape(B, T, v_true)


# ---------------------------------------------------------------------------
# Deterministic parameter init (lane-padded, layers stacked, head-batched fused QKV,
# bf16 matmul weights, 1/sqrt(hd) folded into Wq).
# ---------------------------------------------------------------------------
def init_params(key, n_head, n_embed, context_length, vocab_size, n_blocks):
    C, V = n_embed, vocab_size
    assert C % n_head == 0
    H, hd = 4 * C, C // n_head
    Cp, Hp, Vp = _round_up(C, LANE), _round_up(H, LANE), _round_up(V, LANE)
    hd_p = _round_up(hd, LANE)
    std = 0.02
    keys = iter(jax.random.split(key, 3 + 6 * n_blocks))

    def nrm(shape):
        return std * jax.random.normal(next(keys), shape, dtype=jnp.float32)

    def pad2(a, rows, cols):
        return jnp.pad(a, ((0, rows - a.shape[0]), (0, cols - a.shape[1])))

    params = {
        "c_true": C, "v_true": V,
        "token_embed": pad2(nrm((V, C)), V, Cp),                            # f32
        "position_embed": pad2(nrm((context_length, C)), context_length, Cp),
        "ln_f_g": pad2(jnp.ones((1, C), jnp.float32), 1, Cp),
        "ln_f_b": jnp.zeros((1, Cp), jnp.float32),
        "lm_w": pad2(nrm((C, V)), Cp, Vp).astype(jnp.bfloat16),             # (Cp, Vp)
        "lm_b": jnp.zeros((1, Vp), jnp.float32),
    }

    ln1_g, ln1_b, wqkv, bqkv, wo, bo = [], [], [], [], [], []
    ln2_g, ln2_b, w1, b1, w2, b2 = [], [], [], [], [], []
    scale = hd ** -0.5
    for _ in range(n_blocks):
        ln1_g.append(pad2(jnp.ones((1, C), jnp.float32), 1, Cp))
        ln1_b.append(jnp.zeros((1, Cp), jnp.float32))

        wq = nrm((C, C)) * scale          # fold 1/sqrt(hd) into Wq
        wk = nrm((C, C))
        wv = nrm((C, C))
        per_head = []
        for h in range(n_head):
            qh = pad2(wq[:, h * hd:(h + 1) * hd], Cp, hd_p)
            kh = pad2(wk[:, h * hd:(h + 1) * hd], Cp, hd_p)
            vh = pad2(wv[:, h * hd:(h + 1) * hd], Cp, hd_p)
            per_head.append(jnp.concatenate([qh, kh, vh], axis=1))          # (Cp, 3*hd_p)
        wqkv.append(jnp.stack(per_head, 0).astype(jnp.bfloat16))            # (h, Cp, 3*hd_p)
        bqkv.append(jnp.zeros((n_head, 1, 3 * hd_p), jnp.float32))          # q/k/v biases (zero init)

        wo_full = nrm((C, C))
        wo.append(jnp.stack([pad2(wo_full[h * hd:(h + 1) * hd, :], hd_p, Cp)
                             for h in range(n_head)], 0).astype(jnp.bfloat16))  # (h, hd_p, Cp)
        bo.append(jnp.zeros((1, Cp), jnp.float32))

        ln2_g.append(pad2(jnp.ones((1, C), jnp.float32), 1, Cp))
        ln2_b.append(jnp.zeros((1, Cp), jnp.float32))
        w1.append(pad2(nrm((C, H)), Cp, Hp).astype(jnp.bfloat16))            # (Cp, Hp)
        b1.append(jnp.zeros((1, Hp), jnp.float32))
        w2.append(pad2(nrm((H, C)), Hp, Cp).astype(jnp.bfloat16))            # (Hp, Cp)
        b2.append(jnp.zeros((1, Cp), jnp.float32))

    stack = lambda xs: jnp.stack(xs, axis=0)
    params.update(
        ln1_g=stack(ln1_g), ln1_b=stack(ln1_b),
        wqkv=stack(wqkv), bqkv=stack(bqkv), wo=stack(wo), bo=stack(bo),
        ln2_g=stack(ln2_g), ln2_b=stack(ln2_b),
        w1=stack(w1), b1=stack(b1), w2=stack(w2), b2=stack(b2),
    )
    return params


if __name__ == "__main__":
    # Small config consistent with the module's forward.
    B, T = 2, 8
    n_head, n_embed = 4, 32
    context_length, vocab_size, n_blocks = 8, 64, 2

    key = jax.random.PRNGKey(0)
    pkey, ikey = jax.random.split(key)
    params = init_params(pkey, n_head, n_embed, context_length, vocab_size, n_blocks)
    idx = jax.random.randint(ikey, (B, T), 0, vocab_size, dtype=jnp.int32)

    logits = transformer_forward(idx, params)
    jax.block_until_ready(logits)
    assert logits.shape == (B, T, vocab_size)
    assert bool(jnp.all(jnp.isfinite(logits)))
    print("KERNEL_OK")
</pallas_src>

<mosaic_0001>
module attributes {stable_mosaic.version = 11 : i64} {
  func.func @blocks_kernel(%arg0: i32, %arg1: memref<2x8x128xf32, #tpu.memory_space<vmem>>, %arg2: memref<1x1x128xf32, #tpu.memory_space<vmem>>, %arg3: memref<1x1x128xf32, #tpu.memory_space<vmem>>, %arg4: memref<1x4x128x384xbf16, #tpu.memory_space<vmem>>, %arg5: memref<1x4x1x384xf32, #tpu.memory_space<vmem>>, %arg6: memref<1x4x128x128xbf16, #tpu.memory_space<vmem>>, %arg7: memref<1x1x128xf32, #tpu.memory_space<vmem>>, %arg8: memref<1x1x128xf32, #tpu.memory_space<vmem>>, %arg9: memref<1x1x128xf32, #tpu.memory_space<vmem>>, %arg10: memref<1x128x128xbf16, #tpu.memory_space<vmem>>, %arg11: memref<1x1x128xf32, #tpu.memory_space<vmem>>, %arg12: memref<1x128x128xbf16, #tpu.memory_space<vmem>>, %arg13: memref<1x1x128xf32, #tpu.memory_space<vmem>>, %arg14: memref<1x128xf32, #tpu.memory_space<vmem>>, %arg15: memref<1x128xf32, #tpu.memory_space<vmem>>, %arg16: memref<2x8x128xbf16, #tpu.memory_space<vmem>>, %arg17: memref<2x8x128xf32, #tpu.memory_space<vmem>>) attributes {dimension_semantics = [#tpu.dimension_semantics<arbitrary>], iteration_bounds = array<i64: 2>, scalar_prefetch = 0 : i64, scratch_operands = 1 : i64, tpu.core_type = #tpu.core_type<tc>, window_params = [{pipeline_mode = #tpu.pipeline_mode<synchronous>, transform_indices = @transform_0, window_bounds = array<i64: 2, 8, 128>}, {transform_indices = @transform_1, window_bounds = array<i64: 1, 1, 128>}, {transform_indices = @transform_2, window_bounds = array<i64: 1, 1, 128>}, {transform_indices = @transform_3, window_bounds = array<i64: 1, 4, 128, 384>}, {transform_indices = @transform_4, window_bounds = array<i64: 1, 4, 1, 384>}, {transform_indices = @transform_5, window_bounds = array<i64: 1, 4, 128, 128>}, {transform_indices = @transform_6, window_bounds = array<i64: 1, 1, 128>}, {transform_indices = @transform_7, window_bounds = array<i64: 1, 1, 128>}, {transform_indices = @transform_8, window_bounds = array<i64: 1, 1, 128>}, {transform_indices = @transform_9, window_bounds = array<i64: 1, 128, 128>}, {transform_indices = @transform_10, window_bounds = array<i64: 1, 1, 128>}, {transform_indices = @transform_11, window_bounds = array<i64: 1, 128, 128>}, {transform_indices = @transform_12, window_bounds = array<i64: 1, 1, 128>}, {pipeline_mode = #tpu.pipeline_mode<synchronous>, transform_indices = @transform_13, window_bounds = array<i64: 1, 128>}, {pipeline_mode = #tpu.pipeline_mode<synchronous>, transform_indices = @transform_14, window_bounds = array<i64: 1, 128>}, {pipeline_mode = #tpu.pipeline_mode<synchronous>, transform_indices = @transform_15, window_bounds = array<i64: 2, 8, 128>}]} {
    %c0_i32 = arith.constant 0 : i32
    %0 = arith.cmpi eq, %arg0, %c0_i32 : i32
    %1 = arith.extui %0 : i1 to i32
    %c0_i32_0 = arith.constant 0 : i32
    %2 = arith.cmpi ne, %1, %c0_i32_0 : i32
    scf.if %2 {
      %c0_135 = arith.constant 0 : index
      %c0_136 = arith.constant 0 : index
      %c0_137 = arith.constant 0 : index
      %260 = vector.load %arg1[%c0_135, %c0_136, %c0_137] : memref<2x8x128xf32, #tpu.memory_space<vmem>>, vector<2x8x128xf32>
      %c0_138 = arith.constant 0 : index
      %c0_139 = arith.constant 0 : index
      %c0_140 = arith.constant 0 : index
      %261 = vector.load %arg17[%c0_138, %c0_139, %c0_140] : memref<2x8x128xf32, #tpu.memory_space<vmem>>, vector<2x8x128xf32>
      tpu.vector_store %arg17[%c0_138, %c0_139, %c0_140], %260 {strides = array<i32>} : memref<2x8x128xf32, #tpu.memory_space<vmem>>, vector<2x8x128xf32>,
    } else {
    }
    %c0 = arith.constant 0 : index
    %c0_1 = arith.constant 0 : index
    %c0_2 = arith.constant 0 : index
    %3 = vector.load %arg17[%c0, %c0_1, %c0_2] : memref<2x8x128xf32, #tpu.memory_space<vmem>>, vector<1x8x128xf32>
    %4 = vector.shape_cast %3 : vector<1x8x128xf32> to vector<8x128xf32>
    %c0_3 = arith.constant 0 : index
    %c0_4 = arith.constant 0 : index
    %c0_5 = arith.constant 0 : index
    %5 = vector.load %arg2[%c0_3, %c0_4, %c0_5] : memref<1x1x128xf32, #tpu.memory_space<vmem>>, vector<1x1x128xf32>
    %6 = vector.shape_cast %5 : vector<1x1x128xf32> to vector<1x128xf32>
    %c0_6 = arith.constant 0 : index
    %c0_7 = arith.constant 0 : index
    %c0_8 = arith.constant 0 : index
    %7 = vector.load %arg3[%c0_6, %c0_7, %c0_8] : memref<1x1x128xf32, #tpu.memory_space<vmem>>, vector<1x1x128xf32>
    %8 = vector.shape_cast %7 : vector<1x1x128xf32> to vector<1x128xf32>
    %cst = arith.constant dense<0.000000e+00> : vector<8xf32>
    %9 = vector.multi_reduction <add>, %4, %cst [1] : vector<8x128xf32> to vector<8xf32>
    %10 = vector.shape_cast %9 : vector<8xf32> to vector<8x1xf32>
    %cst_9 = arith.constant 3.125000e-02 : f32
    %11 = vector.broadcast %cst_9 : f32 to vector<8x1xf32>
    %12 = arith.mulf %10, %11 : vector<8x1xf32>
    %13 = vector.broadcast %12 : vector<8x1xf32> to vector<8x128xf32>
    %14 = arith.subf %4, %13 : vector<8x128xf32>
    %15 = arith.mulf %14, %14 : vector<8x128xf32>
    %cst_10 = arith.constant dense<0.000000e+00> : vector<8xf32>
    %16 = vector.multi_reduction <add>, %15, %cst_10 [1] : vector<8x128xf32> to vector<8xf32>
    %17 = vector.shape_cast %16 : vector<8xf32> to vector<8x1xf32>
    %cst_11 = arith.constant 9.600000e+01 : f32
    %18 = vector.broadcast %cst_11 : f32 to vector<8x1xf32>
    %19 = arith.mulf %18, %12 : vector<8x1xf32>
    %20 = arith.mulf %19, %12 : vector<8x1xf32>
    %21 = arith.subf %17, %20 : vector<8x1xf32>
    %cst_12 = arith.constant 3.125000e-02 : f32
    %22 = vector.broadcast %cst_12 : f32 to vector<8x1xf32>
    %23 = arith.mulf %21, %22 : vector<8x1xf32>
    %cst_13 = arith.constant 9.99999974E-6 : f32
    %24 = vector.broadcast %cst_13 : f32 to vector<8x1xf32>
    %25 = arith.addf %23, %24 : vector<8x1xf32>
    %26 = math.rsqrt %25 : vector<8x1xf32>
    %27 = vector.broadcast %26 : vector<8x1xf32> to vector<8x128xf32>
    %28 = arith.mulf %14, %27 : vector<8x128xf32>
    %29 = vector.broadcast %6 : vector<1x128xf32> to vector<8x128xf32>
    %30 = arith.mulf %28, %29 : vector<8x128xf32>
    %31 = vector.broadcast %8 : vector<1x128xf32> to vector<8x128xf32>
    %32 = arith.addf %30, %31 : vector<8x128xf32>
    %33 = arith.truncf %32 : vector<8x128xf32> to vector<8x128xbf16>
    %34 = vector.shape_cast %33 : vector<8x128xbf16> to vector<1x8x128xbf16>
    %35 = vector.broadcast %34 : vector<1x8x128xbf16> to vector<4x8x128xbf16>
    %c0_14 = arith.constant 0 : index
    %c0_15 = arith.constant 0 : index
    %c0_16 = arith.constant 0 : index
    %c0_17 = arith.constant 0 : index
    %36 = vector.load %arg4[%c0_14, %c0_15, %c0_16, %c0_17] : memref<1x4x128x384xbf16, #tpu.memory_space<vmem>>, vector<1x4x128x384xbf16>
    %37 = vector.shape_cast %36 : vector<1x4x128x384xbf16> to vector<4x128x384xbf16>
    "tpu.trace_start"() <{level = 10 : i32, message = "htc,hcd->htd"}> : () -> ()
    %cst_18 = arith.constant dense<0.000000e+00> : vector<4x8x384xf32>
    %38 = tpu.matmul %35, %37, %cst_18 {dimension_numbers = #tpu.dot_dimension_numbers<[2], [1], [1], [2], [0, 0, 0, 1, 1, 2], [0], [0]>} : vector<4x8x128xbf16>, vector<4x128x384xbf16>, vector<4x8x384xf32> -> vector<4x8x384xf32>
    "tpu.trace_stop"() : () -> ()
    %c0_19 = arith.constant 0 : index
    %c0_20 = arith.constant 0 : index
    %c0_21 = arith.constant 0 : index
    %c0_22 = arith.constant 0 : index
    %39 = vector.load %arg5[%c0_19, %c0_20, %c0_21, %c0_22] : memref<1x4x1x384xf32, #tpu.memory_space<vmem>>, vector<1x4x1x384xf32>
    %40 = vector.shape_cast %39 : vector<1x4x1x384xf32> to vector<4x1x384xf32>
    %41 = vector.broadcast %40 : vector<4x1x384xf32> to vector<4x8x384xf32>
    %42 = arith.addf %38, %41 : vector<4x8x384xf32>
    %43 = vector.extract_strided_slice %42 {offsets = [0, 0, 0], sizes = [4, 8, 128], strides = [1, 1, 1]} : vector<4x8x384xf32> to vector<4x8x128xf32>
    %44 = arith.truncf %43 : vector<4x8x128xf32> to vector<4x8x128xbf16>
    %45 = vector.extract_strided_slice %42 {offsets = [0, 0, 128], sizes = [4, 8, 128], strides = [1, 1, 1]} : vector<4x8x384xf32> to vector<4x8x128xf32>
    %46 = arith.truncf %45 : vector<4x8x128xf32> to vector<4x8x128xbf16>
    %47 = vector.extract_strided_slice %42 {offsets = [0, 0, 256], sizes = [4, 8, 128], strides = [1, 1, 1]} : vector<4x8x384xf32> to vector<4x8x128xf32>
    %48 = arith.truncf %47 : vector<4x8x128xf32> to vector<4x8x128xbf16>
    "tpu.trace_start"() <{level = 10 : i32, message = "hqd,hkd->hqk"}> : () -> ()
    %cst_23 = arith.constant dense<0.000000e+00> : vector<4x8x8xf32>
    %49 = tpu.matmul %44, %46, %cst_23 {dimension_numbers = #tpu.dot_dimension_numbers<[2], [2], [1], [1], [0, 0, 0, 1, 1, 1], [0], [0]>} : vector<4x8x128xbf16>, vector<4x8x128xbf16>, vector<4x8x8xf32> -> vector<4x8x8xf32>
    "tpu.trace_stop"() : () -> ()
    %50 = tpu.iota {dimensions = array<i32: 0>} : vector<8x8xi32>
    %51 = tpu.iota {dimensions = array<i32: 1>} : vector<8x8xi32>
    %52 = arith.cmpi sge, %50, %51 : vector<8x8xi32>
    %53 = vector.shape_cast %52 : vector<8x8xi1> to vector<1x8x8xi1>
    %cst_24 = arith.constant -1.000000e+30 : f32
    %54 = vector.shape_cast %53 : vector<1x8x8xi1> to vector<1x8x8xi1>
    %55 = vector.broadcast %54 : vector<1x8x8xi1> to vector<4x8x8xi1>
    %56 = vector.broadcast %cst_24 : f32 to vector<4x8x8xf32>
    %57 = arith.select %55, %49, %56 : vector<4x8x8xi1>, vector<4x8x8xf32>
    %cst_25 = arith.constant dense<0xFF800000> : vector<4x8xf32>
    %58 = vector.multi_reduction <maximumf>, %57, %cst_25 [2] : vector<4x8x8xf32> to vector<4x8xf32>
    %59 = vector.shape_cast %58 : vector<4x8xf32> to vector<4x8x1xf32>
    %60 = vector.broadcast %59 : vector<4x8x1xf32> to vector<4x8x8xf32>
    %61 = arith.subf %57, %60 : vector<4x8x8xf32>
    %62 = math.exp %61 : vector<4x8x8xf32>
    %cst_26 = arith.constant dense<0.000000e+00> : vector<4x8xf32>
    %63 = vector.multi_reduction <add>, %62, %cst_26 [2] : vector<4x8x8xf32> to vector<4x8xf32>
    %64 = vector.shape_cast %63 : vector<4x8xf32> to vector<4x8x1xf32>
    %65 = tpu.reciprocal %64 {approx = true} : vector<4x8x1xf32> -> vector<4x8x1xf32>
    %66 = vector.broadcast %65 : vector<4x8x1xf32> to vector<4x8x8xf32>
    %67 = arith.mulf %62, %66 : vector<4x8x8xf32>
    %68 = arith.truncf %67 : vector<4x8x8xf32> to vector<4x8x8xbf16>
    "tpu.trace_start"() <{level = 10 : i32, message = "hqk,hkd->hqd"}> : () -> ()
    %cst_27 = arith.constant dense<0.000000e+00> : vector<4x8x128xf32>
    %69 = tpu.matmul %68, %48, %cst_27 {dimension_numbers = #tpu.dot_dimension_numbers<[2], [1], [1], [2], [0, 0, 0, 1, 1, 2], [0], [0]>} : vector<4x8x8xbf16>, vector<4x8x128xbf16>, vector<4x8x128xf32> -> vector<4x8x128xf32>
    "tpu.trace_stop"() : () -> ()
    %70 = arith.truncf %69 : vector<4x8x128xf32> to vector<4x8x128xbf16>
    %c0_28 = arith.constant 0 : index
    %c0_29 = arith.constant 0 : index
    %c0_30 = arith.constant 0 : index
    %c0_31 = arith.constant 0 : index
    %71 = vector.load %arg6[%c0_28, %c0_29, %c0_30, %c0_31] : memref<1x4x128x128xbf16, #tpu.memory_space<vmem>>, vector<1x4x128x128xbf16>
    %72 = vector.shape_cast %71 : vector<1x4x128x128xbf16> to vector<4x128x128xbf16>
    "tpu.trace_start"() <{level = 10 : i32, message = "htd,hdc->htc"}> : () -> ()
    %cst_32 = arith.constant dense<0.000000e+00> : vector<4x8x128xf32>
    %73 = tpu.matmul %70, %72, %cst_32 {dimension_numbers = #tpu.dot_dimension_numbers<[2], [1], [1], [2], [0, 0, 0, 1, 1, 2], [0], [0]>} : vector<4x8x128xbf16>, vector<4x128x128xbf16>, vector<4x8x128xf32> -> vector<4x8x128xf32>
    "tpu.trace_stop"() : () -> ()
    %cst_33 = arith.constant dense<0.000000e+00> : vector<8x128xf32>
    %74 = vector.multi_reduction <add>, %73, %cst_33 [0] : vector<4x8x128xf32> to vector<8x128xf32>
    %75 = arith.addf %4, %74 : vector<8x128xf32>
    %c0_34 = arith.constant 0 : index
    %c0_35 = arith.constant 0 : index
    %c0_36 = arith.constant 0 : index
    %76 = vector.load %arg7[%c0_34, %c0_35, %c0_36] : memref<1x1x128xf32, #tpu.memory_space<vmem>>, vector<1x1x128xf32>
    %77 = vector.shape_cast %76 : vector<1x1x128xf32> to vector<1x128xf32>
    %78 = vector.broadcast %77 : vector<1x128xf32> to vector<8x128xf32>
    %79 = arith.addf %75, %78 : vector<8x128xf32>
    %c0_37 = arith.constant 0 : index
    %c0_38 = arith.constant 0 : index
    %c0_39 = arith.constant 0 : index
    %80 = vector.load %arg8[%c0_37, %c0_38, %c0_39] : memref<1x1x128xf32, #tpu.memory_space<vmem>>, vector<1x1x128xf32>
    %81 = vector.shape_cast %80 : vector<1x1x128xf32> to vector<1x128xf32>
    %c0_40 = arith.constant 0 : index
    %c0_41 = arith.constant 0 : index
    %c0_42 = arith.constant 0 : index
    %82 = vector.load %arg9[%c0_40, %c0_41, %c0_42] : memref<1x1x128xf32, #tpu.memory_space<vmem>>, vector<1x1x128xf32>
    %83 = vector.shape_cast %82 : vector<1x1x128xf32> to vector<1x128xf32>
    %cst_43 = arith.constant dense<0.000000e+00> : vector<8xf32>
    %84 = vector.multi_reduction <add>, %79, %cst_43 [1] : vector<8x128xf32> to vector<8xf32>
    %85 = vector.shape_cast %84 : vector<8xf32> to vector<8x1xf32>
    %cst_44 = arith.constant 3.125000e-02 : f32
    %86 = vector.broadcast %cst_44 : f32 to vector<8x1xf32>
    %87 = arith.mulf %85, %86 : vector<8x1xf32>
    %88 = vector.broadcast %87 : vector<8x1xf32> to vector<8x128xf32>
    %89 = arith.subf %79, %88 : vector<8x128xf32>
    %90 = arith.mulf %89, %89 : vector<8x128xf32>
    %cst_45 = arith.constant dense<0.000000e+00> : vector<8xf32>
    %91 = vector.multi_reduction <add>, %90, %cst_45 [1] : vector<8x128xf32> to vector<8xf32>
    %92 = vector.shape_cast %91 : vector<8xf32> to vector<8x1xf32>
    %cst_46 = arith.constant 9.600000e+01 : f32
    %93 = vector.broadcast %cst_46 : f32 to vector<8x1xf32>
    %94 = arith.mulf %93, %87 : vector<8x1xf32>
    %95 = arith.mulf %94, %87 : vector<8x1xf32>
    %96 = arith.subf %92, %95 : vector<8x1xf32>
    %cst_47 = arith.constant 3.125000e-02 : f32
    %97 = vector.broadcast %cst_47 : f32 to vector<8x1xf32>
    %98 = arith.mulf %96, %97 : vector<8x1xf32>
    %cst_48 = arith.constant 9.99999974E-6 : f32
    %99 = vector.broadcast %cst_48 : f32 to vector<8x1xf32>
    %100 = arith.addf %98, %99 : vector<8x1xf32>
    %101 = math.rsqrt %100 : vector<8x1xf32>
    %102 = vector.broadcast %101 : vector<8x1xf32> to vector<8x128xf32>
    %103 = arith.mulf %89, %102 : vector<8x128xf32>
    %104 = vector.broadcast %81 : vector<1x128xf32> to vector<8x128xf32>
    %105 = arith.mulf %103, %104 : vector<8x128xf32>
    %106 = vector.broadcast %83 : vector<1x128xf32> to vector<8x128xf32>
    %107 = arith.addf %105, %106 : vector<8x128xf32>
    %108 = arith.truncf %107 : vector<8x128xf32> to vector<8x128xbf16>
    %c0_49 = arith.constant 0 : index
    %c0_50 = arith.constant 0 : index
    %c0_51 = arith.constant 0 : index
    %109 = vector.load %arg10[%c0_49, %c0_50, %c0_51] : memref<1x128x128xbf16, #tpu.memory_space<vmem>>, vector<1x128x128xbf16>
    %110 = vector.shape_cast %109 : vector<1x128x128xbf16> to vector<128x128xbf16>
    %cst_52 = arith.constant dense<0.000000e+00> : vector<8x128xf32>
    %111 = tpu.matmul %108, %110, %cst_52 {dimension_numbers = #tpu.dot_dimension_numbers<[1], [0], [0], [1], [0, 0, 1, 1], [], []>} : vector<8x128xbf16>, vector<128x128xbf16>, vector<8x128xf32> -> vector<8x128xf32>
    %c0_53 = arith.constant 0 : index
    %c0_54 = arith.constant 0 : index
    %c0_55 = arith.constant 0 : index
    %112 = vector.load %arg11[%c0_53, %c0_54, %c0_55] : memref<1x1x128xf32, #tpu.memory_space<vmem>>, vector<1x1x128xf32>
    %113 = vector.shape_cast %112 : vector<1x1x128xf32> to vector<1x128xf32>
    %114 = vector.broadcast %113 : vector<1x128xf32> to vector<8x128xf32>
    %115 = arith.addf %111, %114 : vector<8x128xf32>
    %cst_56 = arith.constant 0.000000e+00 : f32
    %116 = vector.broadcast %cst_56 : f32 to vector<8x128xf32>
    %117 = arith.maximumf %115, %116 : vector<8x128xf32>
    %118 = arith.truncf %117 : vector<8x128xf32> to vector<8x128xbf16>
    %c0_57 = arith.constant 0 : index
    %c0_58 = arith.constant 0 : index
    %c0_59 = arith.constant 0 : index
    %119 = vector.load %arg12[%c0_57, %c0_58, %c0_59] : memref<1x128x128xbf16, #tpu.memory_space<vmem>>, vector<1x128x128xbf16>
    %120 = vector.shape_cast %119 : vector<1x128x128xbf16> to vector<128x128xbf16>
    %cst_60 = arith.constant dense<0.000000e+00> : vector<8x128xf32>
    %121 = tpu.matmul %118, %120, %cst_60 {dimension_numbers = #tpu.dot_dimension_numbers<[1], [0], [0], [1], [0, 0, 1, 1], [], []>} : vector<8x128xbf16>, vector<128x128xbf16>, vector<8x128xf32> -> vector<8x128xf32>
    %122 = arith.addf %79, %121 : vector<8x128xf32>
    %c0_61 = arith.constant 0 : index
    %c0_62 = arith.constant 0 : index
    %c0_63 = arith.constant 0 : index
    %123 = vector.load %arg13[%c0_61, %c0_62, %c0_63] : memref<1x1x128xf32, #tpu.memory_space<vmem>>, vector<1x1x128xf32>
    %124 = vector.shape_cast %123 : vector<1x1x128xf32> to vector<1x128xf32>
    %125 = vector.broadcast %124 : vector<1x128xf32> to vector<8x128xf32>
    %126 = arith.addf %122, %125 : vector<8x128xf32>
    %c0_64 = arith.constant 0 : index
    %c0_65 = arith.constant 0 : index
    %c0_66 = arith.constant 0 : index
    %127 = vector.load %arg17[%c0_64, %c0_65, %c0_66] : memref<2x8x128xf32, #tpu.memory_space<vmem>>, vector<1x8x128xf32>
    %128 = vector.shape_cast %127 : vector<1x8x128xf32> to vector<8x128xf32>
    %129 = vector.shape_cast %126 : vector<8x128xf32> to vector<1x8x128xf32>
    tpu.vector_store %arg17[%c0_64, %c0_65, %c0_66], %129 {strides = array<i32>} : memref<2x8x128xf32, #tpu.memory_space<vmem>>, vector<1x8x128xf32>,
    %c1 = arith.constant 1 : index
    %c0_67 = arith.constant 0 : index
    %c0_68 = arith.constant 0 : index
    %130 = vector.load %arg17[%c1, %c0_67, %c0_68] : memref<2x8x128xf32, #tpu.memory_space<vmem>>, vector<1x8x128xf32>
    %131 = vector.shape_cast %130 : vector<1x8x128xf32> to vector<8x128xf32>
    %c0_69 = arith.constant 0 : index
    %c0_70 = arith.constant 0 : index
    %c0_71 = arith.constant 0 : index
    %132 = vector.load %arg2[%c0_69, %c0_70, %c0_71] : memref<1x1x128xf32, #tpu.memory_space<vmem>>, vector<1x1x128xf32>
    %133 = vector.shape_cast %132 : vector<1x1x128xf32> to vector<1x128xf32>
    %c0_72 = arith.constant 0 : index
    %c0_73 = arith.constant 0 : index
    %c0_74 = arith.constant 0 : index
    %134 = vector.load %arg3[%c0_72, %c0_73, %c0_74] : memref<1x1x128xf32, #tpu.memory_space<vmem>>, vector<1x1x128xf32>
    %135 = vector.shape_cast %134 : vector<1x1x128xf32> to vector<1x128xf32>
    %cst_75 = arith.constant dense<0.000000e+00> : vector<8xf32>
    %136 = vector.multi_reduction <add>, %131, %cst_75 [1] : vector<8x128xf32> to vector<8xf32>
    %137 = vector.shape_cast %136 : vector<8xf32> to vector<8x1xf32>
    %cst_76 = arith.constant 3.125000e-02 : f32
    %138 = vector.broadcast %cst_76 : f32 to vector<8x1xf32>
    %139 = arith.mulf %137, %138 : vector<8x1xf32>
    %140 = vector.broadcast %139 : vector<8x1xf32> to vector<8x128xf32>
    %141 = arith.subf %131, %140 : vector<8x128xf32>
    %142 = arith.mulf %141, %141 : vector<8x128xf32>
    %cst_77 = arith.constant dense<0.000000e+00> : vector<8xf32>
    %143 = vector.multi_reduction <add>, %142, %cst_77 [1] : vector<8x128xf32> to vector<8xf32>
    %144 = vector.shape_cast %143 : vector<8xf32> to vector<8x1xf32>
    %cst_78 = arith.constant 9.600000e+01 : f32
    %145 = vector.broadcast %cst_78 : f32 to vector<8x1xf32>
    %146 = arith.mulf %145, %139 : vector<8x1xf32>
    %147 = arith.mulf %146, %139 : vector<8x1xf32>
    %148 = arith.subf %144, %147 : vector<8x1xf32>
    %cst_79 = arith.constant 3.125000e-02 : f32
    %149 = vector.broadcast %cst_79 : f32 to vector<8x1xf32>
    %150 = arith.mulf %148, %149 : vector<8x1xf32>
    %cst_80 = arith.constant 9.99999974E-6 : f32
    %151 = vector.broadcast %cst_80 : f32 to vector<8x1xf32>
    %152 = arith.addf %150, %151 : vector<8x1xf32>
    %153 = math.rsqrt %152 : vector<8x1xf32>
    %154 = vector.broadcast %153 : vector<8x1xf32> to vector<8x128xf32>
    %155 = arith.mulf %141, %154 : vector<8x128xf32>
    %156 = vector.broadcast %133 : vector<1x128xf32> to vector<8x128xf32>
    %157 = arith.mulf %155, %156 : vector<8x128xf32>
    %158 = vector.broadcast %135 : vector<1x128xf32> to vector<8x128xf32>
    %159 = arith.addf %157, %158 : vector<8x128xf32>
    %160 = arith.truncf %159 : vector<8x128xf32> to vector<8x128xbf16>
    %161 = vector.shape_cast %160 : vector<8x128xbf16> to vector<1x8x128xbf16>
    %162 = vector.broadcast %161 : vector<1x8x128xbf16> to vector<4x8x128xbf16>
    %c0_81 = arith.constant 0 : index
    %c0_82 = arith.constant 0 : index
    %c0_83 = arith.constant 0 : index
    %c0_84 = arith.constant 0 : index
    %163 = vector.load %arg4[%c0_81, %c0_82, %c0_83, %c0_84] : memref<1x4x128x384xbf16, #tpu.memory_space<vmem>>, vector<1x4x128x384xbf16>
    %164 = vector.shape_cast %163 : vector<1x4x128x384xbf16> to vector<4x128x384xbf16>
    "tpu.trace_start"() <{level = 10 : i32, message = "htc,hcd->htd"}> : () -> ()
    %cst_85 = arith.constant dense<0.000000e+00> : vector<4x8x384xf32>
    %165 = tpu.matmul %162, %164, %cst_85 {dimension_numbers = #tpu.dot_dimension_numbers<[2], [1], [1], [2], [0, 0, 0, 1, 1, 2], [0], [0]>} : vector<4x8x128xbf16>, vector<4x128x384xbf16>, vector<4x8x384xf32> -> vector<4x8x384xf32>
    "tpu.trace_stop"() : () -> ()
    %c0_86 = arith.constant 0 : index
    %c0_87 = arith.constant 0 : index
    %c0_88 = arith.constant 0 : index
    %c0_89 = arith.constant 0 : index
    %166 = vector.load %arg5[%c0_86, %c0_87, %c0_88, %c0_89] : memref<1x4x1x384xf32, #tpu.memory_space<vmem>>, vector<1x4x1x384xf32>
    %167 = vector.shape_cast %166 : vector<1x4x1x384xf32> to vector<4x1x384xf32>
    %168 = vector.broadcast %167 : vector<4x1x384xf32> to vector<4x8x384xf32>
    %169 = arith.addf %165, %168 : vector<4x8x384xf32>
    %170 = vector.extract_strided_slice %169 {offsets = [0, 0, 0], sizes = [4, 8, 128], strides = [1, 1, 1]} : vector<4x8x384xf32> to vector<4x8x128xf32>
    %171 = arith.truncf %170 : vector<4x8x128xf32> to vector<4x8x128xbf16>
    %172 = vector.extract_strided_slice %169 {offsets = [0, 0, 128], sizes = [4, 8, 128], strides = [1, 1, 1]} : vector<4x8x384xf32> to vector<4x8x128xf32>
    %173 = arith.truncf %172 : vector<4x8x128xf32> to vector<4x8x128xbf16>
    %174 = vector.extract_strided_slice %169 {offsets = [0, 0, 256], sizes = [4, 8, 128], strides = [1, 1, 1]} : vector<4x8x384xf32> to vector<4x8x128xf32>
    %175 = arith.truncf %174 : vector<4x8x128xf32> to vector<4x8x128xbf16>
    "tpu.trace_start"() <{level = 10 : i32, message = "hqd,hkd->hqk"}> : () -> ()
    %cst_90 = arith.constant dense<0.000000e+00> : vector<4x8x8xf32>
    %176 = tpu.matmul %171, %173, %cst_90 {dimension_numbers = #tpu.dot_dimension_numbers<[2], [2], [1], [1], [0, 0, 0, 1, 1, 1], [0], [0]>} : vector<4x8x128xbf16>, vector<4x8x128xbf16>, vector<4x8x8xf32> -> vector<4x8x8xf32>
    "tpu.trace_stop"() : () -> ()
    %177 = tpu.iota {dimensions = array<i32: 0>} : vector<8x8xi32>
    %178 = tpu.iota {dimensions = array<i32: 1>} : vector<8x8xi32>
    %179 = arith.cmpi sge, %177, %178 : vector<8x8xi32>
    %180 = vector.shape_cast %179 : vector<8x8xi1> to vector<1x8x8xi1>
    %cst_91 = arith.constant -1.000000e+30 : f32
    %181 = vector.shape_cast %180 : vector<1x8x8xi1> to vector<1x8x8xi1>
    %182 = vector.broadcast %181 : vector<1x8x8xi1> to vector<4x8x8xi1>
    %183 = vector.broadcast %cst_91 : f32 to vector<4x8x8xf32>
    %184 = arith.select %182, %176, %183 : vector<4x8x8xi1>, vector<4x8x8xf32>
    %cst_92 = arith.constant dense<0xFF800000> : vector<4x8xf32>
    %185 = vector.multi_reduction <maximumf>, %184, %cst_92 [2] : vector<4x8x8xf32> to vector<4x8xf32>
    %186 = vector.shape_cast %185 : vector<4x8xf32> to vector<4x8x1xf32>
    %187 = vector.broadcast %186 : vector<4x8x1xf32> to vector<4x8x8xf32>
    %188 = arith.subf %184, %187 : vector<4x8x8xf32>
    %189 = math.exp %188 : vector<4x8x8xf32>
    %cst_93 = arith.constant dense<0.000000e+00> : vector<4x8xf32>
    %190 = vector.multi_reduction <add>, %189, %cst_93 [2] : vector<4x8x8xf32> to vector<4x8xf32>
    %191 = vector.shape_cast %190 : vector<4x8xf32> to vector<4x8x1xf32>
    %192 = tpu.reciprocal %191 {approx = true} : vector<4x8x1xf32> -> vector<4x8x1xf32>
    %193 = vector.broadcast %192 : vector<4x8x1xf32> to vector<4x8x8xf32>
    %194 = arith.mulf %189, %193 : vector<4x8x8xf32>
    %195 = arith.truncf %194 : vector<4x8x8xf32> to vector<4x8x8xbf16>
    "tpu.trace_start"() <{level = 10 : i32, message = "hqk,hkd->hqd"}> : () -> ()
    %cst_94 = arith.constant dense<0.000000e+00> : vector<4x8x128xf32>
    %196 = tpu.matmul %195, %175, %cst_94 {dimension_numbers = #tpu.dot_dimension_numbers<[2], [1], [1], [2], [0, 0, 0, 1, 1, 2], [0], [0]>} : vector<4x8x8xbf16>, vector<4x8x128xbf16>, vector<4x8x128xf32> -> vector<4x8x128xf32>
    "tpu.trace_stop"() : () -> ()
    %197 = arith.truncf %196 : vector<4x8x128xf32> to vector<4x8x128xbf16>
    %c0_95 = arith.constant 0 : index
    %c0_96 = arith.constant 0 : index
    %c0_97 = arith.constant 0 : index
    %c0_98 = arith.constant 0 : index
    %198 = vector.load %arg6[%c0_95, %c0_96, %c0_97, %c0_98] : memref<1x4x128x128xbf16, #tpu.memory_space<vmem>>, vector<1x4x128x128xbf16>
    %199 = vector.shape_cast %198 : vector<1x4x128x128xbf16> to vector<4x128x128xbf16>
    "tpu.trace_start"() <{level = 10 : i32, message = "htd,hdc->htc"}> : () -> ()
    %cst_99 = arith.constant dense<0.000000e+00> : vector<4x8x128xf32>
    %200 = tpu.matmul %197, %199, %cst_99 {dimension_numbers = #tpu.dot_dimension_numbers<[2], [1], [1], [2], [0, 0, 0, 1, 1, 2], [0], [0]>} : vector<4x8x128xbf16>, vector<4x128x128xbf16>, vector<4x8x128xf32> -> vector<4x8x128xf32>
    "tpu.trace_stop"() : () -> ()
    %cst_100 = arith.constant dense<0.000000e+00> : vector<8x128xf32>
    %201 = vector.multi_reduction <add>, %200, %cst_100 [0] : vector<4x8x128xf32> to vector<8x128xf32>
    %202 = arith.addf %131, %201 : vector<8x128xf32>
    %c0_101 = arith.constant 0 : index
    %c0_102 = arith.constant 0 : index
    %c0_103 = arith.constant 0 : index
    %203 = vector.load %arg7[%c0_101, %c0_102, %c0_103] : memref<1x1x128xf32, #tpu.memory_space<vmem>>, vector<1x1x128xf32>
    %204 = vector.shape_cast %203 : vector<1x1x128xf32> to vector<1x128xf32>
    %205 = vector.broadcast %204 : vector<1x128xf32> to vector<8x128xf32>
    %206 = arith.addf %202, %205 : vector<8x128xf32>
    %c0_104 = arith.constant 0 : index
    %c0_105 = arith.constant 0 : index
    %c0_106 = arith.constant 0 : index
    %207 = vector.load %arg8[%c0_104, %c0_105, %c0_106] : memref<1x1x128xf32, #tpu.memory_space<vmem>>, vector<1x1x128xf32>
    %208 = vector.shape_cast %207 : vector<1x1x128xf32> to vector<1x128xf32>
    %c0_107 = arith.constant 0 : index
    %c0_108 = arith.constant 0 : index
    %c0_109 = arith.constant 0 : index
    %209 = vector.load %arg9[%c0_107, %c0_108, %c0_109] : memref<1x1x128xf32, #tpu.memory_space<vmem>>, vector<1x1x128xf32>
    %210 = vector.shape_cast %209 : vector<1x1x128xf32> to vector<1x128xf32>
    %cst_110 = arith.constant dense<0.000000e+00> : vector<8xf32>
    %211 = vector.multi_reduction <add>, %206, %cst_110 [1] : vector<8x128xf32> to vector<8xf32>
    %212 = vector.shape_cast %211 : vector<8xf32> to vector<8x1xf32>
    %cst_111 = arith.constant 3.125000e-02 : f32
    %213 = vector.broadcast %cst_111 : f32 to vector<8x1xf32>
    %214 = arith.mulf %212, %213 : vector<8x1xf32>
    %215 = vector.broadcast %214 : vector<8x1xf32> to vector<8x128xf32>
    %216 = arith.subf %206, %215 : vector<8x128xf32>
    %217 = arith.mulf %216, %216 : vector<8x128xf32>
    %cst_112 = arith.constant dense<0.000000e+00> : vector<8xf32>
    %218 = vector.multi_reduction <add>, %217, %cst_112 [1] : vector<8x128xf32> to vector<8xf32>
    %219 = vector.shape_cast %218 : vector<8xf32> to vector<8x1xf32>
    %cst_113 = arith.constant 9.600000e+01 : f32
    %220 = vector.broadcast %cst_113 : f32 to vector<8x1xf32>
    %221 = arith.mulf %220, %214 : vector<8x1xf32>
    %222 = arith.mulf %221, %214 : vector<8x1xf32>
    %223 = arith.subf %219, %222 : vector<8x1xf32>
    %cst_114 = arith.constant 3.125000e-02 : f32
    %224 = vector.broadcast %cst_114 : f32 to vector<8x1xf32>
    %225 = arith.mulf %223, %224 : vector<8x1xf32>
    %cst_115 = arith.constant 9.99999974E-6 : f32
    %226 = vector.broadcast %cst_115 : f32 to vector<8x1xf32>
    %227 = arith.addf %225, %226 : vector<8x1xf32>
    %228 = math.rsqrt %227 : vector<8x1xf32>
    %229 = vector.broadcast %228 : vector<8x1xf32> to vector<8x128xf32>
    %230 = arith.mulf %216, %229 : vector<8x128xf32>
    %231 = vector.broadcast %208 : vector<1x128xf32> to vector<8x128xf32>
    %232 = arith.mulf %230, %231 : vector<8x128xf32>
    %233 = vector.broadcast %210 : vector<1x128xf32> to vector<8x128xf32>
    %234 = arith.addf %232, %233 : vector<8x128xf32>
    %235 = arith.truncf %234 : vector<8x128xf32> to vector<8x128xbf16>
    %c0_116 = arith.constant 0 : index
    %c0_117 = arith.constant 0 : index
    %c0_118 = arith.constant 0 : index
    %236 = vector.load %arg10[%c0_116, %c0_117, %c0_118] : memref<1x128x128xbf16, #tpu.memory_space<vmem>>, vector<1x128x128xbf16>
    %237 = vector.shape_cast %236 : vector<1x128x128xbf16> to vector<128x128xbf16>
    %cst_119 = arith.constant dense<0.000000e+00> : vector<8x128xf32>
    %238 = tpu.matmul %235, %237, %cst_119 {dimension_numbers = #tpu.dot_dimension_numbers<[1], [0], [0], [1], [0, 0, 1, 1], [], []>} : vector<8x128xbf16>, vector<128x128xbf16>, vector<8x128xf32> -> vector<8x128xf32>
    %c0_120 = arith.constant 0 : index
    %c0_121 = arith.constant 0 : index
    %c0_122 = arith.constant 0 : index
    %239 = vector.load %arg11[%c0_120, %c0_121, %c0_122] : memref<1x1x128xf32, #tpu.memory_space<vmem>>, vector<1x1x128xf32>
    %240 = vector.shape_cast %239 : vector<1x1x128xf32> to vector<1x128xf32>
    %241 = vector.broadcast %240 : vector<1x128xf32> to vector<8x128xf32>
    %242 = arith.addf %238, %241 : vector<8x128xf32>
    %cst_123 = arith.constant 0.000000e+00 : f32
    %243 = vector.broadcast %cst_123 : f32 to vector<8x128xf32>
    %244 = arith.maximumf %242, %243 : vector<8x128xf32>
    %245 = arith.truncf %244 : vector<8x128xf32> to vector<8x128xbf16>
    %c0_124 = arith.constant 0 : index
    %c0_125 = arith.constant 0 : index
    %c0_126 = arith.constant 0 : index
    %246 = vector.load %arg12[%c0_124, %c0_125, %c0_126] : memref<1x128x128xbf16, #tpu.memory_space<vmem>>, vector<1x128x128xbf16>
    %247 = vector.shape_cast %246 : vector<1x128x128xbf16> to vector<128x128xbf16>
    %cst_127 = arith.constant dense<0.000000e+00> : vector<8x128xf32>
    %248 = tpu.matmul %245, %247, %cst_127 {dimension_numbers = #tpu.dot_dimension_numbers<[1], [0], [0], [1], [0, 0, 1, 1], [], []>} : vector<8x128xbf16>, vector<128x128xbf16>, vector<8x128xf32> -> vector<8x128xf32>
    %249 = arith.addf %206, %248 : vector<8x128xf32>
    %c0_128 = arith.constant 0 : index
    %c0_129 = arith.constant 0 : index
    %c0_130 = arith.constant 0 : index
    %250 = vector.load %arg13[%c0_128, %c0_129, %c0_130] : memref<1x1x128xf32, #tpu.memory_space<vmem>>, vector<1x1x128xf32>
    %251 = vector.shape_cast %250 : vector<1x1x128xf32> to vector<1x128xf32>
    %252 = vector.broadcast %251 : vector<1x128xf32> to vector<8x128xf32>
    %253 = arith.addf %249, %252 : vector<8x128xf32>
    %c1_131 = arith.constant 1 : index
    %c0_132 = arith.constant 0 : index
    %c0_133 = arith.constant 0 : index
    %254 = vector.load %arg17[%c1_131, %c0_132, %c0_133] : memref<2x8x128xf32, #tpu.memory_space<vmem>>, vector<1x8x128xf32>
    %255 = vector.shape_cast %254 : vector<1x8x128xf32> to vector<8x128xf32>
    %256 = vector.shape_cast %253 : vector<8x128xf32> to vector<1x8x128xf32>
    tpu.vector_store %arg17[%c1_131, %c0_132, %c0_133], %256 {strides = array<i32>} : memref<2x8x128xf32, #tpu.memory_space<vmem>>, vector<1x8x128xf32>,
    %c1_i32 = arith.constant 1 : i32
    %257 = arith.cmpi eq, %arg0, %c1_i32 : i32
    %258 = arith.extui %257 : i1 to i32
    %c0_i32_134 = arith.constant 0 : i32
    %259 = arith.cmpi ne, %258, %c0_i32_134 : i32
    scf.if %259 {
      %c0_135 = arith.constant 0 : index
      %c0_136 = arith.constant 0 : index
      %c0_137 = arith.constant 0 : index
      %260 = vector.load %arg17[%c0_135, %c0_136, %c0_137] : memref<2x8x128xf32, #tpu.memory_space<vmem>>, vector<1x8x128xf32>
      %261 = vector.shape_cast %260 : vector<1x8x128xf32> to vector<8x128xf32>
      %c0_138 = arith.constant 0 : index
      %c0_139 = arith.constant 0 : index
      %262 = vector.load %arg14[%c0_138, %c0_139] : memref<1x128xf32, #tpu.memory_space<vmem>>, vector<1x128xf32>
      %c0_140 = arith.constant 0 : index
      %c0_141 = arith.constant 0 : index
      %263 = vector.load %arg15[%c0_140, %c0_141] : memref<1x128xf32, #tpu.memory_space<vmem>>, vector<1x128xf32>
      %cst_142 = arith.constant dense<0.000000e+00> : vector<8xf32>
      %264 = vector.multi_reduction <add>, %261, %cst_142 [1] : vector<8x128xf32> to vector<8xf32>
      %265 = vector.shape_cast %264 : vector<8xf32> to vector<8x1xf32>
      %cst_143 = arith.constant 3.125000e-02 : f32
      %266 = vector.broadcast %cst_143 : f32 to vector<8x1xf32>
      %267 = arith.mulf %265, %266 : vector<8x1xf32>
      %268 = vector.broadcast %267 : vector<8x1xf32> to vector<8x128xf32>
      %269 = arith.subf %261, %268 : vector<8x128xf32>
      %270 = arith.mulf %269, %269 : vector<8x128xf32>
      %cst_144 = arith.constant dense<0.000000e+00> : vector<8xf32>
      %271 = vector.multi_reduction <add>, %270, %cst_144 [1] : vector<8x128xf32> to vector<8xf32>
      %272 = vector.shape_cast %271 : vector<8xf32> to vector<8x1xf32>
      %cst_145 = arith.constant 9.600000e+01 : f32
      %273 = vector.broadcast %cst_145 : f32 to vector<8x1xf32>
      %274 = arith.mulf %273, %267 : vector<8x1xf32>
      %275 = arith.mulf %274, %267 : vector<8x1xf32>
      %276 = arith.subf %272, %275 : vector<8x1xf32>
      %cst_146 = arith.constant 3.125000e-02 : f32
      %277 = vector.broadcast %cst_146 : f32 to vector<8x1xf32>
      %278 = arith.mulf %276, %277 : vector<8x1xf32>
      %cst_147 = arith.constant 9.99999974E-6 : f32
      %279 = vector.broadcast %cst_147 : f32 to vector<8x1xf32>
      %280 = arith.addf %278, %279 : vector<8x1xf32>
      %281 = math.rsqrt %280 : vector<8x1xf32>
      %282 = vector.broadcast %281 : vector<8x1xf32> to vector<8x128xf32>
      %283 = arith.mulf %269, %282 : vector<8x128xf32>
      %284 = vector.broadcast %262 : vector<1x128xf32> to vector<8x128xf32>
      %285 = arith.mulf %283, %284 : vector<8x128xf32>
      %286 = vector.broadcast %263 : vector<1x128xf32> to vector<8x128xf32>
      %287 = arith.addf %285, %286 : vector<8x128xf32>
      %288 = arith.truncf %287 : vector<8x128xf32> to vector<8x128xbf16>
      %c0_148 = arith.constant 0 : index
      %c0_149 = arith.constant 0 : index
      %c0_150 = arith.constant 0 : index
      %289 = vector.load %arg16[%c0_148, %c0_149, %c0_150] : memref<2x8x128xbf16, #tpu.memory_space<vmem>>, vector<1x8x128xbf16>
      %290 = vector.shape_cast %289 : vector<1x8x128xbf16> to vector<8x128xbf16>
      %291 = vector.shape_cast %288 : vector<8x128xbf16> to vector<1x8x128xbf16>
      tpu.vector_store %arg16[%c0_148, %c0_149, %c0_150], %291 {strides = array<i32>} : memref<2x8x128xbf16, #tpu.memory_space<vmem>>, vector<1x8x128xbf16>,
      %c1_151 = arith.constant 1 : index
      %c0_152 = arith.constant 0 : index
      %c0_153 = arith.constant 0 : index
      %292 = vector.load %arg17[%c1_151, %c0_152, %c0_153] : memref<2x8x128xf32, #tpu.memory_space<vmem>>, vector<1x8x128xf32>
      %293 = vector.shape_cast %292 : vector<1x8x128xf32> to vector<8x128xf32>
      %c0_154 = arith.constant 0 : index
      %c0_155 = arith.constant 0 : index
      %294 = vector.load %arg14[%c0_154, %c0_155] : memref<1x128xf32, #tpu.memory_space<vmem>>, vector<1x128xf32>
      %c0_156 = arith.constant 0 : index
      %c0_157 = arith.constant 0 : index
      %295 = vector.load %arg15[%c0_156, %c0_157] : memref<1x128xf32, #tpu.memory_space<vmem>>, vector<1x128xf32>
      %cst_158 = arith.constant dense<0.000000e+00> : vector<8xf32>
      %296 = vector.multi_reduction <add>, %293, %cst_158 [1] : vector<8x128xf32> to vector<8xf32>
      %297 = vector.shape_cast %296 : vector<8xf32> to vector<8x1xf32>
      %cst_159 = arith.constant 3.125000e-02 : f32
      %298 = vector.broadcast %cst_159 : f32 to vector<8x1xf32>
      %299 = arith.mulf %297, %298 : vector<8x1xf32>
      %300 = vector.broadcast %299 : vector<8x1xf32> to vector<8x128xf32>
      %301 = arith.subf %293, %300 : vector<8x128xf32>
      %302 = arith.mulf %301, %301 : vector<8x128xf32>
      %cst_160 = arith.constant dense<0.000000e+00> : vector<8xf32>
      %303 = vector.multi_reduction <add>, %302, %cst_160 [1] : vector<8x128xf32> to vector<8xf32>
      %304 = vector.shape_cast %303 : vector<8xf32> to vector<8x1xf32>
      %cst_161 = arith.constant 9.600000e+01 : f32
      %305 = vector.broadcast %cst_161 : f32 to vector<8x1xf32>
      %306 = arith.mulf %305, %299 : vector<8x1xf32>
      %307 = arith.mulf %306, %299 : vector<8x1xf32>
      %308 = arith.subf %304, %307 : vector<8x1xf32>
      %cst_162 = arith.constant 3.125000e-02 : f32
      %309 = vector.broadcast %cst_162 : f32 to vector<8x1xf32>
      %310 = arith.mulf %308, %309 : vector<8x1xf32>
      %cst_163 = arith.constant 9.99999974E-6 : f32
      %311 = vector.broadcast %cst_163 : f32 to vector<8x1xf32>
      %312 = arith.addf %310, %311 : vector<8x1xf32>
      %313 = math.rsqrt %312 : vector<8x1xf32>
      %314 = vector.broadcast %313 : vector<8x1xf32> to vector<8x128xf32>
      %315 = arith.mulf %301, %314 : vector<8x128xf32>
      %316 = vector.broadcast %294 : vector<1x128xf32> to vector<8x128xf32>
      %317 = arith.mulf %315, %316 : vector<8x128xf32>
      %318 = vector.broadcast %295 : vector<1x128xf32> to vector<8x128xf32>
      %319 = arith.addf %317, %318 : vector<8x128xf32>
      %320 = arith.truncf %319 : vector<8x128xf32> to vector<8x128xbf16>
      %c1_164 = arith.constant 1 : index
      %c0_165 = arith.constant 0 : index
      %c0_166 = arith.constant 0 : index
      %321 = vector.load %arg16[%c1_164, %c0_165, %c0_166] : memref<2x8x128xbf16, #tpu.memory_space<vmem>>, vector<1x8x128xbf16>
      %322 = vector.shape_cast %321 : vector<1x8x128xbf16> to vector<8x128xbf16>
      %323 = vector.shape_cast %320 : vector<8x128xbf16> to vector<1x8x128xbf16>
      tpu.vector_store %arg16[%c1_164, %c0_165, %c0_166], %323 {strides = array<i32>} : memref<2x8x128xbf16, #tpu.memory_space<vmem>>, vector<1x8x128xbf16>,
    } else {
    }
    return
  }
  func.func @transform_0(%arg0: i32) -> (i32, i32, i32) {
    %c0_i32 = arith.constant 0 : i32
    %c0_i32_0 = arith.constant 0 : i32
    %c0_i32_1 = arith.constant 0 : i32
    %c0_i32_2 = arith.constant 0 : i32
    return %c0_i32, %c0_i32_0, %c0_i32_1 : i32, i32, i32
  }
  func.func @transform_1(%arg0: i32) -> (i32, i32, i32) {
    %c0_i32 = arith.constant 0 : i32
    %c0_i32_0 = arith.constant 0 : i32
    %c0_i32_1 = arith.constant 0 : i32
    return %arg0, %c0_i32, %c0_i32_0 : i32, i32, i32
  }
  func.func @transform_2(%arg0: i32) -> (i32, i32, i32) {
    %c0_i32 = arith.constant 0 : i32
    %c0_i32_0 = arith.constant 0 : i32
    %c0_i32_1 = arith.constant 0 : i32
    return %arg0, %c0_i32, %c0_i32_0 : i32, i32, i32
  }
  func.func @transform_3(%arg0: i32) -> (i32, i32, i32, i32) {
    %c0_i32 = arith.constant 0 : i32
    %c0_i32_0 = arith.constant 0 : i32
    %c0_i32_1 = arith.constant 0 : i32
    %c0_i32_2 = arith.constant 0 : i32
    return %arg0, %c0_i32, %c0_i32_0, %c0_i32_1 : i32, i32, i32, i32
  }
  func.func @transform_4(%arg0: i32) -> (i32, i32, i32, i32) {
    %c0_i32 = arith.constant 0 : i32
    %c0_i32_0 = arith.constant 0 : i32
    %c0_i32_1 = arith.constant 0 : i32
    %c0_i32_2 = arith.constant 0 : i32
    return %arg0, %c0_i32, %c0_i32_0, %c0_i32_1 : i32, i32, i32, i32
  }
  func.func @transform_5(%arg0: i32) -> (i32, i32, i32, i32) {
    %c0_i32 = arith.constant 0 : i32
    %c0_i32_0 = arith.constant 0 : i32
    %c0_i32_1 = arith.constant 0 : i32
    %c0_i32_2 = arith.constant 0 : i32
    return %arg0, %c0_i32, %c0_i32_0, %c0_i32_1 : i32, i32, i32, i32
  }
  func.func @transform_6(%arg0: i32) -> (i32, i32, i32) {
    %c0_i32 = arith.constant 0 : i32
    %c0_i32_0 = arith.constant 0 : i32
    %c0_i32_1 = arith.constant 0 : i32
    return %arg0, %c0_i32, %c0_i32_0 : i32, i32, i32
  }
  func.func @transform_7(%arg0: i32) -> (i32, i32, i32) {
    %c0_i32 = arith.constant 0 : i32
    %c0_i32_0 = arith.constant 0 : i32
    %c0_i32_1 = arith.constant 0 : i32
    return %arg0, %c0_i32, %c0_i32_0 : i32, i32, i32
  }
  func.func @transform_8(%arg0: i32) -> (i32, i32, i32) {
    %c0_i32 = arith.constant 0 : i32
    %c0_i32_0 = arith.constant 0 : i32
    %c0_i32_1 = arith.constant 0 : i32
    return %arg0, %c0_i32, %c0_i32_0 : i32, i32, i32
  }
  func.func @transform_9(%arg0: i32) -> (i32, i32, i32) {
    %c0_i32 = arith.constant 0 : i32
    %c0_i32_0 = arith.constant 0 : i32
    %c0_i32_1 = arith.constant 0 : i32
    return %arg0, %c0_i32, %c0_i32_0 : i32, i32, i32
  }
  func.func @transform_10(%arg0: i32) -> (i32, i32, i32) {
    %c0_i32 = arith.constant 0 : i32
    %c0_i32_0 = arith.constant 0 : i32
    %c0_i32_1 = arith.constant 0 : i32
    return %arg0, %c0_i32, %c0_i32_0 : i32, i32, i32
  }
  func.func @transform_11(%arg0: i32) -> (i32, i32, i32) {
    %c0_i32 = arith.constant 0 : i32
    %c0_i32_0 = arith.constant 0 : i32
    %c0_i32_1 = arith.constant 0 : i32
    return %arg0, %c0_i32, %c0_i32_0 : i32, i32, i32
  }
  func.func @transform_12(%arg0: i32) -> (i32, i32, i32) {
    %c0_i32 = arith.constant 0 : i32
    %c0_i32_0 = arith.constant 0 : i32
    %c0_i32_1 = arith.constant 0 : i32
    return %arg0, %c0_i32, %c0_i32_0 : i32, i32, i32
  }
  func.func @transform_13(%arg0: i32) -> (i32, i32) {
    %c0_i32 = arith.constant 0 : i32
    %c0_i32_0 = arith.constant 0 : i32
    %c0_i32_1 = arith.constant 0 : i32
    return %c0_i32, %c0_i32_0 : i32, i32
  }
  func.func @transform_14(%arg0: i32) -> (i32, i32) {
    %c0_i32 = arith.constant 0 : i32
    %c0_i32_0 = arith.constant 0 : i32
    %c0_i32_1 = arith.constant 0 : i32
    return %c0_i32, %c0_i32_0 : i32, i32
  }
  func.func @transform_15(%arg0: i32) -> (i32, i32, i32) {
    %c0_i32 = arith.constant 0 : i32
    %c0_i32_0 = arith.constant 0 : i32
    %c0_i32_1 = arith.constant 0 : i32
    %c0_i32_2 = arith.constant 0 : i32
    return %c0_i32, %c0_i32_0, %c0_i32_1 : i32, i32, i32
  }
}

</mosaic_0001>

<llo_original>
// kernel: tpu_custom_call.1
$region0: #{tpu_custom_call.1}
  #allocation0 [shape = 'u32[]', space=smem, size = 0x4, offset = 0x4, fixed_abs, tag = 'smem constant byte address 0x4 - core index']
  #allocation1 [shape = 'u32[72,128]{1,0:T(1,128)}', space=vmem, size = 0x9000, scoped, tag = 'internal scratch']
  #allocation2 [shape = 'f32[2,8,128]{2,1,0:T(8,128)}', space=vmem, size = 0x2000, scoped, tag = 'scratch operand']
  %s0 = inlined_call_operand.hbm [shape: f32[2,8,128], index: 0, kind: input, shape index: {}]
  %s1 = inlined_call_operand.hbm [shape: f32[2,1,128], index: 1, kind: input, shape index: {}]
  %s2 = inlined_call_operand.hbm [shape: f32[2,1,128], index: 2, kind: input, shape index: {}]
  %s3 = inlined_call_operand.hbm [shape: bf16[2,4,128,384], index: 3, kind: input, shape index: {}]
  %s4 = inlined_call_operand.hbm [shape: f32[2,4,1,384], index: 4, kind: input, shape index: {}]
  %s5 = inlined_call_operand.hbm [shape: bf16[2,4,128,128], index: 5, kind: input, shape index: {}]
  %s6 = inlined_call_operand.vmem [shape: f32[2,1,128], index: 6, kind: input, shape index: {}]
  %s7 = inlined_call_operand.vmem [shape: f32[2,1,128], index: 7, kind: input, shape index: {}]
  %s8 = inlined_call_operand.vmem [shape: f32[2,1,128], index: 8, kind: input, shape index: {}]
  %s9 = inlined_call_operand.hbm [shape: bf16[2,128,128], index: 9, kind: input, shape index: {}]
  %s10 = inlined_call_operand.vmem [shape: f32[2,1,128], index: 10, kind: input, shape index: {}]
  %s11 = inlined_call_operand.hbm [shape: bf16[2,128,128], index: 11, kind: input, shape index: {}]
  %s12 = inlined_call_operand.vmem [shape: f32[2,1,128], index: 12, kind: input, shape index: {}]
  %s13 = inlined_call_operand.vmem [shape: f32[1,128], index: 13, kind: input, shape index: {}]
  %s14 = inlined_call_operand.vmem [shape: f32[1,128], index: 14, kind: input, shape index: {}]
  %s15 = inlined_call_operand.hbm [shape: bf16[2,8,128], index: 15, kind: output, shape index: {}]
  %s16 = sld [smem:[#allocation0]]
  $region133: #{tpu_custom_call.1} parent=0
    _
  %s18 = ssub.s32 1, %s16
  %s19 = scalar_select 0, %s18, %s16
  $region1: #{tpu_custom_call.1} parent=0
    #allocation3 [shape = 'u8[8192]{0}', space=vmem, size = 0x2000, scoped, tag = 'input window, operand 0, single buffered']
    #allocation4 [shape = 's32[2]{0}', space=sflag, size = 0x8, scoped, tag = 'scoped memory for tpu_custom_call.1']
    #allocation5 [shape = 's32[2]{0}', space=sflag, size = 0x8, scoped, tag = 'scoped memory for tpu_custom_call.1']
    #allocation6 [shape = 'u8[1024]{0}', space=vmem, size = 0x400, scoped, tag = 'input window, operand 1']
    #allocation7 [shape = 's32[2]{0}', space=sflag, size = 0x8, scoped, tag = 'scoped memory for tpu_custom_call.1']
    #allocation8 [shape = 'u8[1024]{0}', space=vmem, size = 0x400, scoped, tag = 'input window, operand 2']
    #allocation9 [shape = 'u8[786432]{0}', space=vmem, size = 0xc0000, scoped, tag = 'input window, operand 3']
    #allocation10 [shape = 's32[2]{0}', space=sflag, size = 0x8, scoped, tag = 'scoped memory for tpu_custom_call.1']
    #allocation11 [shape = 'u8[12288]{0}', space=vmem, size = 0x3000, scoped, tag = 'input window, operand 4']
    #allocation12 [shape = 'u8[262144]{0}', space=vmem, size = 0x40000, scoped, tag = 'input window, operand 5']
    #allocation13 [shape = 's32[2]{0}', space=sflag, size = 0x8, scoped, tag = 'scoped memory for tpu_custom_call.1']
    #allocation14 [shape = 'u8[65536]{0}', space=vmem, size = 0x10000, scoped, tag = 'input window, operand 9']
    #allocation15 [shape = 'u8[65536]{0}', space=vmem, size = 0x10000, scoped, tag = 'input window, operand 11']
    #allocation16 [shape = 's32[2]{0}', space=sflag, size = 0x8, scoped, tag = 'scoped memory for tpu_custom_call.1']
    #allocation17 [shape = 'u8[4096]{0}', space=vmem, size = 0x1000, scoped, tag = 'output window, operand 0, single buffered']
    %20 = vsyncpa [#allocation4], 0
    %21 = vsyncpa [#allocation7], 0
    %s22 = scalar_lea.sflag [#allocation7], 1
    %23 = vsyncpa %s22, 0
    %24 = vsyncpa [#allocation10], 0
    %s25 = scalar_lea.sflag [#allocation10], 1
    %26 = vsyncpa %s25, 0
    %27 = vsyncpa [#allocation13], 0
    %s28 = scalar_lea.sflag [#allocation13], 1
    %29 = vsyncpa %s28, 0
    %30 = vsyncpa [#allocation16], 0
    %s31 = scalar_lea.sflag [#allocation16], 1
    %32 = vsyncpa %s31, 0
    %33 = vsyncpa [#allocation5], 0
    loop: start=0, step=1, limit=4
    $region2: #{tpu_custom_call.1} parent=1 // loop_pre_header
      _
    $region3: #{tpu_custom_call.1} parent=1 // loop_header
      %s35 = sphi 0, %s39
      %p36 = scmp.ge.s32.totalorder %s35, 4
      %s43 = sphi 0, %s43
      %s45 = sphi 0, %s43
      %s46 = sphi 0, %s45
      %s60 = sphi 0, %s46
      %s66 = sphi 0, %s68
      %s69 = sphi 0, %s66
      %s70 = sphi 0, %s69
      %s86 = sphi 0, %s70
      %s92 = sphi 0, %s94
      %s95 = sphi 0, %s92
      %s96 = sphi 0, %s95
      %s112 = sphi 0, %s96
      %s118 = sphi 0, %s120
      %s121 = sphi 0, %s118
      %s122 = sphi 0, %s121
      %s138 = sphi 0, %s122
      %s144 = sphi 0, %s146
      %s147 = sphi 0, %s144
      %s148 = sphi 0, %s147
      %s164 = sphi 0, %s148
      %s170 = sphi 0, %s172
      %s173 = sphi 0, %s170
      %s174 = sphi 0, %s173
      %s190 = sphi 0, %s174
      %s196 = sphi 0, %s198
      %s199 = sphi 0, %s196
      %s200 = sphi 0, %s199
      %s216 = sphi 0, %s200
      %s222 = sphi 0, %s224
      %s225 = sphi 0, %s222
      %s226 = sphi 0, %s225
      %s242 = sphi 0, %s226
      %s248 = sphi 0, %s250
      %s251 = sphi 0, %s248
      %s252 = sphi 0, %s251
      %s268 = sphi 0, %s252
      %s274 = sphi 0, %s276
      %s277 = sphi 0, %s274
      %s278 = sphi 0, %s277
      %s294 = sphi 0, %s278
      %s300 = sphi 0, %s302
      %s303 = sphi 0, %s300
      %s304 = sphi 0, %s303
      %s320 = sphi 0, %s304
      %s326 = sphi 0, %s328
      %s329 = sphi 0, %s326
      %s330 = sphi 0, %s329
      %s346 = sphi 0, %s330
      %s352 = sphi 0, %s354
      %s355 = sphi 0, %s352
      %s356 = sphi 0, %s355
      %s372 = sphi 0, %s356
      %s376 = sphi 0, %s376
      %s378 = sphi 0, %s376
      %s379 = sphi 0, %s378
      %s393 = sphi 0, %s379
      %s397 = sphi 0, %s397
      %s399 = sphi 0, %s397
      %s400 = sphi 0, %s399
      %s414 = sphi 0, %s400
      %s418 = sphi 0, %s418
      %s420 = sphi 0, %s418
      %s421 = sphi 0, %s420
      %s435 = sphi 0, %s421
    $region4: #{tpu_custom_call.1} parent=1 // loop_header_branch
      %38 = sbr.rel (%p36) target = $region8
    $region5: #{tpu_custom_call.1} parent=1 // loop_body
      %s40 = ssub.s32 %s35, 1
      %s41 = ssub.s32 %s35, 2
      %s42 = sadd.s32 %s35, 1
      %s44 = sadd.s32 %s43, 1
      %p47 = scmp.eq.s32.totalorder %s35, 1
      %p48 = scmp.ne.s32.totalorder %s43, %s45
      %p49 = scmp.eq.s32.totalorder %s35, 0
      %p50 = por %p48, %p49
      %p51 = scmp.ne.s32.totalorder %s43, %s45
      %p52 = scmp.eq.s32.totalorder %s40, 1
      %p53 = por %p51, %p52
      %p54 = scmp.ne.s32.totalorder %s45, %s46
      %p55 = scmp.eq.s32.totalorder %s40, 0
      %p56 = por %p54, %p55
      %p57 = scmp.ne.s32.totalorder %s45, %s46
      %p58 = scmp.eq.s32.totalorder %s41, 1
      %p59 = por %p57, %p58
      %p61 = scmp.ne.s32.totalorder %s46, %s60
      %p62 = scmp.eq.s32.totalorder %s41, 0
      %p63 = por %p61, %p62
      %s64 = ssub.s32 %s35, %s42
      %p65 = scmp.eq.s32.totalorder %s64, 0
      %s67 = sadd.s32 %s66, 1
      %s68 = scalar_select %p65, %s66, %s67
      %p71 = pneg %p65
      %p72 = scmp.eq.s32.totalorder %s35, 1
      %p73 = por %p71, %p72
      %p74 = scmp.ne.s32.totalorder %s66, %s69
      %p75 = scmp.eq.s32.totalorder %s35, 0
      %p76 = por %p74, %p75
      %p77 = scmp.ne.s32.totalorder %s66, %s69
      %p78 = scmp.eq.s32.totalorder %s40, 1
      %p79 = por %p77, %p78
      %p80 = scmp.ne.s32.totalorder %s69, %s70
      %p81 = scmp.eq.s32.totalorder %s40, 0
      %p82 = por %p80, %p81
      %p83 = scmp.ne.s32.totalorder %s69, %s70
      %p84 = scmp.eq.s32.totalorder %s41, 1
      %p85 = por %p83, %p84
      %p87 = scmp.ne.s32.totalorder %s70, %s86
      %p88 = scmp.eq.s32.totalorder %s41, 0
      %p89 = por %p87, %p88
      %s90 = ssub.s32 %s35, %s42
      %p91 = scmp.eq.s32.totalorder %s90, 0
      %s93 = sadd.s32 %s92, 1
      %s94 = scalar_select %p91, %s92, %s93
      %p97 = pneg %p91
      %p98 = scmp.eq.s32.totalorder %s35, 1
      %p99 = por %p97, %p98
      %p100 = scmp.ne.s32.totalorder %s92, %s95
      %p101 = scmp.eq.s32.totalorder %s35, 0
      %p102 = por %p100, %p101
      %p103 = scmp.ne.s32.totalorder %s92, %s95
      %p104 = scmp.eq.s32.totalorder %s40, 1
      %p105 = por %p103, %p104
      %p106 = scmp.ne.s32.totalorder %s95, %s96
      %p107 = scmp.eq.s32.totalorder %s40, 0
      %p108 = por %p106, %p107
      %p109 = scmp.ne.s32.totalorder %s95, %s96
      %p110 = scmp.eq.s32.totalorder %s41, 1
      %p111 = por %p109, %p110
      %p113 = scmp.ne.s32.totalorder %s96, %s112
      %p114 = scmp.eq.s32.totalorder %s41, 0
      %p115 = por %p113, %p114
      %s116 = ssub.s32 %s35, %s42
      %p117 = scmp.eq.s32.totalorder %s116, 0
      %s119 = sadd.s32 %s118, 1
      %s120 = scalar_select %p117, %s118, %s119
      %p123 = pneg %p117
      %p124 = scmp.eq.s32.totalorder %s35, 1
      %p125 = por %p123, %p124
      %p126 = scmp.ne.s32.totalorder %s118, %s121
      %p127 = scmp.eq.s32.totalorder %s35, 0
      %p128 = por %p126, %p127
      %p129 = scmp.ne.s32.totalorder %s118, %s121
      %p130 = scmp.eq.s32.totalorder %s40, 1
      %p131 = por %p129, %p130
      %p132 = scmp.ne.s32.totalorder %s121, %s122
      %p133 = scmp.eq.s32.totalorder %s40, 0
      %p134 = por %p132, %p133
      %p135 = scmp.ne.s32.totalorder %s121, %s122
      %p136 = scmp.eq.s32.totalorder %s41, 1
      %p137 = por %p135, %p136
      %p139 = scmp.ne.s32.totalorder %s122, %s138
      %p140 = scmp.eq.s32.totalorder %s41, 0
      %p141 = por %p139, %p140
      %s142 = ssub.s32 %s35, %s42
      %p143 = scmp.eq.s32.totalorder %s142, 0
      %s145 = sadd.s32 %s144, 1
      %s146 = scalar_select %p143, %s144, %s145
      %p149 = pneg %p143
      %p150 = scmp.eq.s32.totalorder %s35, 1
      %p151 = por %p149, %p150
      %p152 = scmp.ne.s32.totalorder %s144, %s147
      %p153 = scmp.eq.s32.totalorder %s35, 0
      %p154 = por %p152, %p153
      %p155 = scmp.ne.s32.totalorder %s144, %s147
      %p156 = scmp.eq.s32.totalorder %s40, 1
      %p157 = por %p155, %p156
      %p158 = scmp.ne.s32.totalorder %s147, %s148
      %p159 = scmp.eq.s32.totalorder %s40, 0
      %p160 = por %p158, %p159
      %p161 = scmp.ne.s32.totalorder %s147, %s148
      %p162 = scmp.eq.s32.totalorder %s41, 1
      %p163 = por %p161, %p162
      %p165 = scmp.ne.s32.totalorder %s148, %s164
      %p166 = scmp.eq.s32.totalorder %s41, 0
      %p167 = por %p165, %p166
      %s168 = ssub.s32 %s35, %s42
      %p169 = scmp.eq.s32.totalorder %s168, 0
      %s171 = sadd.s32 %s170, 1
      %s172 = scalar_select %p169, %s170, %s171
      %p175 = pneg %p169
      %p176 = scmp.eq.s32.totalorder %s35, 1
      %p177 = por %p175, %p176
      %p178 = scmp.ne.s32.totalorder %s170, %s173
      %p179 = scmp.eq.s32.totalorder %s35, 0
      %p180 = por %p178, %p179
      %p181 = scmp.ne.s32.totalorder %s170, %s173
      %p182 = scmp.eq.s32.totalorder %s40, 1
      %p183 = por %p181, %p182
      %p184 = scmp.ne.s32.totalorder %s173, %s174
      %p185 = scmp.eq.s32.totalorder %s40, 0
      %p186 = por %p184, %p185
      %p187 = scmp.ne.s32.totalorder %s173, %s174
      %p188 = scmp.eq.s32.totalorder %s41, 1
      %p189 = por %p187, %p188
      %p191 = scmp.ne.s32.totalorder %s174, %s190
      %p192 = scmp.eq.s32.totalorder %s41, 0
      %p193 = por %p191, %p192
      %s194 = ssub.s32 %s35, %s42
      %p195 = scmp.eq.s32.totalorder %s194, 0
      %s197 = sadd.s32 %s196, 1
      %s198 = scalar_select %p195, %s196, %s197
      %p201 = pneg %p195
      %p202 = scmp.eq.s32.totalorder %s35, 1
      %p203 = por %p201, %p202
      %p204 = scmp.ne.s32.totalorder %s196, %s199
      %p205 = scmp.eq.s32.totalorder %s35, 0
      %p206 = por %p204, %p205
      %p207 = scmp.ne.s32.totalorder %s196, %s199
      %p208 = scmp.eq.s32.totalorder %s40, 1
      %p209 = por %p207, %p208
      %p210 = scmp.ne.s32.totalorder %s199, %s200
      %p211 = scmp.eq.s32.totalorder %s40, 0
      %p212 = por %p210, %p211
      %p213 = scmp.ne.s32.totalorder %s199, %s200
      %p214 = scmp.eq.s32.totalorder %s41, 1
      %p215 = por %p213, %p214
      %p217 = scmp.ne.s32.totalorder %s200, %s216
      %p218 = scmp.eq.s32.totalorder %s41, 0
      %p219 = por %p217, %p218
      %s220 = ssub.s32 %s35, %s42
      %p221 = scmp.eq.s32.totalorder %s220, 0
      %s223 = sadd.s32 %s222, 1
      %s224 = scalar_select %p221, %s222, %s223
      %p227 = pneg %p221
      %p228 = scmp.eq.s32.totalorder %s35, 1
      %p229 = por %p227, %p228
      %p230 = scmp.ne.s32.totalorder %s222, %s225
      %p231 = scmp.eq.s32.totalorder %s35, 0
      %p232 = por %p230, %p231
      %p233 = scmp.ne.s32.totalorder %s222, %s225
      %p234 = scmp.eq.s32.totalorder %s40, 1
      %p235 = por %p233, %p234
      %p236 = scmp.ne.s32.totalorder %s225, %s226
      %p237 = scmp.eq.s32.totalorder %s40, 0
      %p238 = por %p236, %p237
      %p239 = scmp.ne.s32.totalorder %s225, %s226
      %p240 = scmp.eq.s32.totalorder %s41, 1
      %p241 = por %p239, %p240
      %p243 = scmp.ne.s32.totalorder %s226, %s242
      %p244 = scmp.eq.s32.totalorder %s41, 0
      %p245 = por %p243, %p244
      %s246 = ssub.s32 %s35, %s42
      %p247 = scmp.eq.s32.totalorder %s246, 0
      %s249 = sadd.s32 %s248, 1
      %s250 = scalar_select %p247, %s248, %s249
      %p253 = pneg %p247
      %p254 = scmp.eq.s32.totalorder %s35, 1
      %p255 = por %p253, %p254
      %p256 = scmp.ne.s32.totalorder %s248, %s251
      %p257 = scmp.eq.s32.totalorder %s35, 0
      %p258 = por %p256, %p257
      %p259 = scmp.ne.s32.totalorder %s248, %s251
      %p260 = scmp.eq.s32.totalorder %s40, 1
      %p261 = por %p259, %p260
      %p262 = scmp.ne.s32.totalorder %s251, %s252
      %p263 = scmp.eq.s32.totalorder %s40, 0
      %p264 = por %p262, %p263
      %p265 = scmp.ne.s32.totalorder %s251, %s252
      %p266 = scmp.eq.s32.totalorder %s41, 1
      %p267 = por %p265, %p266
      %p269 = scmp.ne.s32.totalorder %s252, %s268
      %p270 = scmp.eq.s32.totalorder %s41, 0
      %p271 = por %p269, %p270
      %s272 = ssub.s32 %s35, %s42
      %p273 = scmp.eq.s32.totalorder %s272, 0
      %s275 = sadd.s32 %s274, 1
      %s276 = scalar_select %p273, %s274, %s275
      %p279 = pneg %p273
      %p280 = scmp.eq.s32.totalorder %s35, 1
      %p281 = por %p279, %p280
      %p282 = scmp.ne.s32.totalorder %s274, %s277
      %p283 = scmp.eq.s32.totalorder %s35, 0
      %p284 = por %p282, %p283
      %p285 = scmp.ne.s32.totalorder %s274, %s277
      %p286 = scmp.eq.s32.totalorder %s40, 1
      %p287 = por %p285, %p286
      %p288 = scmp.ne.s32.totalorder %s277, %s278
      %p289 = scmp.eq.s32.totalorder %s40, 0
      %p290 = por %p288, %p289
      %p291 = scmp.ne.s32.totalorder %s277, %s278
      %p292 = scmp.eq.s32.totalorder %s41, 1
      %p293 = por %p291, %p292
      %p295 = scmp.ne.s32.totalorder %s278, %s294
      %p296 = scmp.eq.s32.totalorder %s41, 0
      %p297 = por %p295, %p296
      %s298 = ssub.s32 %s35, %s42
      %p299 = scmp.eq.s32.totalorder %s298, 0
      %s301 = sadd.s32 %s300, 1
      %s302 = scalar_select %p299, %s300, %s301
      %p305 = pneg %p299
      %p306 = scmp.eq.s32.totalorder %s35, 1
      %p307 = por %p305, %p306
      %p308 = scmp.ne.s32.totalorder %s300, %s303
      %p309 = scmp.eq.s32.totalorder %s35, 0
      %p310 = por %p308, %p309
      %p311 = scmp.ne.s32.totalorder %s300, %s303
      %p312 = scmp.eq.s32.totalorder %s40, 1
      %p313 = por %p311, %p312
      %p314 = scmp.ne.s32.totalorder %s303, %s304
      %p315 = scmp.eq.s32.totalorder %s40, 0
      %p316 = por %p314, %p315
      %p317 = scmp.ne.s32.totalorder %s303, %s304
      %p318 = scmp.eq.s32.totalorder %s41, 1
      %p319 = por %p317, %p318
      %p321 = scmp.ne.s32.totalorder %s304, %s320
      %p322 = scmp.eq.s32.totalorder %s41, 0
      %p323 = por %p321, %p322
      %s324 = ssub.s32 %s35, %s42
      %p325 = scmp.eq.s32.totalorder %s324, 0
      %s327 = sadd.s32 %s326, 1
      %s328 = scalar_select %p325, %s326, %s327
      %p331 = pneg %p325
      %p332 = scmp.eq.s32.totalorder %s35, 1
      %p333 = por %p331, %p332
      %p334 = scmp.ne.s32.totalorder %s326, %s329
      %p335 = scmp.eq.s32.totalorder %s35, 0
      %p336 = por %p334, %p335
      %p337 = scmp.ne.s32.totalorder %s326, %s329
      %p338 = scmp.eq.s32.totalorder %s40, 1
      %p339 = por %p337, %p338
      %p340 = scmp.ne.s32.totalorder %s329, %s330
      %p341 = scmp.eq.s32.totalorder %s40, 0
      %p342 = por %p340, %p341
      %p343 = scmp.ne.s32.totalorder %s329, %s330
      %p344 = scmp.eq.s32.totalorder %s41, 1
      %p345 = por %p343, %p344
      %p347 = scmp.ne.s32.totalorder %s330, %s346
      %p348 = scmp.eq.s32.totalorder %s41, 0
      %p349 = por %p347, %p348
      %s350 = ssub.s32 %s35, %s42
      %p351 = scmp.eq.s32.totalorder %s350, 0
      %s353 = sadd.s32 %s352, 1
      %s354 = scalar_select %p351, %s352, %s353
      %p357 = pneg %p351
      %p358 = scmp.eq.s32.totalorder %s35, 1
      %p359 = por %p357, %p358
      %p360 = scmp.ne.s32.totalorder %s352, %s355
      %p361 = scmp.eq.s32.totalorder %s35, 0
      %p362 = por %p360, %p361
      %p363 = scmp.ne.s32.totalorder %s352, %s355
      %p364 = scmp.eq.s32.totalorder %s40, 1
      %p365 = por %p363, %p364
      %p366 = scmp.ne.s32.totalorder %s355, %s356
      %p367 = scmp.eq.s32.totalorder %s40, 0
      %p368 = por %p366, %p367
      %p369 = scmp.ne.s32.totalorder %s355, %s356
      %p370 = scmp.eq.s32.totalorder %s41, 1
      %p371 = por %p369, %p370
      %p373 = scmp.ne.s32.totalorder %s356, %s372
      %p374 = scmp.eq.s32.totalorder %s41, 0
      %p375 = por %p373, %p374
      %s377 = sadd.s32 %s376, 1
      %p380 = scmp.eq.s32.totalorder %s35, 1
      %p381 = scmp.ne.s32.totalorder %s376, %s378
      %p382 = scmp.eq.s32.totalorder %s35, 0
      %p383 = por %p381, %p382
      %p384 = scmp.ne.s32.totalorder %s376, %s378
      %p385 = scmp.eq.s32.totalorder %s40, 1
      %p386 = por %p384, %p385
      %p387 = scmp.ne.s32.totalorder %s378, %s379
      %p388 = scmp.eq.s32.totalorder %s40, 0
      %p389 = por %p387, %p388
      %p390 = scmp.ne.s32.totalorder %s378, %s379
      %p391 = scmp.eq.s32.totalorder %s41, 1
      %p392 = por %p390, %p391
      %p394 = scmp.ne.s32.totalorder %s379, %s393
      %p395 = scmp.eq.s32.totalorder %s41, 0
      %p396 = por %p394, %p395
      %s398 = sadd.s32 %s397, 1
      %p401 = scmp.eq.s32.totalorder %s35, 1
      %p402 = scmp.ne.s32.totalorder %s397, %s399
      %p403 = scmp.eq.s32.totalorder %s35, 0
      %p404 = por %p402, %p403
      %p405 = scmp.ne.s32.totalorder %s397, %s399
      %p406 = scmp.eq.s32.totalorder %s40, 1
      %p407 = por %p405, %p406
      %p408 = scmp.ne.s32.totalorder %s399, %s400
      %p409 = scmp.eq.s32.totalorder %s40, 0
      %p410 = por %p408, %p409
      %p411 = scmp.ne.s32.totalorder %s399, %s400
      %p412 = scmp.eq.s32.totalorder %s41, 1
      %p413 = por %p411, %p412
      %p415 = scmp.ne.s32.totalorder %s400, %s414
      %p416 = scmp.eq.s32.totalorder %s41, 0
      %p417 = por %p415, %p416
      %s419 = sadd.s32 %s418, 1
      %p422 = scmp.eq.s32.totalorder %s35, 1
      %p423 = scmp.ne.s32.totalorder %s418, %s420
      %p424 = scmp.eq.s32.totalorder %s35, 0
      %p425 = por %p423, %p424
      %p426 = scmp.ne.s32.totalorder %s418, %s420
      %p427 = scmp.eq.s32.totalorder %s40, 1
      %p428 = por %p426, %p427
      %p429 = scmp.ne.s32.totalorder %s420, %s421
      %p430 = scmp.eq.s32.totalorder %s40, 0
      %p431 = por %p429, %p430
      %p432 = scmp.ne.s32.totalorder %s420, %s421
      %p433 = scmp.eq.s32.totalorder %s41, 1
      %p434 = por %p432, %p433
      %p436 = scmp.ne.s32.totalorder %s421, %s435
      %p437 = scmp.eq.s32.totalorder %s41, 0
      %p438 = por %p436, %p437
      %p439 = scmp.le.s32.totalorder 1, %s35
      %p440 = scmp.lt.s32.totalorder %s35, 3
      %p441 = pnand %p439, %p440
      %p442 = pneg %p441
      // Predicated region
      $region9: #{tpu_custom_call.1} parent=5 // pred_check
        _
      $region10: #{tpu_custom_call.1} parent=5 // pred_check_branch
        %444 = sbr.rel (%p441) target = $region12
      $region11: #{tpu_custom_call.1} parent=5 // pred_region
        %s445 = ssub.s32 %s35, 1
        // Predicated region
        $region13: #{tpu_custom_call.1} parent=11 // pred_check
          %p446 = pneg %p56
        $region14: #{tpu_custom_call.1} parent=11 // pred_check_branch
          %448 = sbr.rel (%p446) target = $region16
        $region15: #{tpu_custom_call.1} parent=11 // pred_region
          %450 = vsyncadd [#allocation4], 0
          %s451 = sshll.u32 %s0, 4
          %s452 = int_to_ptr.hbm [resolvable:$true] %s451
          %s453 = sshll.u32 [#allocation3], 4
          %s454 = int_to_ptr.vmem [resolvable:$true] %s453
          %459 = dma.hbm_to_vmem [thread:$0]  %s452, 256, %s454, [#allocation4], 128, 128, 8
        $region16: #{tpu_custom_call.1} parent=11 // pred_fallthru
          _
        // Predicated region
        $region17: #{tpu_custom_call.1} parent=11 // pred_check
          %p460 = pneg %p389
        $region18: #{tpu_custom_call.1} parent=11 // pred_check_branch
          %462 = sbr.rel (%p460) target = $region20
        $region19: #{tpu_custom_call.1} parent=11 // pred_region
          _
        $region20: #{tpu_custom_call.1} parent=11 // pred_fallthru
          _
        // Predicated region
        $region21: #{tpu_custom_call.1} parent=11 // pred_check
          %p463 = pneg %p410
        $region22: #{tpu_custom_call.1} parent=11 // pred_check_branch
          %465 = sbr.rel (%p463) target = $region24
        $region23: #{tpu_custom_call.1} parent=11 // pred_region
          _
        $region24: #{tpu_custom_call.1} parent=11 // pred_fallthru
          _
      $region12: #{tpu_custom_call.1} parent=5 // pred_fallthru
        _
      %p466 = scmp.lt.s32.totalorder %s35, 2
      // Predicated region
      $region25: #{tpu_custom_call.1} parent=5 // pred_check
        %p467 = pneg %p466
      $region26: #{tpu_custom_call.1} parent=5 // pred_check_branch
        %469 = sbr.rel (%p467) target = $region28
      $region27: #{tpu_custom_call.1} parent=5 // pred_region
        // Predicated region
        $region29: #{tpu_custom_call.1} parent=27 // pred_check
          %p470 = pneg %p76
        $region30: #{tpu_custom_call.1} parent=27 // pred_check_branch
          %472 = sbr.rel (%p470) target = $region32
        $region31: #{tpu_custom_call.1} parent=27 // pred_region
          %s473 = sand.u32 %s35, 1
          %s474 = scalar_lea.sflag [#allocation7], %s473
          %s475 = sand.u32 %s66, 1
          %s476 = scalar_lea.vmem [#allocation6], %s475
          %478 = vsyncadd %s474, 0
          %s479 = scalar_lea.hbm %s1, %s35
          %s481 = sshll.u32 %s479, 4
          %s482 = int_to_ptr.hbm [resolvable:$true] %s481
          %s483 = sshll.u32 %s476, 4
          %s484 = int_to_ptr.vmem [resolvable:$true] %s483
          %486 = dma.hbm_to_vmem [thread:$0]  %s482, 16, %s484, %s474
        $region32: #{tpu_custom_call.1} parent=27 // pred_fallthru
          _
        // Predicated region
        $region33: #{tpu_custom_call.1} parent=27 // pred_check
          %p487 = pneg %p102
        $region34: #{tpu_custom_call.1} parent=27 // pred_check_branch
          %489 = sbr.rel (%p487) target = $region36
        $region35: #{tpu_custom_call.1} parent=27 // pred_region
          %s490 = sand.u32 %s35, 1
          %s491 = scalar_lea.sflag [#allocation7], %s490
          %s492 = sand.u32 %s92, 1
          %s493 = scalar_lea.vmem [#allocation8], %s492
          %495 = vsyncadd %s491, 0
          %s496 = scalar_lea.hbm %s2, %s35
          %s498 = sshll.u32 %s496, 4
          %s499 = int_to_ptr.hbm [resolvable:$true] %s498
          %s500 = sshll.u32 %s493, 4
          %s501 = int_to_ptr.vmem [resolvable:$true] %s500
          %503 = dma.hbm_to_vmem [thread:$0]  %s499, 16, %s501, %s491
        $region36: #{tpu_custom_call.1} parent=27 // pred_fallthru
          _
        // Predicated region
        $region37: #{tpu_custom_call.1} parent=27 // pred_check
          %p504 = pneg %p128
        $region38: #{tpu_custom_call.1} parent=27 // pred_check_branch
          %506 = sbr.rel (%p504) target = $region40
        $region39: #{tpu_custom_call.1} parent=27 // pred_region
          %s507 = sand.u32 %s35, 1
          %s508 = scalar_lea.sflag [#allocation10], %s507
          %s509 = sand.u32 %s118, 1
          %s510 = smul.addr %s509, 768
          %s511 = scalar_lea.vmem [#allocation9], %s510
          %513 = vsyncadd %s508, 0
          %s514 = smul.addr %s35, 192
          %s515 = smul.addr %s514, 4
          %s516 = scalar_lea.hbm %s3, %s515
          %s517 = sshll.u32 %s516, 4
          %s518 = int_to_ptr.hbm [resolvable:$true] %s517
          %s519 = sshll.u32 %s511, 4
          %s520 = int_to_ptr.vmem [resolvable:$true] %s519
          %525 = dma.hbm_to_vmem [thread:$0]  %s518, 12288, %s520, %s508, 192, 192, 12
        $region40: #{tpu_custom_call.1} parent=27 // pred_fallthru
          _
        // Predicated region
        $region41: #{tpu_custom_call.1} parent=27 // pred_check
          %p526 = pneg %p154
        $region42: #{tpu_custom_call.1} parent=27 // pred_check_branch
          %528 = sbr.rel (%p526) target = $region44
        $region43: #{tpu_custom_call.1} parent=27 // pred_region
          %s529 = sand.u32 %s35, 1
          %s530 = scalar_lea.sflag [#allocation10], %s529
          %s531 = sand.u32 %s144, 1
          %s532 = smul.addr %s531, 12
          %s533 = scalar_lea.vmem [#allocation11], %s532
          %535 = vsyncadd %s530, 0
          %s536 = smul.addr %s35, 12
          %s537 = scalar_lea.hbm %s4, %s536
          %s538 = sshll.u32 %s537, 4
          %s539 = int_to_ptr.hbm [resolvable:$true] %s538
          %s540 = sshll.u32 %s533, 4
          %s541 = int_to_ptr.vmem [resolvable:$true] %s540
          %546 = dma.hbm_to_vmem [thread:$0]  %s539, 192, %s541, %s530, 48, 48, 3
        $region44: #{tpu_custom_call.1} parent=27 // pred_fallthru
          _
        // Predicated region
        $region45: #{tpu_custom_call.1} parent=27 // pred_check
          %p547 = pneg %p180
        $region46: #{tpu_custom_call.1} parent=27 // pred_check_branch
          %549 = sbr.rel (%p547) target = $region48
        $region47: #{tpu_custom_call.1} parent=27 // pred_region
          %s550 = sand.u32 %s35, 1
          %s551 = scalar_lea.sflag [#allocation13], %s550
          %s552 = sand.u32 %s170, 1
          %s553 = smul.addr %s552, 256
          %s554 = scalar_lea.vmem [#allocation12], %s553
          %556 = vsyncadd %s551, 0
          %s557 = smul.addr %s35, 64
          %s558 = smul.addr %s557, 4
          %s559 = scalar_lea.hbm %s5, %s558
          %s560 = sshll.u32 %s559, 4
          %s561 = int_to_ptr.hbm [resolvable:$true] %s560
          %s562 = sshll.u32 %s554, 4
          %s563 = int_to_ptr.vmem [resolvable:$true] %s562
          %568 = dma.hbm_to_vmem [thread:$0]  %s561, 4096, %s563, %s551, 64, 64, 4
        $region48: #{tpu_custom_call.1} parent=27 // pred_fallthru
          _
        // Predicated region
        $region49: #{tpu_custom_call.1} parent=27 // pred_check
          %p569 = pneg %p206
        $region50: #{tpu_custom_call.1} parent=27 // pred_check_branch
          %571 = sbr.rel (%p569) target = $region52
        $region51: #{tpu_custom_call.1} parent=27 // pred_region
          %p572 = scmp.lt.s32.totalorder %s35, 1
          %s573 = scalar_select %p572, %s35, 1
          %s574 = scalar_lea.vmem %s6, %s573
        $region52: #{tpu_custom_call.1} parent=27 // pred_fallthru
          _
        // Predicated region
        $region53: #{tpu_custom_call.1} parent=27 // pred_check
          %p575 = pneg %p232
        $region54: #{tpu_custom_call.1} parent=27 // pred_check_branch
          %577 = sbr.rel (%p575) target = $region56
        $region55: #{tpu_custom_call.1} parent=27 // pred_region
          %p578 = scmp.lt.s32.totalorder %s35, 1
          %s579 = scalar_select %p578, %s35, 1
          %s580 = scalar_lea.vmem %s7, %s579
        $region56: #{tpu_custom_call.1} parent=27 // pred_fallthru
          _
        // Predicated region
        $region57: #{tpu_custom_call.1} parent=27 // pred_check
          %p581 = pneg %p258
        $region58: #{tpu_custom_call.1} parent=27 // pred_check_branch
          %583 = sbr.rel (%p581) target = $region60
        $region59: #{tpu_custom_call.1} parent=27 // pred_region
          %p584 = scmp.lt.s32.totalorder %s35, 1
          %s585 = scalar_select %p584, %s35, 1
          %s586 = scalar_lea.vmem %s8, %s585
        $region60: #{tpu_custom_call.1} parent=27 // pred_fallthru
          _
        // Predicated region
        $region61: #{tpu_custom_call.1} parent=27 // pred_check
          %p587 = pneg %p284
        $region62: #{tpu_custom_call.1} parent=27 // pred_check_branch
          %589 = sbr.rel (%p587) target = $region64
        $region63: #{tpu_custom_call.1} parent=27 // pred_region
          %s590 = sand.u32 %s35, 1
          %s591 = scalar_lea.sflag [#allocation13], %s590
          %s592 = sand.u32 %s274, 1
          %s593 = smul.addr %s592, 64
          %s594 = scalar_lea.vmem [#allocation14], %s593
          %596 = vsyncadd %s591, 0
          %s597 = smul.addr %s35, 16
          %s598 = smul.addr %s597, 4
          %s599 = scalar_lea.hbm %s9, %s598
          %s600 = sshll.u32 %s599, 4
          %s601 = int_to_ptr.hbm [resolvable:$true] %s600
          %s602 = sshll.u32 %s594, 4
          %s603 = int_to_ptr.vmem [resolvable:$true] %s602
          %608 = dma.hbm_to_vmem [thread:$0]  %s601, 1024, %s603, %s591, 64, 64, 4
        $region64: #{tpu_custom_call.1} parent=27 // pred_fallthru
          _
        // Predicated region
        $region65: #{tpu_custom_call.1} parent=27 // pred_check
          %p609 = pneg %p310
        $region66: #{tpu_custom_call.1} parent=27 // pred_check_branch
          %611 = sbr.rel (%p609) target = $region68
        $region67: #{tpu_custom_call.1} parent=27 // pred_region
          %p612 = scmp.lt.s32.totalorder %s35, 1
          %s613 = scalar_select %p612, %s35, 1
          %s614 = scalar_lea.vmem %s10, %s613
        $region68: #{tpu_custom_call.1} parent=27 // pred_fallthru
          _
        // Predicated region
        $region69: #{tpu_custom_call.1} parent=27 // pred_check
          %p615 = pneg %p336
        $region70: #{tpu_custom_call.1} parent=27 // pred_check_branch
          %617 = sbr.rel (%p615) target = $region72
        $region71: #{tpu_custom_call.1} parent=27 // pred_region
          %s618 = sand.u32 %s326, 1
          %s619 = scalar_lea.sflag [#allocation16], %s618
          %s620 = sand.u32 %s326, 1
          %s621 = smul.addr %s620, 64
          %s622 = scalar_lea.vmem [#allocation15], %s621
          %624 = vsyncadd %s619, 0
          %s625 = smul.addr %s35, 16
          %s626 = smul.addr %s625, 4
          %s627 = scalar_lea.hbm %s11, %s626
          %s628 = sshll.u32 %s627, 4
          %s629 = int_to_ptr.hbm [resolvable:$true] %s628
          %s630 = sshll.u32 %s622, 4
          %s631 = int_to_ptr.vmem [resolvable:$true] %s630
          %636 = dma.hbm_to_vmem [thread:$0]  %s629, 1024, %s631, %s619, 64, 64, 4
        $region72: #{tpu_custom_call.1} parent=27 // pred_fallthru
          _
        // Predicated region
        $region73: #{tpu_custom_call.1} parent=27 // pred_check
          %p637 = pneg %p362
        $region74: #{tpu_custom_call.1} parent=27 // pred_check_branch
          %639 = sbr.rel (%p637) target = $region76
        $region75: #{tpu_custom_call.1} parent=27 // pred_region
          %p640 = scmp.lt.s32.totalorder %s35, 1
          %s641 = scalar_select %p640, %s35, 1
          %s642 = scalar_lea.vmem %s12, %s641
        $region76: #{tpu_custom_call.1} parent=27 // pred_fallthru
          _
      $region28: #{tpu_custom_call.1} parent=5 // pred_fallthru
        _
      %p643 = scmp.le.s32.totalorder 1, %s35
      %p644 = scmp.lt.s32.totalorder %s35, 3
      %p645 = pnand %p643, %p644
      %p646 = pneg %p645
      // Predicated region
      $region77: #{tpu_custom_call.1} parent=5 // pred_check
        _
      $region78: #{tpu_custom_call.1} parent=5 // pred_check_branch
        %648 = sbr.rel (%p645) target = $region80
      $region79: #{tpu_custom_call.1} parent=5 // pred_region
        %s649 = ssub.s32 %s35, 1
        // Predicated region
        $region81: #{tpu_custom_call.1} parent=79 // pred_check
          %p650 = pneg %p56
        $region82: #{tpu_custom_call.1} parent=79 // pred_check_branch
          %652 = sbr.rel (%p650) target = $region84
        $region83: #{tpu_custom_call.1} parent=79 // pred_region
          %654 = dma.done [#allocation4], 256
        $region84: #{tpu_custom_call.1} parent=79 // pred_fallthru
          _
        %s655 = sand.u32 %s40, 1
        %s656 = scalar_lea.sflag [#allocation7], %s655
        %s657 = sand.u32 %s69, 1
        %s658 = scalar_lea.vmem [#allocation6], %s657
        // Predicated region
        $region85: #{tpu_custom_call.1} parent=79 // pred_check
          %p659 = pneg %p82
        $region86: #{tpu_custom_call.1} parent=79 // pred_check_branch
          %661 = sbr.rel (%p659) target = $region88
        $region87: #{tpu_custom_call.1} parent=79 // pred_region
          %663 = dma.done %s656, 16
        $region88: #{tpu_custom_call.1} parent=79 // pred_fallthru
          _
        %s664 = sand.u32 %s40, 1
        %s665 = scalar_lea.sflag [#allocation7], %s664
        %s666 = sand.u32 %s95, 1
        %s667 = scalar_lea.vmem [#allocation8], %s666
        // Predicated region
        $region89: #{tpu_custom_call.1} parent=79 // pred_check
          %p668 = pneg %p108
        $region90: #{tpu_custom_call.1} parent=79 // pred_check_branch
          %670 = sbr.rel (%p668) target = $region92
        $region91: #{tpu_custom_call.1} parent=79 // pred_region
          %672 = dma.done %s665, 16
        $region92: #{tpu_custom_call.1} parent=79 // pred_fallthru
          _
        %s673 = sand.u32 %s40, 1
        %s674 = scalar_lea.sflag [#allocation10], %s673
        %s675 = sand.u32 %s121, 1
        %s676 = smul.addr %s675, 768
        %s677 = scalar_lea.vmem [#allocation9], %s676
        // Predicated region
        $region93: #{tpu_custom_call.1} parent=79 // pred_check
          %p678 = pneg %p134
        $region94: #{tpu_custom_call.1} parent=79 // pred_check_branch
          %680 = sbr.rel (%p678) target = $region96
        $region95: #{tpu_custom_call.1} parent=79 // pred_region
          %682 = dma.done %s674, 12288
        $region96: #{tpu_custom_call.1} parent=79 // pred_fallthru
          _
        %s683 = sand.u32 %s40, 1
        %s684 = scalar_lea.sflag [#allocation10], %s683
        %s685 = sand.u32 %s147, 1
        %s686 = smul.addr %s685, 12
        %s687 = scalar_lea.vmem [#allocation11], %s686
        // Predicated region
        $region97: #{tpu_custom_call.1} parent=79 // pred_check
          %p688 = pneg %p160
        $region98: #{tpu_custom_call.1} parent=79 // pred_check_branch
          %690 = sbr.rel (%p688) target = $region100
        $region99: #{tpu_custom_call.1} parent=79 // pred_region
          %692 = dma.done %s684, 192
        $region100: #{tpu_custom_call.1} parent=79 // pred_fallthru
          _
        %s693 = sand.u32 %s40, 1
        %s694 = scalar_lea.sflag [#allocation13], %s693
        %s695 = sand.u32 %s173, 1
        %s696 = smul.addr %s695, 256
        %s697 = scalar_lea.vmem [#allocation12], %s696
        // Predicated region
        $region101: #{tpu_custom_call.1} parent=79 // pred_check
          %p698 = pneg %p186
        $region102: #{tpu_custom_call.1} parent=79 // pred_check_branch
          %700 = sbr.rel (%p698) target = $region104
        $region103: #{tpu_custom_call.1} parent=79 // pred_region
          %702 = dma.done %s694, 4096
        $region104: #{tpu_custom_call.1} parent=79 // pred_fallthru
          _
        %s703 = sand.u32 %s40, 1
        %s704 = scalar_lea.sflag [#allocation13], %s703
        %s705 = sand.u32 %s277, 1
        %s706 = smul.addr %s705, 64
        %s707 = scalar_lea.vmem [#allocation14], %s706
        // Predicated region
        $region105: #{tpu_custom_call.1} parent=79 // pred_check
          %p708 = pneg %p290
        $region106: #{tpu_custom_call.1} parent=79 // pred_check_branch
          %710 = sbr.rel (%p708) target = $region108
        $region107: #{tpu_custom_call.1} parent=79 // pred_region
          %712 = dma.done %s704, 1024
        $region108: #{tpu_custom_call.1} parent=79 // pred_fallthru
          _
        %s713 = sand.u32 %s329, 1
        %s714 = scalar_lea.sflag [#allocation16], %s713
        %s715 = sand.u32 %s329, 1
        %s716 = smul.addr %s715, 64
        %s717 = scalar_lea.vmem [#allocation15], %s716
        // Predicated region
        $region109: #{tpu_custom_call.1} parent=79 // pred_check
          %p718 = pneg %p342
        $region110: #{tpu_custom_call.1} parent=79 // pred_check_branch
          %720 = sbr.rel (%p718) target = $region112
        $region111: #{tpu_custom_call.1} parent=79 // pred_region
          %722 = dma.done %s714, 1024
        $region112: #{tpu_custom_call.1} parent=79 // pred_fallthru
          _
        %p723 = pneg %p56
        %p724 = pneg %p53
        %s725 = sand.u32 %s40, 1
        %s726 = scalar_lea.sflag [#allocation7], %s725
        %s727 = sand.u32 %s69, 1
        %s728 = scalar_lea.vmem [#allocation6], %s727
        %p729 = pneg %p82
        %p730 = pneg %p79
        %s731 = sand.u32 %s40, 1
        %s732 = scalar_lea.sflag [#allocation7], %s731
        %s733 = sand.u32 %s95, 1
        %s734 = scalar_lea.vmem [#allocation8], %s733
        %p735 = pneg %p108
        %p736 = pneg %p105
        %s737 = sand.u32 %s40, 1
        %s738 = scalar_lea.sflag [#allocation10], %s737
        %s739 = sand.u32 %s121, 1
        %s740 = smul.addr %s739, 768
        %s741 = scalar_lea.vmem [#allocation9], %s740
        %p742 = pneg %p134
        %p743 = pneg %p131
        %s744 = sand.u32 %s40, 1
        %s745 = scalar_lea.sflag [#allocation10], %s744
        %s746 = sand.u32 %s147, 1
        %s747 = smul.addr %s746, 12
        %s748 = scalar_lea.vmem [#allocation11], %s747
        %p749 = pneg %p160
        %p750 = pneg %p157
        %s751 = sand.u32 %s40, 1
        %s752 = scalar_lea.sflag [#allocation13], %s751
        %s753 = sand.u32 %s173, 1
        %s754 = smul.addr %s753, 256
        %s755 = scalar_lea.vmem [#allocation12], %s754
        %p756 = pneg %p186
        %p757 = pneg %p183
        %p758 = scmp.lt.s32.totalorder %s40, 1
        %s759 = scalar_select %p758, %s40, 1
        %s760 = scalar_lea.vmem %s6, %s759
        %p761 = pneg %p212
        %p762 = pneg %p209
        %p763 = scmp.lt.s32.totalorder %s40, 1
        %s764 = scalar_select %p763, %s40, 1
        %s765 = scalar_lea.vmem %s7, %s764
        %p766 = pneg %p238
        %p767 = pneg %p235
        %p768 = scmp.lt.s32.totalorder %s40, 1
        %s769 = scalar_select %p768, %s40, 1
        %s770 = scalar_lea.vmem %s8, %s769
        %p771 = pneg %p264
        %p772 = pneg %p261
        %s773 = sand.u32 %s40, 1
        %s774 = scalar_lea.sflag [#allocation13], %s773
        %s775 = sand.u32 %s277, 1
        %s776 = smul.addr %s775, 64
        %s777 = scalar_lea.vmem [#allocation14], %s776
        %p778 = pneg %p290
        %p779 = pneg %p287
        %p780 = scmp.lt.s32.totalorder %s40, 1
        %s781 = scalar_select %p780, %s40, 1
        %s782 = scalar_lea.vmem %s10, %s781
        %p783 = pneg %p316
        %p784 = pneg %p313
        %s785 = sand.u32 %s329, 1
        %s786 = scalar_lea.sflag [#allocation16], %s785
        %s787 = sand.u32 %s329, 1
        %s788 = smul.addr %s787, 64
        %s789 = scalar_lea.vmem [#allocation15], %s788
        %p790 = pneg %p342
        %p791 = pneg %p339
        %p792 = scmp.lt.s32.totalorder %s40, 1
        %s793 = scalar_select %p792, %s40, 1
        %s794 = scalar_lea.vmem %s12, %s793
        %p795 = pneg %p368
        %p796 = pneg %p365
        %p797 = pneg %p389
        %p798 = pneg %p386
        %p799 = pneg %p410
        %p800 = pneg %p407
        %p801 = pneg %p431
        %p802 = pneg %p428
        %p803 = scmp.lt.s32.totalorder %s40, 1
        %s804 = scalar_select %p803, %s40, 1
        %s805 = scalar_lea.vmem %s6, %s804
        %p806 = scmp.lt.s32.totalorder %s40, 1
        %s807 = scalar_select %p806, %s40, 1
        %s808 = scalar_lea.vmem %s7, %s807
        %p809 = scmp.lt.s32.totalorder %s40, 1
        %s810 = scalar_select %p809, %s40, 1
        %s811 = scalar_lea.vmem %s8, %s810
        %p812 = scmp.lt.s32.totalorder %s40, 1
        %s813 = scalar_select %p812, %s40, 1
        %s814 = scalar_lea.vmem %s10, %s813
        %p815 = scmp.lt.s32.totalorder %s40, 1
        %s816 = scalar_select %p815, %s40, 1
        %s817 = scalar_lea.vmem %s12, %s816
        %p819 = scmp.eq.s32.totalorder %s40, 0
        // Predicated region
        $region113: #{tpu_custom_call.1} parent=79 // pred_check
          %p820 = pneg %p819
        $region114: #{tpu_custom_call.1} parent=79 // pred_check_branch
          %822 = sbr.rel (%p820) target = $region116
        $region115: #{tpu_custom_call.1} parent=79 // pred_region
          %v823 = vld [vmem:[#allocation3] sm:$0xff]
          %v824 = vld [vmem:[#allocation3 + $0x8] sm:$0xff]
          %825 = vst [vmem:[#allocation2] sm:$0xff] %v823
          %826 = vst [vmem:[#allocation2 + $0x8] sm:$0xff] %v824
        $region116: #{tpu_custom_call.1} parent=79 // pred_fallthru
          _
        %v827 = vld [vmem:[#allocation2] sm:$0xff]
        %v828 = vld [vmem:[%s658] sm:$0x1]
        %v829 = vld [vmem:[%s667] sm:$0x1]
        %830 = vadd.xlane.f32.xlu0 %v827
        %v831 = vpop.xlane.xlu0 %830
        %v832 = vmul.f32 %v831, 0.03125
        %v833 = vsub.f32 %v827, %v832
        %v834 = vmul.f32 %v833, %v833
        %835 = vadd.xlane.f32.xlu0 %v834
        %v836 = vpop.xlane.xlu0 %835
        %v837 = vmul.f32 %v832, 96.0
        %v838 = vmul.f32 %v837, %v832
        %v839 = vsub.f32 %v836, %v838
        %v840 = vmul.f32 %v839, 0.03125
        %v841 = vadd.f32 %v840, 1e-05
        %v842 = vrsqrt.pop %v841
        %v843 = vmul.f32 %v842, %v841
        %v844 = vmul.f32 %v843, %v842
        %v845 = vmul.f32 0.5, %v844
        %v846 = vsub.f32 1.5, %v845
        %v847 = vmul.f32 %v842, %v846
        %vm848 = vweird.f32 %v841
        %vm849 = vweird.f32 %v842
        %vm850 = vmor %vm848, %vm849
        %v851 = vsel %vm850, %v842, %v847
        %v852 = vmul.f32 %v833, %v851
        %v854 = vperm.slane %v828, 0
        %v856 = vmul.f32 %v852, %v854
        %v858 = vperm.slane %v829, 0
        %v860 = vadd.f32 %v856, %v858
        %v861 = vpack.c.bf16 %v860, %v860
        %v862 = vld [vmem:[%s677] sm:$0xff]
        %v863 = vld [vmem:[%s677 + $0x8] sm:$0xf]
        %v864 = vld [vmem:[%s677 + $0xc] sm:$0xff]
        %v865 = vld [vmem:[%s677 + $0x14] sm:$0xf]
        %v866 = vld [vmem:[%s677 + $0x18] sm:$0xff]
        %v867 = vld [vmem:[%s677 + $0x20] sm:$0xf]
        %v868 = vld [vmem:[%s677 + $0x24] sm:$0xff]
        %v869 = vld [vmem:[%s677 + $0x2c] sm:$0xf]
        %v870 = vld [vmem:[%s677 + $0x30] sm:$0xff]
        %v871 = vld [vmem:[%s677 + $0x38] sm:$0xf]
        %v872 = vld [vmem:[%s677 + $0x3c] sm:$0xff]
        %v873 = vld [vmem:[%s677 + $0x44] sm:$0xf]
        %v874 = vld [vmem:[%s677 + $0x48] sm:$0xff]
        %v875 = vld [vmem:[%s677 + $0x50] sm:$0xf]
        %v876 = vld [vmem:[%s677 + $0x54] sm:$0xff]
        %v877 = vld [vmem:[%s677 + $0x5c] sm:$0xf]
        %v878 = vld [vmem:[%s677 + $0x60] sm:$0xff]
        %v879 = vld [vmem:[%s677 + $0x68] sm:$0xf]
        %v880 = vld [vmem:[%s677 + $0x6c] sm:$0xff]
        %v881 = vld [vmem:[%s677 + $0x74] sm:$0xf]
        %v882 = vld [vmem:[%s677 + $0x78] sm:$0xff]
        %v883 = vld [vmem:[%s677 + $0x80] sm:$0xf]
        %v884 = vld [vmem:[%s677 + $0x84] sm:$0xff]
        %v885 = vld [vmem:[%s677 + $0x8c] sm:$0xf]
        %v886 = vld [vmem:[%s677 + $0x90] sm:$0xff]
        %v887 = vld [vmem:[%s677 + $0x98] sm:$0xf]
        %v888 = vld [vmem:[%s677 + $0x9c] sm:$0xff]
        %v889 = vld [vmem:[%s677 + $0xa4] sm:$0xf]
        %v890 = vld [vmem:[%s677 + $0xa8] sm:$0xff]
        %v891 = vld [vmem:[%s677 + $0xb0] sm:$0xf]
        %v892 = vld [vmem:[%s677 + $0xb4] sm:$0xff]
        %v893 = vld [vmem:[%s677 + $0xbc] sm:$0xf]
        %v894 = vld [vmem:[%s677 + $0xc0] sm:$0xff]
        %v895 = vld [vmem:[%s677 + $0xc8] sm:$0xf]
        %v896 = vld [vmem:[%s677 + $0xcc] sm:$0xff]
        %v897 = vld [vmem:[%s677 + $0xd4] sm:$0xf]
        %v898 = vld [vmem:[%s677 + $0xd8] sm:$0xff]
        %v899 = vld [vmem:[%s677 + $0xe0] sm:$0xf]
        %v900 = vld [vmem:[%s677 + $0xe4] sm:$0xff]
        %v901 = vld [vmem:[%s677 + $0xec] sm:$0xf]
        %v902 = vld [vmem:[%s677 + $0xf0] sm:$0xff]
        %v903 = vld [vmem:[%s677 + $0xf8] sm:$0xf]
        %v904 = vld [vmem:[%s677 + $0xfc] sm:$0xff]
        %v905 = vld [vmem:[%s677 + $0x104] sm:$0xf]
        %v906 = vld [vmem:[%s677 + $0x108] sm:$0xff]
        %v907 = vld [vmem:[%s677 + $0x110] sm:$0xf]
        %v908 = vld [vmem:[%s677 + $0x114] sm:$0xff]
        %v909 = vld [vmem:[%s677 + $0x11c] sm:$0xf]
        %v910 = vld [vmem:[%s677 + $0x120] sm:$0xff]
        %v911 = vld [vmem:[%s677 + $0x128] sm:$0xf]
        %v912 = vld [vmem:[%s677 + $0x12c] sm:$0xff]
        %v913 = vld [vmem:[%s677 + $0x134] sm:$0xf]
        %v914 = vld [vmem:[%s677 + $0x138] sm:$0xff]
        %v915 = vld [vmem:[%s677 + $0x140] sm:$0xf]
        %v916 = vld [vmem:[%s677 + $0x144] sm:$0xff]
        %v917 = vld [vmem:[%s677 + $0x14c] sm:$0xf]
        %v918 = vld [vmem:[%s677 + $0x150] sm:$0xff]
        %v919 = vld [vmem:[%s677 + $0x158] sm:$0xf]
        %v920 = vld [vmem:[%s677 + $0x15c] sm:$0xff]
        %v921 = vld [vmem:[%s677 + $0x164] sm:$0xf]
        %v922 = vld [vmem:[%s677 + $0x168] sm:$0xff]
        %v923 = vld [vmem:[%s677 + $0x170] sm:$0xf]
        %v924 = vld [vmem:[%s677 + $0x174] sm:$0xff]
        %v925 = vld [vmem:[%s677 + $0x17c] sm:$0xf]
        %v926 = vld [vmem:[%s677 + $0x180] sm:$0xff]
        %v927 = vld [vmem:[%s677 + $0x188] sm:$0xf]
        %v928 = vld [vmem:[%s677 + $0x18c] sm:$0xff]
        %v929 = vld [vmem:[%s677 + $0x194] sm:$0xf]
        %v930 = vld [vmem:[%s677 + $0x198] sm:$0xff]
        %v931 = vld [vmem:[%s677 + $0x1a0] sm:$0xf]
        %v932 = vld [vmem:[%s677 + $0x1a4] sm:$0xff]
        %v933 = vld [vmem:[%s677 + $0x1ac] sm:$0xf]
        %v934 = vld [vmem:[%s677 + $0x1b0] sm:$0xff]
        %v935 = vld [vmem:[%s677 + $0x1b8] sm:$0xf]
        %v936 = vld [vmem:[%s677 + $0x1bc] sm:$0xff]
        %v937 = vld [vmem:[%s677 + $0x1c4] sm:$0xf]
        %v938 = vld [vmem:[%s677 + $0x1c8] sm:$0xff]
        %v939 = vld [vmem:[%s677 + $0x1d0] sm:$0xf]
        %v940 = vld [vmem:[%s677 + $0x1d4] sm:$0xff]
        %v941 = vld [vmem:[%s677 + $0x1dc] sm:$0xf]
        %v942 = vld [vmem:[%s677 + $0x1e0] sm:$0xff]
        %v943 = vld [vmem:[%s677 + $0x1e8] sm:$0xf]
        %v944 = vld [vmem:[%s677 + $0x1ec] sm:$0xff]
        %v945 = vld [vmem:[%s677 + $0x1f4] sm:$0xf]
        %v946 = vld [vmem:[%s677 + $0x1f8] sm:$0xff]
        %v947 = vld [vmem:[%s677 + $0x200] sm:$0xf]
        %v948 = vld [vmem:[%s677 + $0x204] sm:$0xff]
        %v949 = vld [vmem:[%s677 + $0x20c] sm:$0xf]
        %v950 = vld [vmem:[%s677 + $0x210] sm:$0xff]
        %v951 = vld [vmem:[%s677 + $0x218] sm:$0xf]
        %v952 = vld [vmem:[%s677 + $0x21c] sm:$0xff]
        %v953 = vld [vmem:[%s677 + $0x224] sm:$0xf]
        %v954 = vld [vmem:[%s677 + $0x228] sm:$0xff]
        %v955 = vld [vmem:[%s677 + $0x230] sm:$0xf]
        %v956 = vld [vmem:[%s677 + $0x234] sm:$0xff]
        %v957 = vld [vmem:[%s677 + $0x23c] sm:$0xf]
        %v958 = vld [vmem:[%s677 + $0x240] sm:$0xff]
        %v959 = vld [vmem:[%s677 + $0x248] sm:$0xf]
        %v960 = vld [vmem:[%s677 + $0x24c] sm:$0xff]
        %v961 = vld [vmem:[%s677 + $0x254] sm:$0xf]
        %v962 = vld [vmem:[%s677 + $0x258] sm:$0xff]
        %v963 = vld [vmem:[%s677 + $0x260] sm:$0xf]
        %v964 = vld [vmem:[%s677 + $0x264] sm:$0xff]
        %v965 = vld [vmem:[%s677 + $0x26c] sm:$0xf]
        %v966 = vld [vmem:[%s677 + $0x270] sm:$0xff]
        %v967 = vld [vmem:[%s677 + $0x278] sm:$0xf]
        %v968 = vld [vmem:[%s677 + $0x27c] sm:$0xff]
        %v969 = vld [vmem:[%s677 + $0x284] sm:$0xf]
        %v970 = vld [vmem:[%s677 + $0x288] sm:$0xff]
        %v971 = vld [vmem:[%s677 + $0x290] sm:$0xf]
        %v972 = vld [vmem:[%s677 + $0x294] sm:$0xff]
        %v973 = vld [vmem:[%s677 + $0x29c] sm:$0xf]
        %v974 = vld [vmem:[%s677 + $0x2a0] sm:$0xff]
        %v975 = vld [vmem:[%s677 + $0x2a8] sm:$0xf]
        %v976 = vld [vmem:[%s677 + $0x2ac] sm:$0xff]
        %v977 = vld [vmem:[%s677 + $0x2b4] sm:$0xf]
        %v978 = vld [vmem:[%s677 + $0x2b8] sm:$0xff]
        %v979 = vld [vmem:[%s677 + $0x2c0] sm:$0xf]
        %v980 = vld [vmem:[%s677 + $0x2c4] sm:$0xff]
        %v981 = vld [vmem:[%s677 + $0x2cc] sm:$0xf]
        %v982 = vld [vmem:[%s677 + $0x2d0] sm:$0xff]
        %v983 = vld [vmem:[%s677 + $0x2d8] sm:$0xf]
        %v984 = vld [vmem:[%s677 + $0x2dc] sm:$0xff]
        %v985 = vld [vmem:[%s677 + $0x2e4] sm:$0xf]
        %v986 = vld [vmem:[%s677 + $0x2e8] sm:$0xff]
        %v987 = vld [vmem:[%s677 + $0x2f0] sm:$0xf]
        %v988 = vld [vmem:[%s677 + $0x2f4] sm:$0xff]
        %v989 = vld [vmem:[%s677 + $0x2fc] sm:$0xf]
        %v990 = vld [vmem:[%s687] sm:$0x7]
        %v991 = vld [vmem:[%s687 + $0x3] sm:$0x7]
        %v992 = vld [vmem:[%s687 + $0x6] sm:$0x7]
        %v993 = vld [vmem:[%s687 + $0x9] sm:$0x7]
        %v998 = vperm.slane %v990, 0
        %v999 = vperm.slane %v990, 1
        %v1000 = vperm.slane %v990, 2
        %v1001 = vperm.slane %v991, 0
        %v1002 = vperm.slane %v991, 1
        %v1003 = vperm.slane %v991, 2
        %v1004 = vperm.slane %v992, 0
        %v1005 = vperm.slane %v992, 1
        %v1006 = vperm.slane %v992, 2
        %v1007 = vperm.slane %v993, 0
        %v1008 = vperm.slane %v993, 1
        %v1009 = vperm.slane %v993, 2
        %v1054 = vunpack.c.l.b16 %v862
        %v1055 = vunpack.c.h.b16 %v862
        %v1056 = vunpack.c.l.b16 %v863
        %v1057 = vunpack.c.l.b16 %v864
        %v1058 = vunpack.c.h.b16 %v864
        %v1059 = vunpack.c.l.b16 %v865
        %v1060 = vunpack.c.l.b16 %v866
        %v1061 = vunpack.c.h.b16 %v866
        %v1062 = vunpack.c.l.b16 %v867
        %v1063 = vunpack.c.l.b16 %v868
        %v1064 = vunpack.c.h.b16 %v868
        %v1065 = vunpack.c.l.b16 %v869
        %v1066 = vunpack.c.l.b16 %v870
        %v1067 = vunpack.c.h.b16 %v870
        %v1068 = vunpack.c.l.b16 %v871
        %v1069 = vunpack.c.l.b16 %v872
        %v1070 = vunpack.c.h.b16 %v872
        %v1071 = vunpack.c.l.b16 %v873
        %v1072 = vunpack.c.l.b16 %v874
        %v1073 = vunpack.c.h.b16 %v874
        %v1074 = vunpack.c.l.b16 %v875
        %v1075 = vunpack.c.l.b16 %v876
        %v1076 = vunpack.c.h.b16 %v876
        %v1077 = vunpack.c.l.b16 %v877
        %v1078 = vunpack.c.l.b16 %v878
        %v1079 = vunpack.c.h.b16 %v878
        %v1080 = vunpack.c.l.b16 %v879
        %v1081 = vunpack.c.l.b16 %v880
        %v1082 = vunpack.c.h.b16 %v880
        %v1083 = vunpack.c.l.b16 %v881
        %v1084 = vunpack.c.l.b16 %v882
        %v1085 = vunpack.c.h.b16 %v882
        %v1086 = vunpack.c.l.b16 %v883
        %v1087 = vunpack.c.l.b16 %v884
        %v1088 = vunpack.c.h.b16 %v884
        %v1089 = vunpack.c.l.b16 %v885
        %v1090 = vunpack.c.l.b16 %v886
        %v1091 = vunpack.c.h.b16 %v886
        %v1092 = vunpack.c.l.b16 %v887
        %v1093 = vunpack.c.l.b16 %v888
        %v1094 = vunpack.c.h.b16 %v888
        %v1095 = vunpack.c.l.b16 %v889
        %v1096 = vunpack.c.l.b16 %v890
        %v1097 = vunpack.c.h.b16 %v890
        %v1098 = vunpack.c.l.b16 %v891
        %v1099 = vunpack.c.l.b16 %v892
        %v1100 = vunpack.c.h.b16 %v892
        %v1101 = vunpack.c.l.b16 %v893
        %v1102 = vpack.c.b16 %v1057, %v1054
        %v1103 = vpack.c.b16 %v1058, %v1055
        %v1104 = vpack.c.b16 %v1059, %v1056
        %v1105 = vpack.c.b16 %v1063, %v1060
        %v1106 = vpack.c.b16 %v1064, %v1061
        %v1107 = vpack.c.b16 %v1065, %v1062
        %v1108 = vpack.c.b16 %v1069, %v1066
        %v1109 = vpack.c.b16 %v1070, %v1067
        %v1110 = vpack.c.b16 %v1071, %v1068
        %v1111 = vpack.c.b16 %v1075, %v1072
        %v1112 = vpack.c.b16 %v1076, %v1073
        %v1113 = vpack.c.b16 %v1077, %v1074
        %v1114 = vpack.c.b16 %v1081, %v1078
        %v1115 = vpack.c.b16 %v1082, %v1079
        %v1116 = vpack.c.b16 %v1083, %v1080
        %v1117 = vpack.c.b16 %v1087, %v1084
        %v1118 = vpack.c.b16 %v1088, %v1085
        %v1119 = vpack.c.b16 %v1089, %v1086
        %v1120 = vpack.c.b16 %v1093, %v1090
        %v1121 = vpack.c.b16 %v1094, %v1091
        %v1122 = vpack.c.b16 %v1095, %v1092
        %v1123 = vpack.c.b16 %v1099, %v1096
        %v1124 = vpack.c.b16 %v1100, %v1097
        %v1125 = vpack.c.b16 %v1101, %v1098
        %1150 = vmatpush.bf16.msra.mxu0 %v1123
        %1151 = vmatpush.bf16.msra.mxu0 %v1120
        %1152 = vmatpush.bf16.msra.mxu0 %v1117
        %1153 = vmatpush.bf16.msra.mxu0 %v1114
        %1154 = vmatpush.bf16.msra.mxu0 %v1111
        %1155 = vmatpush.bf16.msra.mxu0 %v1108
        %1156 = vmatpush.bf16.msra.mxu0 %v1105
        %1157 = vmatpush.bf16.msra.mxu0 %v1102
        %1158 = vmatmul.bf16.gmra.mxu0 %v861
        %v1159 = vpop.f32.mrf.mxu0
        %v1160 = vadd.f32 %v998, %v1159
        %v1161 = vpop.f32.mrf.mxu0
        %1162 = vdwg.mxu0
        %1163 = vmatpush.bf16.msra.mxu0 %v1124
        %1164 = vmatpush.bf16.msra.mxu0 %v1121
        %1165 = vmatpush.bf16.msra.mxu0 %v1118
        %1166 = vmatpush.bf16.msra.mxu0 %v1115
        %1167 = vmatpush.bf16.msra.mxu0 %v1112
        %1168 = vmatpush.bf16.msra.mxu0 %v1109
        %1169 = vmatpush.bf16.msra.mxu0 %v1106
        %1170 = vmatpush.bf16.msra.mxu0 %v1103
        %1171 = vmatmul.bf16.gmra.mxu0 %v861
        %v1172 = vpop.f32.mrf.mxu0
        %v1173 = vadd.f32 %v999, %v1172
        %v1174 = vpop.f32.mrf.mxu0
        %1175 = vdwg.mxu0
        %1176 = vmatpush.bf16.msra.mxu0 %v1125
        %1177 = vmatpush.bf16.msra.mxu0 %v1122
        %1178 = vmatpush.bf16.msra.mxu0 %v1119
        %1179 = vmatpush.bf16.msra.mxu0 %v1116
        %1180 = vmatpush.bf16.msra.mxu0 %v1113
        %1181 = vmatpush.bf16.msra.mxu0 %v1110
        %1182 = vmatpush.bf16.msra.mxu0 %v1107
        %1183 = vmatpush.bf16.msra.mxu0 %v1104
        %1184 = vmatmul.bf16.gmra.mxu0 %v861
        %v1185 = vpop.f32.mrf.mxu0
        %v1186 = vadd.f32 %v1000, %v1185
        %v1187 = vpop.f32.mrf.mxu0
        %1188 = vdwg.mxu0
        %v1221 = vunpack.c.l.b16 %v894
        %v1222 = vunpack.c.h.b16 %v894
        %v1223 = vunpack.c.l.b16 %v895
        %v1224 = vunpack.c.l.b16 %v896
        %v1225 = vunpack.c.h.b16 %v896
        %v1226 = vunpack.c.l.b16 %v897
        %v1227 = vunpack.c.l.b16 %v898
        %v1228 = vunpack.c.h.b16 %v898
        %v1229 = vunpack.c.l.b16 %v899
        %v1230 = vunpack.c.l.b16 %v900
        %v1231 = vunpack.c.h.b16 %v900
        %v1232 = vunpack.c.l.b16 %v901
        %v1233 = vunpack.c.l.b16 %v902
        %v1234 = vunpack.c.h.b16 %v902
        %v1235 = vunpack.c.l.b16 %v903
        %v1236 = vunpack.c.l.b16 %v904
        %v1237 = vunpack.c.h.b16 %v904
        %v1238 = vunpack.c.l.b16 %v905
        %v1239 = vunpack.c.l.b16 %v906
        %v1240 = vunpack.c.h.b16 %v906
        %v1241 = vunpack.c.l.b16 %v907
        %v1242 = vunpack.c.l.b16 %v908
        %v1243 = vunpack.c.h.b16 %v908
        %v1244 = vunpack.c.l.b16 %v909
        %v1245 = vunpack.c.l.b16 %v910
        %v1246 = vunpack.c.h.b16 %v910
        %v1247 = vunpack.c.l.b16 %v911
        %v1248 = vunpack.c.l.b16 %v912
        %v1249 = vunpack.c.h.b16 %v912
        %v1250 = vunpack.c.l.b16 %v913
        %v1251 = vunpack.c.l.b16 %v914
        %v1252 = vunpack.c.h.b16 %v914
        %v1253 = vunpack.c.l.b16 %v915
        %v1254 = vunpack.c.l.b16 %v916
        %v1255 = vunpack.c.h.b16 %v916
        %v1256 = vunpack.c.l.b16 %v917
        %v1257 = vunpack.c.l.b16 %v918
        %v1258 = vunpack.c.h.b16 %v918
        %v1259 = vunpack.c.l.b16 %v919
        %v1260 = vunpack.c.l.b16 %v920
        %v1261 = vunpack.c.h.b16 %v920
        %v1262 = vunpack.c.l.b16 %v921
        %v1263 = vunpack.c.l.b16 %v922
        %v1264 = vunpack.c.h.b16 %v922
        %v1265 = vunpack.c.l.b16 %v923
        %v1266 = vunpack.c.l.b16 %v924
        %v1267 = vunpack.c.h.b16 %v924
        %v1268 = vunpack.c.l.b16 %v925
        %v1269 = vpack.c.b16 %v1224, %v1221
        %v1270 = vpack.c.b16 %v1225, %v1222
        %v1271 = vpack.c.b16 %v1226, %v1223
        %v1272 = vpack.c.b16 %v1230, %v1227
        %v1273 = vpack.c.b16 %v1231, %v1228
        %v1274 = vpack.c.b16 %v1232, %v1229
        %v1275 = vpack.c.b16 %v1236, %v1233
        %v1276 = vpack.c.b16 %v1237, %v1234
        %v1277 = vpack.c.b16 %v1238, %v1235
        %v1278 = vpack.c.b16 %v1242, %v1239
        %v1279 = vpack.c.b16 %v1243, %v1240
        %v1280 = vpack.c.b16 %v1244, %v1241
        %v1281 = vpack.c.b16 %v1248, %v1245
        %v1282 = vpack.c.b16 %v1249, %v1246
        %v1283 = vpack.c.b16 %v1250, %v1247
        %v1284 = vpack.c.b16 %v1254, %v1251
        %v1285 = vpack.c.b16 %v1255, %v1252
        %v1286 = vpack.c.b16 %v1256, %v1253
        %v1287 = vpack.c.b16 %v1260, %v1257
        %v1288 = vpack.c.b16 %v1261, %v1258
        %v1289 = vpack.c.b16 %v1262, %v1259
        %v1290 = vpack.c.b16 %v1266, %v1263
        %v1291 = vpack.c.b16 %v1267, %v1264
        %v1292 = vpack.c.b16 %v1268, %v1265
        %1317 = vmatpush.bf16.msra.mxu0 %v1290
        %1318 = vmatpush.bf16.msra.mxu0 %v1287
        %1319 = vmatpush.bf16.msra.mxu0 %v1284
        %1320 = vmatpush.bf16.msra.mxu0 %v1281
        %1321 = vmatpush.bf16.msra.mxu0 %v1278
        %1322 = vmatpush.bf16.msra.mxu0 %v1275
        %1323 = vmatpush.bf16.msra.mxu0 %v1272
        %1324 = vmatpush.bf16.msra.mxu0 %v1269
        %1325 = vmatmul.bf16.gmra.mxu0 %v861
        %v1326 = vpop.f32.mrf.mxu0
        %v1327 = vadd.f32 %v1001, %v1326
        %v1328 = vpop.f32.mrf.mxu0
        %1329 = vdwg.mxu0
        %1330 = vmatpush.bf16.msra.mxu0 %v1291
        %1331 = vmatpush.bf16.msra.mxu0 %v1288
        %1332 = vmatpush.bf16.msra.mxu0 %v1285
        %1333 = vmatpush.bf16.msra.mxu0 %v1282
        %1334 = vmatpush.bf16.msra.mxu0 %v1279
        %1335 = vmatpush.bf16.msra.mxu0 %v1276
        %1336 = vmatpush.bf16.msra.mxu0 %v1273
        %1337 = vmatpush.bf16.msra.mxu0 %v1270
        %1338 = vmatmul.bf16.gmra.mxu0 %v861
        %v1339 = vpop.f32.mrf.mxu0
        %v1340 = vadd.f32 %v1002, %v1339
        %v1341 = vpop.f32.mrf.mxu0
        %1342 = vdwg.mxu0
        %1343 = vmatpush.bf16.msra.mxu0 %v1292
        %1344 = vmatpush.bf16.msra.mxu0 %v1289
        %1345 = vmatpush.bf16.msra.mxu0 %v1286
        %1346 = vmatpush.bf16.msra.mxu0 %v1283
        %1347 = vmatpush.bf16.msra.mxu0 %v1280
        %1348 = vmatpush.bf16.msra.mxu0 %v1277
        %1349 = vmatpush.bf16.msra.mxu0 %v1274
        %1350 = vmatpush.bf16.msra.mxu0 %v1271
        %1351 = vmatmul.bf16.gmra.mxu0 %v861
        %v1352 = vpop.f32.mrf.mxu0
        %v1353 = vadd.f32 %v1003, %v1352
        %v1354 = vpop.f32.mrf.mxu0
        %1355 = vdwg.mxu0
        %v1388 = vunpack.c.l.b16 %v926
        %v1389 = vunpack.c.h.b16 %v926
        %v1390 = vunpack.c.l.b16 %v927
        %v1391 = vunpack.c.l.b16 %v928
        %v1392 = vunpack.c.h.b16 %v928
        %v1393 = vunpack.c.l.b16 %v929
        %v1394 = vunpack.c.l.b16 %v930
        %v1395 = vunpack.c.h.b16 %v930
        %v1396 = vunpack.c.l.b16 %v931
        %v1397 = vunpack.c.l.b16 %v932
        %v1398 = vunpack.c.h.b16 %v932
        %v1399 = vunpack.c.l.b16 %v933
        %v1400 = vunpack.c.l.b16 %v934
        %v1401 = vunpack.c.h.b16 %v934
        %v1402 = vunpack.c.l.b16 %v935
        %v1403 = vunpack.c.l.b16 %v936
        %v1404 = vunpack.c.h.b16 %v936
        %v1405 = vunpack.c.l.b16 %v937
        %v1406 = vunpack.c.l.b16 %v938
        %v1407 = vunpack.c.h.b16 %v938
        %v1408 = vunpack.c.l.b16 %v939
        %v1409 = vunpack.c.l.b16 %v940
        %v1410 = vunpack.c.h.b16 %v940
        %v1411 = vunpack.c.l.b16 %v941
        %v1412 = vunpack.c.l.b16 %v942
        %v1413 = vunpack.c.h.b16 %v942
        %v1414 = vunpack.c.l.b16 %v943
        %v1415 = vunpack.c.l.b16 %v944
        %v1416 = vunpack.c.h.b16 %v944
        %v1417 = vunpack.c.l.b16 %v945
        %v1418 = vunpack.c.l.b16 %v946
        %v1419 = vunpack.c.h.b16 %v946
        %v1420 = vunpack.c.l.b16 %v947
        %v1421 = vunpack.c.l.b16 %v948
        %v1422 = vunpack.c.h.b16 %v948
        %v1423 = vunpack.c.l.b16 %v949
        %v1424 = vunpack.c.l.b16 %v950
        %v1425 = vunpack.c.h.b16 %v950
        %v1426 = vunpack.c.l.b16 %v951
        %v1427 = vunpack.c.l.b16 %v952
        %v1428 = vunpack.c.h.b16 %v952
        %v1429 = vunpack.c.l.b16 %v953
        %v1430 = vunpack.c.l.b16 %v954
        %v1431 = vunpack.c.h.b16 %v954
        %v1432 = vunpack.c.l.b16 %v955
        %v1433 = vunpack.c.l.b16 %v956
        %v1434 = vunpack.c.h.b16 %v956
        %v1435 = vunpack.c.l.b16 %v957
        %v1436 = vpack.c.b16 %v1391, %v1388
        %v1437 = vpack.c.b16 %v1392, %v1389
        %v1438 = vpack.c.b16 %v1393, %v1390
        %v1439 = vpack.c.b16 %v1397, %v1394
        %v1440 = vpack.c.b16 %v1398, %v1395
        %v1441 = vpack.c.b16 %v1399, %v1396
        %v1442 = vpack.c.b16 %v1403, %v1400
        %v1443 = vpack.c.b16 %v1404, %v1401
        %v1444 = vpack.c.b16 %v1405, %v1402
        %v1445 = vpack.c.b16 %v1409, %v1406
        %v1446 = vpack.c.b16 %v1410, %v1407
        %v1447 = vpack.c.b16 %v1411, %v1408
        %v1448 = vpack.c.b16 %v1415, %v1412
        %v1449 = vpack.c.b16 %v1416, %v1413
        %v1450 = vpack.c.b16 %v1417, %v1414
        %v1451 = vpack.c.b16 %v1421, %v1418
        %v1452 = vpack.c.b16 %v1422, %v1419
        %v1453 = vpack.c.b16 %v1423, %v1420
        %v1454 = vpack.c.b16 %v1427, %v1424
        %v1455 = vpack.c.b16 %v1428, %v1425
        %v1456 = vpack.c.b16 %v1429, %v1426
        %v1457 = vpack.c.b16 %v1433, %v1430
        %v1458 = vpack.c.b16 %v1434, %v1431
        %v1459 = vpack.c.b16 %v1435, %v1432
        %1484 = vmatpush.bf16.msra.mxu0 %v1457
        %1485 = vmatpush.bf16.msra.mxu0 %v1454
        %1486 = vmatpush.bf16.msra.mxu0 %v1451
        %1487 = vmatpush.bf16.msra.mxu0 %v1448
        %1488 = vmatpush.bf16.msra.mxu0 %v1445
        %1489 = vmatpush.bf16.msra.mxu0 %v1442
        %1490 = vmatpush.bf16.msra.mxu0 %v1439
        %1491 = vmatpush.bf16.msra.mxu0 %v1436
        %1492 = vmatmul.bf16.gmra.mxu0 %v861
        %v1493 = vpop.f32.mrf.mxu0
        %v1494 = vadd.f32 %v1004, %v1493
        %v1495 = vpop.f32.mrf.mxu0
        %1496 = vdwg.mxu0
        %1497 = vmatpush.bf16.msra.mxu0 %v1458
        %1498 = vmatpush.bf16.msra.mxu0 %v1455
        %1499 = vmatpush.bf16.msra.mxu0 %v1452
        %1500 = vmatpush.bf16.msra.mxu0 %v1449
        %1501 = vmatpush.bf16.msra.mxu0 %v1446
        %1502 = vmatpush.bf16.msra.mxu0 %v1443
        %1503 = vmatpush.bf16.msra.mxu0 %v1440
        %1504 = vmatpush.bf16.msra.mxu0 %v1437
        %1505 = vmatmul.bf16.gmra.mxu0 %v861
        %v1506 = vpop.f32.mrf.mxu0
        %v1507 = vadd.f32 %v1005, %v1506
        %v1508 = vpop.f32.mrf.mxu0
        %1509 = vdwg.mxu0
        %1510 = vmatpush.bf16.msra.mxu0 %v1459
        %1511 = vmatpush.bf16.msra.mxu0 %v1456
        %1512 = vmatpush.bf16.msra.mxu0 %v1453
        %1513 = vmatpush.bf16.msra.mxu0 %v1450
        %1514 = vmatpush.bf16.msra.mxu0 %v1447
        %1515 = vmatpush.bf16.msra.mxu0 %v1444
        %1516 = vmatpush.bf16.msra.mxu0 %v1441
        %1517 = vmatpush.bf16.msra.mxu0 %v1438
        %1518 = vmatmul.bf16.gmra.mxu0 %v861
        %v1519 = vpop.f32.mrf.mxu0
        %v1520 = vadd.f32 %v1006, %v1519
        %v1521 = vpop.f32.mrf.mxu0
        %1522 = vdwg.mxu0
        %v1555 = vunpack.c.l.b16 %v958
        %v1556 = vunpack.c.h.b16 %v958
        %v1557 = vunpack.c.l.b16 %v959
        %v1558 = vunpack.c.l.b16 %v960
        %v1559 = vunpack.c.h.b16 %v960
        %v1560 = vunpack.c.l.b16 %v961
        %v1561 = vunpack.c.l.b16 %v962
        %v1562 = vunpack.c.h.b16 %v962
        %v1563 = vunpack.c.l.b16 %v963
        %v1564 = vunpack.c.l.b16 %v964
        %v1565 = vunpack.c.h.b16 %v964
        %v1566 = vunpack.c.l.b16 %v965
        %v1567 = vunpack.c.l.b16 %v966
        %v1568 = vunpack.c.h.b16 %v966
        %v1569 = vunpack.c.l.b16 %v967
        %v1570 = vunpack.c.l.b16 %v968
        %v1571 = vunpack.c.h.b16 %v968
        %v1572 = vunpack.c.l.b16 %v969
        %v1573 = vunpack.c.l.b16 %v970
        %v1574 = vunpack.c.h.b16 %v970
        %v1575 = vunpack.c.l.b16 %v971
        %v1576 = vunpack.c.l.b16 %v972
        %v1577 = vunpack.c.h.b16 %v972
        %v1578 = vunpack.c.l.b16 %v973
        %v1579 = vunpack.c.l.b16 %v974
        %v1580 = vunpack.c.h.b16 %v974
        %v1581 = vunpack.c.l.b16 %v975
        %v1582 = vunpack.c.l.b16 %v976
        %v1583 = vunpack.c.h.b16 %v976
        %v1584 = vunpack.c.l.b16 %v977
        %v1585 = vunpack.c.l.b16 %v978
        %v1586 = vunpack.c.h.b16 %v978
        %v1587 = vunpack.c.l.b16 %v979
        %v1588 = vunpack.c.l.b16 %v980
        %v1589 = vunpack.c.h.b16 %v980
        %v1590 = vunpack.c.l.b16 %v981
        %v1591 = vunpack.c.l.b16 %v982
        %v1592 = vunpack.c.h.b16 %v982
        %v1593 = vunpack.c.l.b16 %v983
        %v1594 = vunpack.c.l.b16 %v984
        %v1595 = vunpack.c.h.b16 %v984
        %v1596 = vunpack.c.l.b16 %v985
        %v1597 = vunpack.c.l.b16 %v986
        %v1598 = vunpack.c.h.b16 %v986
        %v1599 = vunpack.c.l.b16 %v987
        %v1600 = vunpack.c.l.b16 %v988
        %v1601 = vunpack.c.h.b16 %v988
        %v1602 = vunpack.c.l.b16 %v989
        %v1603 = vpack.c.b16 %v1558, %v1555
        %v1604 = vpack.c.b16 %v1559, %v1556
        %v1605 = vpack.c.b16 %v1560, %v1557
        %v1606 = vpack.c.b16 %v1564, %v1561
        %v1607 = vpack.c.b16 %v1565, %v1562
        %v1608 = vpack.c.b16 %v1566, %v1563
        %v1609 = vpack.c.b16 %v1570, %v1567
        %v1610 = vpack.c.b16 %v1571, %v1568
        %v1611 = vpack.c.b16 %v1572, %v1569
        %v1612 = vpack.c.b16 %v1576, %v1573
        %v1613 = vpack.c.b16 %v1577, %v1574
        %v1614 = vpack.c.b16 %v1578, %v1575
        %v1615 = vpack.c.b16 %v1582, %v1579
        %v1616 = vpack.c.b16 %v1583, %v1580
        %v1617 = vpack.c.b16 %v1584, %v1581
        %v1618 = vpack.c.b16 %v1588, %v1585
        %v1619 = vpack.c.b16 %v1589, %v1586
        %v1620 = vpack.c.b16 %v1590, %v1587
        %v1621 = vpack.c.b16 %v1594, %v1591
        %v1622 = vpack.c.b16 %v1595, %v1592
        %v1623 = vpack.c.b16 %v1596, %v1593
        %v1624 = vpack.c.b16 %v1600, %v1597
        %v1625 = vpack.c.b16 %v1601, %v1598
        %v1626 = vpack.c.b16 %v1602, %v1599
        %1651 = vmatpush.bf16.msra.mxu0 %v1624
        %1652 = vmatpush.bf16.msra.mxu0 %v1621
        %1653 = vmatpush.bf16.msra.mxu0 %v1618
        %1654 = vmatpush.bf16.msra.mxu0 %v1615
        %1655 = vmatpush.bf16.msra.mxu0 %v1612
        %1656 = vmatpush.bf16.msra.mxu0 %v1609
        %1657 = vmatpush.bf16.msra.mxu0 %v1606
        %1658 = vmatpush.bf16.msra.mxu0 %v1603
        %1659 = vmatmul.bf16.gmra.mxu0 %v861
        %v1660 = vpop.f32.mrf.mxu0
        %v1661 = vadd.f32 %v1007, %v1660
        %v1662 = vpop.f32.mrf.mxu0
        %1663 = vdwg.mxu0
        %1664 = vmatpush.bf16.msra.mxu0 %v1625
        %1665 = vmatpush.bf16.msra.mxu0 %v1622
        %1666 = vmatpush.bf16.msra.mxu0 %v1619
        %1667 = vmatpush.bf16.msra.mxu0 %v1616
        %1668 = vmatpush.bf16.msra.mxu0 %v1613
        %1669 = vmatpush.bf16.msra.mxu0 %v1610
        %1670 = vmatpush.bf16.msra.mxu0 %v1607
        %1671 = vmatpush.bf16.msra.mxu0 %v1604
        %1672 = vmatmul.bf16.gmra.mxu0 %v861
        %v1673 = vpop.f32.mrf.mxu0
        %v1674 = vadd.f32 %v1008, %v1673
        %v1675 = vpop.f32.mrf.mxu0
        %1676 = vdwg.mxu0
        %1677 = vmatpush.bf16.msra.mxu0 %v1626
        %1678 = vmatpush.bf16.msra.mxu0 %v1623
        %1679 = vmatpush.bf16.msra.mxu0 %v1620
        %1680 = vmatpush.bf16.msra.mxu0 %v1617
        %1681 = vmatpush.bf16.msra.mxu0 %v1614
        %1682 = vmatpush.bf16.msra.mxu0 %v1611
        %1683 = vmatpush.bf16.msra.mxu0 %v1608
        %1684 = vmatpush.bf16.msra.mxu0 %v1605
        %1685 = vmatmul.bf16.gmra.mxu0 %v861
        %v1686 = vpop.f32.mrf.mxu0
        %v1687 = vadd.f32 %v1009, %v1686
        %v1688 = vpop.f32.mrf.mxu0
        %1689 = vdwg.mxu0
        %v1690 = vpack.c.bf16 %v1160, %v1160
        %v1691 = vpack.c.bf16 %v1327, %v1327
        %v1692 = vpack.c.bf16 %v1494, %v1494
        %v1693 = vpack.c.bf16 %v1661, %v1661
        %v1694 = vpack.c.bf16 %v1173, %v1173
        %v1695 = vpack.c.bf16 %v1340, %v1340
        %v1696 = vpack.c.bf16 %v1507, %v1507
        %v1697 = vpack.c.bf16 %v1674, %v1674
        %v1698 = vpack.c.bf16 %v1186, %v1186
        %v1699 = vpack.c.bf16 %v1353, %v1353
        %v1700 = vpack.c.bf16 %v1520, %v1520
        %v1701 = vpack.c.bf16 %v1687, %v1687
        %1702 = vmatpush.bf16.xpose.msra.mxu0 0
        %1703 = vmatpush.bf16.xpose.msra.mxu0 0
        %1704 = vmatpush.bf16.xpose.msra.mxu0 0
        %1705 = vmatpush.bf16.xpose.msra.mxu0 0
        %1706 = vmatpush.bf16.xpose.msra.mxu0 0
        %1707 = vmatpush.bf16.xpose.msra.mxu0 0
        %1708 = vmatpush.bf16.xpose.msra.mxu0 0
        %1709 = vmatpush.bf16.xpose.msra.mxu0 %v1694
        %1710 = vmatmul.bf16.gmra.mxu0 %v1690
        %v1711 = vpop.f32.mrf.mxu0
        %v1712 = vadd.f32 0.0, %v1711
        %v1713 = vpop.f32.mrf.mxu0
        %1714 = vdwg.mxu0
        %1715 = vmatpush.bf16.xpose.msra.mxu0 0
        %1716 = vmatpush.bf16.xpose.msra.mxu0 0
        %1717 = vmatpush.bf16.xpose.msra.mxu0 0
        %1718 = vmatpush.bf16.xpose.msra.mxu0 0
        %1719 = vmatpush.bf16.xpose.msra.mxu0 0
        %1720 = vmatpush.bf16.xpose.msra.mxu0 0
        %1721 = vmatpush.bf16.xpose.msra.mxu0 0
        %1722 = vmatpush.bf16.xpose.msra.mxu0 %v1695
        %1723 = vmatmul.bf16.gmra.mxu0 %v1691
        %v1724 = vpop.f32.mrf.mxu0
        %v1725 = vadd.f32 0.0, %v1724
        %v1726 = vpop.f32.mrf.mxu0
        %1727 = vdwg.mxu0
        %1728 = vmatpush.bf16.xpose.msra.mxu0 0
        %1729 = vmatpush.bf16.xpose.msra.mxu0 0
        %1730 = vmatpush.bf16.xpose.msra.mxu0 0
        %1731 = vmatpush.bf16.xpose.msra.mxu0 0
        %1732 = vmatpush.bf16.xpose.msra.mxu0 0
        %1733 = vmatpush.bf16.xpose.msra.mxu0 0
        %1734 = vmatpush.bf16.xpose.msra.mxu0 0
        %1735 = vmatpush.bf16.xpose.msra.mxu0 %v1696
        %1736 = vmatmul.bf16.gmra.mxu0 %v1692
        %v1737 = vpop.f32.mrf.mxu0
        %v1738 = vadd.f32 0.0, %v1737
        %v1739 = vpop.f32.mrf.mxu0
        %1740 = vdwg.mxu0
        %1741 = vmatpush.bf16.xpose.msra.mxu0 0
        %1742 = vmatpush.bf16.xpose.msra.mxu0 0
        %1743 = vmatpush.bf16.xpose.msra.mxu0 0
        %1744 = vmatpush.bf16.xpose.msra.mxu0 0
        %1745 = vmatpush.bf16.xpose.msra.mxu0 0
        %1746 = vmatpush.bf16.xpose.msra.mxu0 0
        %1747 = vmatpush.bf16.xpose.msra.mxu0 0
        %1748 = vmatpush.bf16.xpose.msra.mxu0 %v1697
        %1749 = vmatmul.bf16.gmra.mxu0 %v1693
        %v1750 = vpop.f32.mrf.mxu0
        %v1751 = vadd.f32 0.0, %v1750
        %v1752 = vpop.f32.mrf.mxu0
        %1753 = vdwg.mxu0
        %v1754 = vlaneseq
        %v1755 = vshrl.u32 %v1754, 7
        %v1756 = vlaneseq
        %v1757 = vand.u32 %v1756, 127
        %vm1758 = vcmp.ge.s32.totalorder %v1755, %v1757
        %v1759 = vsel %vm1758, 1, 0
        %vm1760 = vcmp.eq.s32.totalorder %v1759, 1
        %v1761 = vsel %vm1760, %v1712, -1e+30
        %v1762 = vsel %vm1760, %v1725, -1e+30
        %v1763 = vsel %vm1760, %v1738, -1e+30
        %v1764 = vsel %vm1760, %v1751, -1e+30
        %vm1765 = vcmask 64512
        %v1766 = vsel %vm1765, %v1761, -inf
        %1767 = vmax.xlane.f32.xlu0 %v1766
        %v1768 = vpop.xlane.xlu0 %1767
        %v1769 = vsel %vm1765, %v1762, -inf
        %1770 = vmax.xlane.f32.xlu0 %v1769
        %v1771 = vpop.xlane.xlu0 %1770
        %v1772 = vsel %vm1765, %v1763, -inf
        %1773 = vmax.xlane.f32.xlu0 %v1772
        %v1774 = vpop.xlane.xlu0 %1773
        %v1775 = vsel %vm1765, %v1764, -inf
        %1776 = vmax.xlane.f32.xlu0 %v1775
        %v1777 = vpop.xlane.xlu0 %1776
        %v1778 = vsub.f32 %v1761, %v1768
        %v1779 = vsub.f32 %v1762, %v1771
        %v1780 = vsub.f32 %v1763, %v1774
        %v1781 = vsub.f32 %v1764, %v1777
        %v1782 = vmul.f32 %v1778, 1.442695
        %v1783 = vpow.pop %v1782
        %v1784 = vmul.f32 %v1779, 1.442695
        %v1785 = vpow.pop %v1784
        %v1786 = vmul.f32 %v1780, 1.442695
        %v1787 = vpow.pop %v1786
        %v1788 = vmul.f32 %v1781, 1.442695
        %v1789 = vpow.pop %v1788
        %v1790 = vsel %vm1765, %v1783, 0.0
        %1791 = vadd.xlane.f32.xlu0 %v1790
        %v1792 = vpop.xlane.xlu0 %1791
        %v1793 = vsel %vm1765, %v1785, 0.0
        %1794 = vadd.xlane.f32.xlu0 %v1793
        %v1795 = vpop.xlane.xlu0 %1794
        %v1796 = vsel %vm1765, %v1787, 0.0
        %1797 = vadd.xlane.f32.xlu0 %v1796
        %v1798 = vpop.xlane.xlu0 %1797
        %v1799 = vsel %vm1765, %v1789, 0.0
        %1800 = vadd.xlane.f32.xlu0 %v1799
        %v1801 = vpop.xlane.xlu0 %1800
        %v1802 = vrcp.pop %v1792
        %v1803 = vrcp.pop %v1795
        %v1804 = vrcp.pop %v1798
        %v1805 = vrcp.pop %v1801
        %v1806 = vmul.f32 %v1783, %v1802
        %v1807 = vmul.f32 %v1785, %v1803
        %v1808 = vmul.f32 %v1787, %v1804
        %v1809 = vmul.f32 %v1789, %v1805
        %v1810 = vpack.c.bf16 %v1806, %v1806
        %v1811 = vpack.c.bf16 %v1807, %v1807
        %v1812 = vpack.c.bf16 %v1808, %v1808
        %v1813 = vpack.c.bf16 %v1809, %v1809
        %v1815 = vsel %vm1765, %v1810, 0
        %vm1817 = vcmask 1043456
        %v1819 = vsel %vm1817, %v1698, 0
        %1821 = vmatpush.bf16.msra.mxu0 0
        %1822 = vmatpush.bf16.msra.mxu0 0
        %1823 = vmatpush.bf16.msra.mxu0 0
        %1824 = vmatpush.bf16.msra.mxu0 0
        %1825 = vmatpush.bf16.msra.mxu0 0
        %1826 = vmatpush.bf16.msra.mxu0 0
        %1827 = vmatpush.bf16.msra.mxu0 0
        %1828 = vmatpush.bf16.msra.mxu0 %v1819
        %1829 = vmatmul.bf16.gmra.mxu0 %v1815
        %v1830 = vpop.f32.mrf.mxu0
        %v1831 = vadd.f32 0.0, %v1830
        %v1832 = vpop.f32.mrf.mxu0
        %1833 = vdwg.mxu0
        %v1835 = vsel %vm1765, %v1811, 0
        %v1838 = vsel %vm1817, %v1699, 0
        %1840 = vmatpush.bf16.msra.mxu0 0
        %1841 = vmatpush.bf16.msra.mxu0 0
        %1842 = vmatpush.bf16.msra.mxu0 0
        %1843 = vmatpush.bf16.msra.mxu0 0
        %1844 = vmatpush.bf16.msra.mxu0 0
        %1845 = vmatpush.bf16.msra.mxu0 0
        %1846 = vmatpush.bf16.msra.mxu0 0
        %1847 = vmatpush.bf16.msra.mxu0 %v1838
        %1848 = vmatmul.bf16.gmra.mxu0 %v1835
        %v1849 = vpop.f32.mrf.mxu0
        %v1850 = vadd.f32 0.0, %v1849
        %v1851 = vpop.f32.mrf.mxu0
        %1852 = vdwg.mxu0
        %v1854 = vsel %vm1765, %v1812, 0
        %v1857 = vsel %vm1817, %v1700, 0
        %1859 = vmatpush.bf16.msra.mxu0 0
        %1860 = vmatpush.bf16.msra.mxu0 0
        %1861 = vmatpush.bf16.msra.mxu0 0
        %1862 = vmatpush.bf16.msra.mxu0 0
        %1863 = vmatpush.bf16.msra.mxu0 0
        %1864 = vmatpush.bf16.msra.mxu0 0
        %1865 = vmatpush.bf16.msra.mxu0 0
        %1866 = vmatpush.bf16.msra.mxu0 %v1857
        %1867 = vmatmul.bf16.gmra.mxu0 %v1854
        %v1868 = vpop.f32.mrf.mxu0
        %v1869 = vadd.f32 0.0, %v1868
        %v1870 = vpop.f32.mrf.mxu0
        %1871 = vdwg.mxu0
        %v1873 = vsel %vm1765, %v1813, 0
        %v1876 = vsel %vm1817, %v1701, 0
        %1878 = vmatpush.bf16.msra.mxu0 0
        %1879 = vmatpush.bf16.msra.mxu0 0
        %1880 = vmatpush.bf16.msra.mxu0 0
        %1881 = vmatpush.bf16.msra.mxu0 0
        %1882 = vmatpush.bf16.msra.mxu0 0
        %1883 = vmatpush.bf16.msra.mxu0 0
        %1884 = vmatpush.bf16.msra.mxu0 0
        %1885 = vmatpush.bf16.msra.mxu0 %v1876
        %1886 = vmatmul.bf16.gmra.mxu0 %v1873
        %v1887 = vpop.f32.mrf.mxu0
        %v1888 = vadd.f32 0.0, %v1887
        %v1889 = vpop.f32.mrf.mxu0
        %1890 = vdwg.mxu0
        %v1891 = vpack.c.bf16 %v1831, %v1831
        %v1892 = vpack.c.bf16 %v1850, %v1850
        %v1893 = vpack.c.bf16 %v1869, %v1869
        %v1894 = vpack.c.bf16 %v1888, %v1888
        %v1895 = vld [vmem:[%s697] sm:$0xf]
        %v1896 = vld [vmem:[%s697 + $0x4] sm:$0xf]
        %v1897 = vld [vmem:[%s697 + $0x8] sm:$0xf]
        %v1898 = vld [vmem:[%s697 + $0xc] sm:$0xf]
        %v1899 = vld [vmem:[%s697 + $0x10] sm:$0xf]
        %v1900 = vld [vmem:[%s697 + $0x14] sm:$0xf]
        %v1901 = vld [vmem:[%s697 + $0x18] sm:$0xf]
        %v1902 = vld [vmem:[%s697 + $0x1c] sm:$0xf]
        %v1903 = vld [vmem:[%s697 + $0x20] sm:$0xf]
        %v1904 = vld [vmem:[%s697 + $0x24] sm:$0xf]
        %v1905 = vld [vmem:[%s697 + $0x28] sm:$0xf]
        %v1906 = vld [vmem:[%s697 + $0x2c] sm:$0xf]
        %v1907 = vld [vmem:[%s697 + $0x30] sm:$0xf]
        %v1908 = vld [vmem:[%s697 + $0x34] sm:$0xf]
        %v1909 = vld [vmem:[%s697 + $0x38] sm:$0xf]
        %v1910 = vld [vmem:[%s697 + $0x3c] sm:$0xf]
        %v1911 = vld [vmem:[%s697 + $0x40] sm:$0xf]
        %v1912 = vld [vmem:[%s697 + $0x44] sm:$0xf]
        %v1913 = vld [vmem:[%s697 + $0x48] sm:$0xf]
        %v1914 = vld [vmem:[%s697 + $0x4c] sm:$0xf]
        %v1915 = vld [vmem:[%s697 + $0x50] sm:$0xf]
        %v1916 = vld [vmem:[%s697 + $0x54] sm:$0xf]
        %v1917 = vld [vmem:[%s697 + $0x58] sm:$0xf]
        %v1918 = vld [vmem:[%s697 + $0x5c] sm:$0xf]
        %v1919 = vld [vmem:[%s697 + $0x60] sm:$0xf]
        %v1920 = vld [vmem:[%s697 + $0x64] sm:$0xf]
        %v1921 = vld [vmem:[%s697 + $0x68] sm:$0xf]
        %v1922 = vld [vmem:[%s697 + $0x6c] sm:$0xf]
        %v1923 = vld [vmem:[%s697 + $0x70] sm:$0xf]
        %v1924 = vld [vmem:[%s697 + $0x74] sm:$0xf]
        %v1925 = vld [vmem:[%s697 + $0x78] sm:$0xf]
        %v1926 = vld [vmem:[%s697 + $0x7c] sm:$0xf]
        %v1927 = vld [vmem:[%s697 + $0x80] sm:$0xf]
        %v1928 = vld [vmem:[%s697 + $0x84] sm:$0xf]
        %v1929 = vld [vmem:[%s697 + $0x88] sm:$0xf]
        %v1930 = vld [vmem:[%s697 + $0x8c] sm:$0xf]
        %v1931 = vld [vmem:[%s697 + $0x90] sm:$0xf]
        %v1932 = vld [vmem:[%s697 + $0x94] sm:$0xf]
        %v1933 = vld [vmem:[%s697 + $0x98] sm:$0xf]
        %v1934 = vld [vmem:[%s697 + $0x9c] sm:$0xf]
        %v1935 = vld [vmem:[%s697 + $0xa0] sm:$0xf]
        %v1936 = vld [vmem:[%s697 + $0xa4] sm:$0xf]
        %v1937 = vld [vmem:[%s697 + $0xa8] sm:$0xf]
        %v1938 = vld [vmem:[%s697 + $0xac] sm:$0xf]
        %v1939 = vld [vmem:[%s697 + $0xb0] sm:$0xf]
        %v1940 = vld [vmem:[%s697 + $0xb4] sm:$0xf]
        %v1941 = vld [vmem:[%s697 + $0xb8] sm:$0xf]
        %v1942 = vld [vmem:[%s697 + $0xbc] sm:$0xf]
        %v1943 = vld [vmem:[%s697 + $0xc0] sm:$0xf]
        %v1944 = vld [vmem:[%s697 + $0xc4] sm:$0xf]
        %v1945 = vld [vmem:[%s697 + $0xc8] sm:$0xf]
        %v1946 = vld [vmem:[%s697 + $0xcc] sm:$0xf]
        %v1947 = vld [vmem:[%s697 + $0xd0] sm:$0xf]
        %v1948 = vld [vmem:[%s697 + $0xd4] sm:$0xf]
        %v1949 = vld [vmem:[%s697 + $0xd8] sm:$0xf]
        %v1950 = vld [vmem:[%s697 + $0xdc] sm:$0xf]
        %v1951 = vld [vmem:[%s697 + $0xe0] sm:$0xf]
        %v1952 = vld [vmem:[%s697 + $0xe4] sm:$0xf]
        %v1953 = vld [vmem:[%s697 + $0xe8] sm:$0xf]
        %v1954 = vld [vmem:[%s697 + $0xec] sm:$0xf]
        %v1955 = vld [vmem:[%s697 + $0xf0] sm:$0xf]
        %v1956 = vld [vmem:[%s697 + $0xf4] sm:$0xf]
        %v1957 = vld [vmem:[%s697 + $0xf8] sm:$0xf]
        %v1958 = vld [vmem:[%s697 + $0xfc] sm:$0xf]
        %v1975 = vunpack.c.l.b16 %v1895
        %v1976 = vunpack.c.l.b16 %v1896
        %v1977 = vunpack.c.l.b16 %v1897
        %v1978 = vunpack.c.l.b16 %v1898
        %v1979 = vunpack.c.l.b16 %v1899
        %v1980 = vunpack.c.l.b16 %v1900
        %v1981 = vunpack.c.l.b16 %v1901
        %v1982 = vunpack.c.l.b16 %v1902
        %v1983 = vunpack.c.l.b16 %v1903
        %v1984 = vunpack.c.l.b16 %v1904
        %v1985 = vunpack.c.l.b16 %v1905
        %v1986 = vunpack.c.l.b16 %v1906
        %v1987 = vunpack.c.l.b16 %v1907
        %v1988 = vunpack.c.l.b16 %v1908
        %v1989 = vunpack.c.l.b16 %v1909
        %v1990 = vunpack.c.l.b16 %v1910
        %v1991 = vpack.c.b16 %v1976, %v1975
        %v1992 = vpack.c.b16 %v1978, %v1977
        %v1993 = vpack.c.b16 %v1980, %v1979
        %v1994 = vpack.c.b16 %v1982, %v1981
        %v1995 = vpack.c.b16 %v1984, %v1983
        %v1996 = vpack.c.b16 %v1986, %v1985
        %v1997 = vpack.c.b16 %v1988, %v1987
        %v1998 = vpack.c.b16 %v1990, %v1989
        %2007 = vmatpush.bf16.msra.mxu0 %v1998
        %2008 = vmatpush.bf16.msra.mxu0 %v1997
        %2009 = vmatpush.bf16.msra.mxu0 %v1996
        %2010 = vmatpush.bf16.msra.mxu0 %v1995
        %2011 = vmatpush.bf16.msra.mxu0 %v1994
        %2012 = vmatpush.bf16.msra.mxu0 %v1993
        %2013 = vmatpush.bf16.msra.mxu0 %v1992
        %2014 = vmatpush.bf16.msra.mxu0 %v1991
        %2015 = vmatmul.bf16.gmra.mxu0 %v1891
        %v2016 = vpop.f32.mrf.mxu0
        %v2017 = vadd.f32 0.0, %v2016
        %v2018 = vpop.f32.mrf.mxu0
        %2019 = vdwg.mxu0
        %v2036 = vunpack.c.l.b16 %v1911
        %v2037 = vunpack.c.l.b16 %v1912
        %v2038 = vunpack.c.l.b16 %v1913
        %v2039 = vunpack.c.l.b16 %v1914
        %v2040 = vunpack.c.l.b16 %v1915
        %v2041 = vunpack.c.l.b16 %v1916
        %v2042 = vunpack.c.l.b16 %v1917
        %v2043 = vunpack.c.l.b16 %v1918
        %v2044 = vunpack.c.l.b16 %v1919
        %v2045 = vunpack.c.l.b16 %v1920
        %v2046 = vunpack.c.l.b16 %v1921
        %v2047 = vunpack.c.l.b16 %v1922
        %v2048 = vunpack.c.l.b16 %v1923
        %v2049 = vunpack.c.l.b16 %v1924
        %v2050 = vunpack.c.l.b16 %v1925
        %v2051 = vunpack.c.l.b16 %v1926
        %v2052 = vpack.c.b16 %v2037, %v2036
        %v2053 = vpack.c.b16 %v2039, %v2038
        %v2054 = vpack.c.b16 %v2041, %v2040
        %v2055 = vpack.c.b16 %v2043, %v2042
        %v2056 = vpack.c.b16 %v2045, %v2044
        %v2057 = vpack.c.b16 %v2047, %v2046
        %v2058 = vpack.c.b16 %v2049, %v2048
        %v2059 = vpack.c.b16 %v2051, %v2050
        %2068 = vmatpush.bf16.msra.mxu0 %v2059
        %2069 = vmatpush.bf16.msra.mxu0 %v2058
        %2070 = vmatpush.bf16.msra.mxu0 %v2057
        %2071 = vmatpush.bf16.msra.mxu0 %v2056
        %2072 = vmatpush.bf16.msra.mxu0 %v2055
        %2073 = vmatpush.bf16.msra.mxu0 %v2054
        %2074 = vmatpush.bf16.msra.mxu0 %v2053
        %2075 = vmatpush.bf16.msra.mxu0 %v2052
        %2076 = vmatmul.bf16.gmra.mxu0 %v1892
        %v2077 = vpop.f32.mrf.mxu0
        %v2078 = vadd.f32 0.0, %v2077
        %v2079 = vpop.f32.mrf.mxu0
        %2080 = vdwg.mxu0
        %v2097 = vunpack.c.l.b16 %v1927
        %v2098 = vunpack.c.l.b16 %v1928
        %v2099 = vunpack.c.l.b16 %v1929
        %v2100 = vunpack.c.l.b16 %v1930
        %v2101 = vunpack.c.l.b16 %v1931
        %v2102 = vunpack.c.l.b16 %v1932
        %v2103 = vunpack.c.l.b16 %v1933
        %v2104 = vunpack.c.l.b16 %v1934
        %v2105 = vunpack.c.l.b16 %v1935
        %v2106 = vunpack.c.l.b16 %v1936
        %v2107 = vunpack.c.l.b16 %v1937
        %v2108 = vunpack.c.l.b16 %v1938
        %v2109 = vunpack.c.l.b16 %v1939
        %v2110 = vunpack.c.l.b16 %v1940
        %v2111 = vunpack.c.l.b16 %v1941
        %v2112 = vunpack.c.l.b16 %v1942
        %v2113 = vpack.c.b16 %v2098, %v2097
        %v2114 = vpack.c.b16 %v2100, %v2099
        %v2115 = vpack.c.b16 %v2102, %v2101
        %v2116 = vpack.c.b16 %v2104, %v2103
        %v2117 = vpack.c.b16 %v2106, %v2105
        %v2118 = vpack.c.b16 %v2108, %v2107
        %v2119 = vpack.c.b16 %v2110, %v2109
        %v2120 = vpack.c.b16 %v2112, %v2111
        %2129 = vmatpush.bf16.msra.mxu0 %v2120
        %2130 = vmatpush.bf16.msra.mxu0 %v2119
        %2131 = vmatpush.bf16.msra.mxu0 %v2118
        %2132 = vmatpush.bf16.msra.mxu0 %v2117
        %2133 = vmatpush.bf16.msra.mxu0 %v2116
        %2134 = vmatpush.bf16.msra.mxu0 %v2115
        %2135 = vmatpush.bf16.msra.mxu0 %v2114
        %2136 = vmatpush.bf16.msra.mxu0 %v2113
        %2137 = vmatmul.bf16.gmra.mxu0 %v1893
        %v2138 = vpop.f32.mrf.mxu0
        %v2139 = vadd.f32 0.0, %v2138
        %v2140 = vpop.f32.mrf.mxu0
        %2141 = vdwg.mxu0
        %v2158 = vunpack.c.l.b16 %v1943
        %v2159 = vunpack.c.l.b16 %v1944
        %v2160 = vunpack.c.l.b16 %v1945
        %v2161 = vunpack.c.l.b16 %v1946
        %v2162 = vunpack.c.l.b16 %v1947
        %v2163 = vunpack.c.l.b16 %v1948
        %v2164 = vunpack.c.l.b16 %v1949
        %v2165 = vunpack.c.l.b16 %v1950
        %v2166 = vunpack.c.l.b16 %v1951
        %v2167 = vunpack.c.l.b16 %v1952
        %v2168 = vunpack.c.l.b16 %v1953
        %v2169 = vunpack.c.l.b16 %v1954
        %v2170 = vunpack.c.l.b16 %v1955
        %v2171 = vunpack.c.l.b16 %v1956
        %v2172 = vunpack.c.l.b16 %v1957
        %v2173 = vunpack.c.l.b16 %v1958
        %v2174 = vpack.c.b16 %v2159, %v2158
        %v2175 = vpack.c.b16 %v2161, %v2160
        %v2176 = vpack.c.b16 %v2163, %v2162
        %v2177 = vpack.c.b16 %v2165, %v2164
        %v2178 = vpack.c.b16 %v2167, %v2166
        %v2179 = vpack.c.b16 %v2169, %v2168
        %v2180 = vpack.c.b16 %v2171, %v2170
        %v2181 = vpack.c.b16 %v2173, %v2172
        %2190 = vmatpush.bf16.msra.mxu0 %v2181
        %2191 = vmatpush.bf16.msra.mxu0 %v2180
        %2192 = vmatpush.bf16.msra.mxu0 %v2179
        %2193 = vmatpush.bf16.msra.mxu0 %v2178
        %2194 = vmatpush.bf16.msra.mxu0 %v2177
        %2195 = vmatpush.bf16.msra.mxu0 %v2176
        %2196 = vmatpush.bf16.msra.mxu0 %v2175
        %2197 = vmatpush.bf16.msra.mxu0 %v2174
        %2198 = vmatmul.bf16.gmra.mxu0 %v1894
        %v2199 = vpop.f32.mrf.mxu0
        %v2200 = vadd.f32 0.0, %v2199
        %v2201 = vpop.f32.mrf.mxu0
        %2202 = vdwg.mxu0
        %v2203 = vadd.f32 %v2017, %v2078
        %v2204 = vadd.f32 %v2203, %v2139
        %v2205 = vadd.f32 %v2204, %v2200
        %v2206 = vadd.f32 %v827, %v2205
        %v2207 = vld [vmem:[%s805] sm:$0x1]
        %v2209 = vperm.slane %v2207, 0
        %v2211 = vadd.f32 %v2206, %v2209
        %v2212 = vld [vmem:[%s808] sm:$0x1]
        %v2213 = vld [vmem:[%s811] sm:$0x1]
        %2214 = vadd.xlane.f32.xlu0 %v2211
        %v2215 = vpop.xlane.xlu0 %2214
        %v2216 = vmul.f32 %v2215, 0.03125
        %v2217 = vsub.f32 %v2211, %v2216
        %v2218 = vmul.f32 %v2217, %v2217
        %2219 = vadd.xlane.f32.xlu0 %v2218
        %v2220 = vpop.xlane.xlu0 %2219
        %v2221 = vmul.f32 %v2216, 96.0
        %v2222 = vmul.f32 %v2221, %v2216
        %v2223 = vsub.f32 %v2220, %v2222
        %v2224 = vmul.f32 %v2223, 0.03125
        %v2225 = vadd.f32 %v2224, 1e-05
        %v2226 = vrsqrt.pop %v2225
        %v2227 = vmul.f32 %v2226, %v2225
        %v2228 = vmul.f32 %v2227, %v2226
        %v2229 = vmul.f32 0.5, %v2228
        %v2230 = vsub.f32 1.5, %v2229
        %v2231 = vmul.f32 %v2226, %v2230
        %vm2232 = vweird.f32 %v2225
        %vm2233 = vweird.f32 %v2226
        %vm2234 = vmor %vm2232, %vm2233
        %v2235 = vsel %vm2234, %v2226, %v2231
        %v2236 = vmul.f32 %v2217, %v2235
        %v2238 = vperm.slane %v2212, 0
        %v2240 = vmul.f32 %v2236, %v2238
        %v2242 = vperm.slane %v2213, 0
        %v2244 = vadd.f32 %v2240, %v2242
        %v2245 = vpack.c.bf16 %v2244, %v2244
        %v2246 = vld [vmem:[%s707] sm:$0xf]
        %v2247 = vld [vmem:[%s707 + $0x4] sm:$0xf]
        %v2248 = vld [vmem:[%s707 + $0x8] sm:$0xf]
        %v2249 = vld [vmem:[%s707 + $0xc] sm:$0xf]
        %v2250 = vld [vmem:[%s707 + $0x10] sm:$0xf]
        %v2251 = vld [vmem:[%s707 + $0x14] sm:$0xf]
        %v2252 = vld [vmem:[%s707 + $0x18] sm:$0xf]
        %v2253 = vld [vmem:[%s707 + $0x1c] sm:$0xf]
        %v2254 = vld [vmem:[%s707 + $0x20] sm:$0xf]
        %v2255 = vld [vmem:[%s707 + $0x24] sm:$0xf]
        %v2256 = vld [vmem:[%s707 + $0x28] sm:$0xf]
        %v2257 = vld [vmem:[%s707 + $0x2c] sm:$0xf]
        %v2258 = vld [vmem:[%s707 + $0x30] sm:$0xf]
        %v2259 = vld [vmem:[%s707 + $0x34] sm:$0xf]
        %v2260 = vld [vmem:[%s707 + $0x38] sm:$0xf]
        %v2261 = vld [vmem:[%s707 + $0x3c] sm:$0xf]
        %v2262 = vld [vmem:[%s814] sm:$0x1]
        %v2264 = vperm.slane %v2262, 0
        %v2282 = vunpack.c.l.b16 %v2246
        %v2283 = vunpack.c.l.b16 %v2247
        %v2284 = vunpack.c.l.b16 %v2248
        %v2285 = vunpack.c.l.b16 %v2249
        %v2286 = vunpack.c.l.b16 %v2250
        %v2287 = vunpack.c.l.b16 %v2251
        %v2288 = vunpack.c.l.b16 %v2252
        %v2289 = vunpack.c.l.b16 %v2253
        %v2290 = vunpack.c.l.b16 %v2254
        %v2291 = vunpack.c.l.b16 %v2255
        %v2292 = vunpack.c.l.b16 %v2256
        %v2293 = vunpack.c.l.b16 %v2257
        %v2294 = vunpack.c.l.b16 %v2258
        %v2295 = vunpack.c.l.b16 %v2259
        %v2296 = vunpack.c.l.b16 %v2260
        %v2297 = vunpack.c.l.b16 %v2261
        %v2298 = vpack.c.b16 %v2283, %v2282
        %v2299 = vpack.c.b16 %v2285, %v2284
        %v2300 = vpack.c.b16 %v2287, %v2286
        %v2301 = vpack.c.b16 %v2289, %v2288
        %v2302 = vpack.c.b16 %v2291, %v2290
        %v2303 = vpack.c.b16 %v2293, %v2292
        %v2304 = vpack.c.b16 %v2295, %v2294
        %v2305 = vpack.c.b16 %v2297, %v2296
        %2314 = vmatpush.bf16.msra.mxu0 %v2305
        %2315 = vmatpush.bf16.msra.mxu0 %v2304
        %2316 = vmatpush.bf16.msra.mxu0 %v2303
        %2317 = vmatpush.bf16.msra.mxu0 %v2302
        %2318 = vmatpush.bf16.msra.mxu0 %v2301
        %2319 = vmatpush.bf16.msra.mxu0 %v2300
        %2320 = vmatpush.bf16.msra.mxu0 %v2299
        %2321 = vmatpush.bf16.msra.mxu0 %v2298
        %2322 = vmatmul.bf16.gmra.mxu0 %v2245
        %v2323 = vpop.f32.mrf.mxu0
        %v2324 = vadd.f32 %v2264, %v2323
        %v2325 = vpop.f32.mrf.mxu0
        %2326 = vdwg.mxu0
        %v2327 = vmax.f32 %v2324, 0.0
        %v2328 = vpack.c.bf16 %v2327, %v2327
        %v2329 = vld [vmem:[%s717] sm:$0xf]
        %v2330 = vld [vmem:[%s717 + $0x4] sm:$0xf]
        %v2331 = vld [vmem:[%s717 + $0x8] sm:$0xf]
        %v2332 = vld [vmem:[%s717 + $0xc] sm:$0xf]
        %v2333 = vld [vmem:[%s717 + $0x10] sm:$0xf]
        %v2334 = vld [vmem:[%s717 + $0x14] sm:$0xf]
        %v2335 = vld [vmem:[%s717 + $0x18] sm:$0xf]
        %v2336 = vld [vmem:[%s717 + $0x1c] sm:$0xf]
        %v2337 = vld [vmem:[%s717 + $0x20] sm:$0xf]
        %v2338 = vld [vmem:[%s717 + $0x24] sm:$0xf]
        %v2339 = vld [vmem:[%s717 + $0x28] sm:$0xf]
        %v2340 = vld [vmem:[%s717 + $0x2c] sm:$0xf]
        %v2341 = vld [vmem:[%s717 + $0x30] sm:$0xf]
        %v2342 = vld [vmem:[%s717 + $0x34] sm:$0xf]
        %v2343 = vld [vmem:[%s717 + $0x38] sm:$0xf]
        %v2344 = vld [vmem:[%s717 + $0x3c] sm:$0xf]
        %v2361 = vunpack.c.l.b16 %v2329
        %v2362 = vunpack.c.l.b16 %v2330
        %v2363 = vunpack.c.l.b16 %v2331
        %v2364 = vunpack.c.l.b16 %v2332
        %v2365 = vunpack.c.l.b16 %v2333
        %v2366 = vunpack.c.l.b16 %v2334
        %v2367 = vunpack.c.l.b16 %v2335
        %v2368 = vunpack.c.l.b16 %v2336
        %v2369 = vunpack.c.l.b16 %v2337
        %v2370 = vunpack.c.l.b16 %v2338
        %v2371 = vunpack.c.l.b16 %v2339
        %v2372 = vunpack.c.l.b16 %v2340
        %v2373 = vunpack.c.l.b16 %v2341
        %v2374 = vunpack.c.l.b16 %v2342
        %v2375 = vunpack.c.l.b16 %v2343
        %v2376 = vunpack.c.l.b16 %v2344
        %v2377 = vpack.c.b16 %v2362, %v2361
        %v2378 = vpack.c.b16 %v2364, %v2363
        %v2379 = vpack.c.b16 %v2366, %v2365
        %v2380 = vpack.c.b16 %v2368, %v2367
        %v2381 = vpack.c.b16 %v2370, %v2369
        %v2382 = vpack.c.b16 %v2372, %v2371
        %v2383 = vpack.c.b16 %v2374, %v2373
        %v2384 = vpack.c.b16 %v2376, %v2375
        %2393 = vmatpush.bf16.msra.mxu0 %v2384
        %2394 = vmatpush.bf16.msra.mxu0 %v2383
        %2395 = vmatpush.bf16.msra.mxu0 %v2382
        %2396 = vmatpush.bf16.msra.mxu0 %v2381
        %2397 = vmatpush.bf16.msra.mxu0 %v2380
        %2398 = vmatpush.bf16.msra.mxu0 %v2379
        %2399 = vmatpush.bf16.msra.mxu0 %v2378
        %2400 = vmatpush.bf16.msra.mxu0 %v2377
        %2401 = vmatmul.bf16.gmra.mxu0 %v2328
        %v2402 = vpop.f32.mrf.mxu0
        %v2403 = vadd.f32 0.0, %v2402
        %v2404 = vpop.f32.mrf.mxu0
        %2405 = vdwg.mxu0
        %v2406 = vadd.f32 %v2211, %v2403
        %v2407 = vld [vmem:[%s817] sm:$0x1]
        %v2409 = vperm.slane %v2407, 0
        %v2411 = vadd.f32 %v2406, %v2409
        %2412 = vst [vmem:[#allocation2] sm:$0xff] %v2411
        %s2413 = scalar_lea.vmem [#allocation2], 8
        %v2414 = vld [vmem:[%s2413] sm:$0xff]
        %v2415 = vld [vmem:[%s658] sm:$0x1]
        %v2416 = vld [vmem:[%s667] sm:$0x1]
        %2417 = vadd.xlane.f32.xlu0 %v2414
        %v2418 = vpop.xlane.xlu0 %2417
        %v2419 = vmul.f32 %v2418, 0.03125
        %v2420 = vsub.f32 %v2414, %v2419
        %v2421 = vmul.f32 %v2420, %v2420
        %2422 = vadd.xlane.f32.xlu0 %v2421
        %v2423 = vpop.xlane.xlu0 %2422
        %v2424 = vmul.f32 %v2419, 96.0
        %v2425 = vmul.f32 %v2424, %v2419
        %v2426 = vsub.f32 %v2423, %v2425
        %v2427 = vmul.f32 %v2426, 0.03125
        %v2428 = vadd.f32 %v2427, 1e-05
        %v2429 = vrsqrt.pop %v2428
        %v2430 = vmul.f32 %v2429, %v2428
        %v2431 = vmul.f32 %v2430, %v2429
        %v2432 = vmul.f32 0.5, %v2431
        %v2433 = vsub.f32 1.5, %v2432
        %v2434 = vmul.f32 %v2429, %v2433
        %vm2435 = vweird.f32 %v2428
        %vm2436 = vweird.f32 %v2429
        %vm2437 = vmor %vm2435, %vm2436
        %v2438 = vsel %vm2437, %v2429, %v2434
        %v2439 = vmul.f32 %v2420, %v2438
        %v2441 = vperm.slane %v2415, 0
        %v2443 = vmul.f32 %v2439, %v2441
        %v2445 = vperm.slane %v2416, 0
        %v2447 = vadd.f32 %v2443, %v2445
        %v2448 = vpack.c.bf16 %v2447, %v2447
        %v2449 = vld [vmem:[%s677] sm:$0xff]
        %v2450 = vld [vmem:[%s677 + $0x8] sm:$0xf]
        %v2451 = vld [vmem:[%s677 + $0xc] sm:$0xff]
        %v2452 = vld [vmem:[%s677 + $0x14] sm:$0xf]
        %v2453 = vld [vmem:[%s677 + $0x18] sm:$0xff]
        %v2454 = vld [vmem:[%s677 + $0x20] sm:$0xf]
        %v2455 = vld [vmem:[%s677 + $0x24] sm:$0xff]
        %v2456 = vld [vmem:[%s677 + $0x2c] sm:$0xf]
        %v2457 = vld [vmem:[%s677 + $0x30] sm:$0xff]
        %v2458 = vld [vmem:[%s677 + $0x38] sm:$0xf]
        %v2459 = vld [vmem:[%s677 + $0x3c] sm:$0xff]
        %v2460 = vld [vmem:[%s677 + $0x44] sm:$0xf]
        %v2461 = vld [vmem:[%s677 + $0x48] sm:$0xff]
        %v2462 = vld [vmem:[%s677 + $0x50] sm:$0xf]
        %v2463 = vld [vmem:[%s677 + $0x54] sm:$0xff]
        %v2464 = vld [vmem:[%s677 + $0x5c] sm:$0xf]
        %v2465 = vld [vmem:[%s677 + $0x60] sm:$0xff]
        %v2466 = vld [vmem:[%s677 + $0x68] sm:$0xf]
        %v2467 = vld [vmem:[%s677 + $0x6c] sm:$0xff]
        %v2468 = vld [vmem:[%s677 + $0x74] sm:$0xf]
        %v2469 = vld [vmem:[%s677 + $0x78] sm:$0xff]
        %v2470 = vld [vmem:[%s677 + $0x80] sm:$0xf]
        %v2471 = vld [vmem:[%s677 + $0x84] sm:$0xff]
        %v2472 = vld [vmem:[%s677 + $0x8c] sm:$0xf]
        %v2473 = vld [vmem:[%s677 + $0x90] sm:$0xff]
        %v2474 = vld [vmem:[%s677 + $0x98] sm:$0xf]
        %v2475 = vld [vmem:[%s677 + $0x9c] sm:$0xff]
        %v2476 = vld [vmem:[%s677 + $0xa4] sm:$0xf]
        %v2477 = vld [vmem:[%s677 + $0xa8] sm:$0xff]
        %v2478 = vld [vmem:[%s677 + $0xb0] sm:$0xf]
        %v2479 = vld [vmem:[%s677 + $0xb4] sm:$0xff]
        %v2480 = vld [vmem:[%s677 + $0xbc] sm:$0xf]
        %v2481 = vld [vmem:[%s677 + $0xc0] sm:$0xff]
        %v2482 = vld [vmem:[%s677 + $0xc8] sm:$0xf]
        %v2483 = vld [vmem:[%s677 + $0xcc] sm:$0xff]
        %v2484 = vld [vmem:[%s677 + $0xd4] sm:$0xf]
        %v2485 = vld [vmem:[%s677 + $0xd8] sm:$0xff]
        %v2486 = vld [vmem:[%s677 + $0xe0] sm:$0xf]
        %v2487 = vld [vmem:[%s677 + $0xe4] sm:$0xff]
        %v2488 = vld [vmem:[%s677 + $0xec] sm:$0xf]
        %v2489 = vld [vmem:[%s677 + $0xf0] sm:$0xff]
        %v2490 = vld [vmem:[%s677 + $0xf8] sm:$0xf]
        %v2491 = vld [vmem:[%s677 + $0xfc] sm:$0xff]
        %v2492 = vld [vmem:[%s677 + $0x104] sm:$0xf]
        %v2493 = vld [vmem:[%s677 + $0x108] sm:$0xff]
        %v2494 = vld [vmem:[%s677 + $0x110] sm:$0xf]
        %v2495 = vld [vmem:[%s677 + $0x114] sm:$0xff]
        %v2496 = vld [vmem:[%s677 + $0x11c] sm:$0xf]
        %v2497 = vld [vmem:[%s677 + $0x120] sm:$0xff]
        %v2498 = vld [vmem:[%s677 + $0x128] sm:$0xf]
        %v2499 = vld [vmem:[%s677 + $0x12c] sm:$0xff]
        %v2500 = vld [vmem:[%s677 + $0x134] sm:$0xf]
        %v2501 = vld [vmem:[%s677 + $0x138] sm:$0xff]
        %v2502 = vld [vmem:[%s677 + $0x140] sm:$0xf]
        %v2503 = vld [vmem:[%s677 + $0x144] sm:$0xff]
        %v2504 = vld [vmem:[%s677 + $0x14c] sm:$0xf]
        %v2505 = vld [vmem:[%s677 + $0x150] sm:$0xff]
        %v2506 = vld [vmem:[%s677 + $0x158] sm:$0xf]
        %v2507 = vld [vmem:[%s677 + $0x15c] sm:$0xff]
        %v2508 = vld [vmem:[%s677 + $0x164] sm:$0xf]
        %v2509 = vld [vmem:[%s677 + $0x168] sm:$0xff]
        %v2510 = vld [vmem:[%s677 + $0x170] sm:$0xf]
        %v2511 = vld [vmem:[%s677 + $0x174] sm:$0xff]
        %v2512 = vld [vmem:[%s677 + $0x17c] sm:$0xf]
        %v2513 = vld [vmem:[%s677 + $0x180] sm:$0xff]
        %v2514 = vld [vmem:[%s677 + $0x188] sm:$0xf]
        %v2515 = vld [vmem:[%s677 + $0x18c] sm:$0xff]
        %v2516 = vld [vmem:[%s677 + $0x194] sm:$0xf]
        %v2517 = vld [vmem:[%s677 + $0x198] sm:$0xff]
        %v2518 = vld [vmem:[%s677 + $0x1a0] sm:$0xf]
        %v2519 = vld [vmem:[%s677 + $0x1a4] sm:$0xff]
        %v2520 = vld [vmem:[%s677 + $0x1ac] sm:$0xf]
        %v2521 = vld [vmem:[%s677 + $0x1b0] sm:$0xff]
        %v2522 = vld [vmem:[%s677 + $0x1b8] sm:$0xf]
        %v2523 = vld [vmem:[%s677 + $0x1bc] sm:$0xff]
        %v2524 = vld [vmem:[%s677 + $0x1c4] sm:$0xf]
        %v2525 = vld [vmem:[%s677 + $0x1c8] sm:$0xff]
        %v2526 = vld [vmem:[%s677 + $0x1d0] sm:$0xf]
        %v2527 = vld [vmem:[%s677 + $0x1d4] sm:$0xff]
        %v2528 = vld [vmem:[%s677 + $0x1dc] sm:$0xf]
        %v2529 = vld [vmem:[%s677 + $0x1e0] sm:$0xff]
        %v2530 = vld [vmem:[%s677 + $0x1e8] sm:$0xf]
        %v2531 = vld [vmem:[%s677 + $0x1ec] sm:$0xff]
        %v2532 = vld [vmem:[%s677 + $0x1f4] sm:$0xf]
        %v2533 = vld [vmem:[%s677 + $0x1f8] sm:$0xff]
        %v2534 = vld [vmem:[%s677 + $0x200] sm:$0xf]
        %v2535 = vld [vmem:[%s677 + $0x204] sm:$0xff]
        %v2536 = vld [vmem:[%s677 + $0x20c] sm:$0xf]
        %v2537 = vld [vmem:[%s677 + $0x210] sm:$0xff]
        %v2538 = vld [vmem:[%s677 + $0x218] sm:$0xf]
        %v2539 = vld [vmem:[%s677 + $0x21c] sm:$0xff]
        %v2540 = vld [vmem:[%s677 + $0x224] sm:$0xf]
        %v2541 = vld [vmem:[%s677 + $0x228] sm:$0xff]
        %v2542 = vld [vmem:[%s677 + $0x230] sm:$0xf]
        %v2543 = vld [vmem:[%s677 + $0x234] sm:$0xff]
        %v2544 = vld [vmem:[%s677 + $0x23c] sm:$0xf]
        %v2545 = vld [vmem:[%s677 + $0x240] sm:$0xff]
        %v2546 = vld [vmem:[%s677 + $0x248] sm:$0xf]
        %v2547 = vld [vmem:[%s677 + $0x24c] sm:$0xff]
        %v2548 = vld [vmem:[%s677 + $0x254] sm:$0xf]
        %v2549 = vld [vmem:[%s677 + $0x258] sm:$0xff]
        %v2550 = vld [vmem:[%s677 + $0x260] sm:$0xf]
        %v2551 = vld [vmem:[%s677 + $0x264] sm:$0xff]
        %v2552 = vld [vmem:[%s677 + $0x26c] sm:$0xf]
        %v2553 = vld [vmem:[%s677 + $0x270] sm:$0xff]
        %v2554 = vld [vmem:[%s677 + $0x278] sm:$0xf]
        %v2555 = vld [vmem:[%s677 + $0x27c] sm:$0xff]
        %v2556 = vld [vmem:[%s677 + $0x284] sm:$0xf]
        %v2557 = vld [vmem:[%s677 + $0x288] sm:$0xff]
        %v2558 = vld [vmem:[%s677 + $0x290] sm:$0xf]
        %v2559 = vld [vmem:[%s677 + $0x294] sm:$0xff]
        %v2560 = vld [vmem:[%s677 + $0x29c] sm:$0xf]
        %v2561 = vld [vmem:[%s677 + $0x2a0] sm:$0xff]
        %v2562 = vld [vmem:[%s677 + $0x2a8] sm:$0xf]
        %v2563 = vld [vmem:[%s677 + $0x2ac] sm:$0xff]
        %v2564 = vld [vmem:[%s677 + $0x2b4] sm:$0xf]
        %v2565 = vld [vmem:[%s677 + $0x2b8] sm:$0xff]
        %v2566 = vld [vmem:[%s677 + $0x2c0] sm:$0xf]
        %v2567 = vld [vmem:[%s677 + $0x2c4] sm:$0xff]
        %v2568 = vld [vmem:[%s677 + $0x2cc] sm:$0xf]
        %v2569 = vld [vmem:[%s677 + $0x2d0] sm:$0xff]
        %v2570 = vld [vmem:[%s677 + $0x2d8] sm:$0xf]
        %v2571 = vld [vmem:[%s677 + $0x2dc] sm:$0xff]
        %v2572 = vld [vmem:[%s677 + $0x2e4] sm:$0xf]
        %v2573 = vld [vmem:[%s677 + $0x2e8] sm:$0xff]
        %v2574 = vld [vmem:[%s677 + $0x2f0] sm:$0xf]
        %v2575 = vld [vmem:[%s677 + $0x2f4] sm:$0xff]
        %v2576 = vld [vmem:[%s677 + $0x2fc] sm:$0xf]
        %v2577 = vld [vmem:[%s687] sm:$0x7]
        %v2578 = vld [vmem:[%s687 + $0x3] sm:$0x7]
        %v2579 = vld [vmem:[%s687 + $0x6] sm:$0x7]
        %v2580 = vld [vmem:[%s687 + $0x9] sm:$0x7]
        %v2585 = vperm.slane %v2577, 0
        %v2586 = vperm.slane %v2577, 1
        %v2587 = vperm.slane %v2577, 2
        %v2588 = vperm.slane %v2578, 0
        %v2589 = vperm.slane %v2578, 1
        %v2590 = vperm.slane %v2578, 2
        %v2591 = vperm.slane %v2579, 0
        %v2592 = vperm.slane %v2579, 1
        %v2593 = vperm.slane %v2579, 2
        %v2594 = vperm.slane %v2580, 0
        %v2595 = vperm.slane %v2580, 1
        %v2596 = vperm.slane %v2580, 2
        %v2641 = vunpack.c.l.b16 %v2449
        %v2642 = vunpack.c.h.b16 %v2449
        %v2643 = vunpack.c.l.b16 %v2450
        %v2644 = vunpack.c.l.b16 %v2451
        %v2645 = vunpack.c.h.b16 %v2451
        %v2646 = vunpack.c.l.b16 %v2452
        %v2647 = vunpack.c.l.b16 %v2453
        %v2648 = vunpack.c.h.b16 %v2453
        %v2649 = vunpack.c.l.b16 %v2454
        %v2650 = vunpack.c.l.b16 %v2455
        %v2651 = vunpack.c.h.b16 %v2455
        %v2652 = vunpack.c.l.b16 %v2456
        %v2653 = vunpack.c.l.b16 %v2457
        %v2654 = vunpack.c.h.b16 %v2457
        %v2655 = vunpack.c.l.b16 %v2458
        %v2656 = vunpack.c.l.b16 %v2459
        %v2657 = vunpack.c.h.b16 %v2459
        %v2658 = vunpack.c.l.b16 %v2460
        %v2659 = vunpack.c.l.b16 %v2461
        %v2660 = vunpack.c.h.b16 %v2461
        %v2661 = vunpack.c.l.b16 %v2462
        %v2662 = vunpack.c.l.b16 %v2463
        %v2663 = vunpack.c.h.b16 %v2463
        %v2664 = vunpack.c.l.b16 %v2464
        %v2665 = vunpack.c.l.b16 %v2465
        %v2666 = vunpack.c.h.b16 %v2465
        %v2667 = vunpack.c.l.b16 %v2466
        %v2668 = vunpack.c.l.b16 %v2467
        %v2669 = vunpack.c.h.b16 %v2467
        %v2670 = vunpack.c.l.b16 %v2468
        %v2671 = vunpack.c.l.b16 %v2469
        %v2672 = vunpack.c.h.b16 %v2469
        %v2673 = vunpack.c.l.b16 %v2470
        %v2674 = vunpack.c.l.b16 %v2471
        %v2675 = vunpack.c.h.b16 %v2471
        %v2676 = vunpack.c.l.b16 %v2472
        %v2677 = vunpack.c.l.b16 %v2473
        %v2678 = vunpack.c.h.b16 %v2473
        %v2679 = vunpack.c.l.b16 %v2474
        %v2680 = vunpack.c.l.b16 %v2475
        %v2681 = vunpack.c.h.b16 %v2475
        %v2682 = vunpack.c.l.b16 %v2476
        %v2683 = vunpack.c.l.b16 %v2477
        %v2684 = vunpack.c.h.b16 %v2477
        %v2685 = vunpack.c.l.b16 %v2478
        %v2686 = vunpack.c.l.b16 %v2479
        %v2687 = vunpack.c.h.b16 %v2479
        %v2688 = vunpack.c.l.b16 %v2480
        %v2689 = vpack.c.b16 %v2644, %v2641
        %v2690 = vpack.c.b16 %v2645, %v2642
        %v2691 = vpack.c.b16 %v2646, %v2643
        %v2692 = vpack.c.b16 %v2650, %v2647
        %v2693 = vpack.c.b16 %v2651, %v2648
        %v2694 = vpack.c.b16 %v2652, %v2649
        %v2695 = vpack.c.b16 %v2656, %v2653
        %v2696 = vpack.c.b16 %v2657, %v2654
        %v2697 = vpack.c.b16 %v2658, %v2655
        %v2698 = vpack.c.b16 %v2662, %v2659
        %v2699 = vpack.c.b16 %v2663, %v2660
        %v2700 = vpack.c.b16 %v2664, %v2661
        %v2701 = vpack.c.b16 %v2668, %v2665
        %v2702 = vpack.c.b16 %v2669, %v2666
        %v2703 = vpack.c.b16 %v2670, %v2667
        %v2704 = vpack.c.b16 %v2674, %v2671
        %v2705 = vpack.c.b16 %v2675, %v2672
        %v2706 = vpack.c.b16 %v2676, %v2673
        %v2707 = vpack.c.b16 %v2680, %v2677
        %v2708 = vpack.c.b16 %v2681, %v2678
        %v2709 = vpack.c.b16 %v2682, %v2679
        %v2710 = vpack.c.b16 %v2686, %v2683
        %v2711 = vpack.c.b16 %v2687, %v2684
        %v2712 = vpack.c.b16 %v2688, %v2685
        %2737 = vmatpush.bf16.msra.mxu0 %v2710
        %2738 = vmatpush.bf16.msra.mxu0 %v2707
        %2739 = vmatpush.bf16.msra.mxu0 %v2704
        %2740 = vmatpush.bf16.msra.mxu0 %v2701
        %2741 = vmatpush.bf16.msra.mxu0 %v2698
        %2742 = vmatpush.bf16.msra.mxu0 %v2695
        %2743 = vmatpush.bf16.msra.mxu0 %v2692
        %2744 = vmatpush.bf16.msra.mxu0 %v2689
        %2745 = vmatmul.bf16.gmra.mxu0 %v2448
        %v2746 = vpop.f32.mrf.mxu0
        %v2747 = vadd.f32 %v2585, %v2746
        %v2748 = vpop.f32.mrf.mxu0
        %2749 = vdwg.mxu0
        %2750 = vmatpush.bf16.msra.mxu0 %v2711
        %2751 = vmatpush.bf16.msra.mxu0 %v2708
        %2752 = vmatpush.bf16.msra.mxu0 %v2705
        %2753 = vmatpush.bf16.msra.mxu0 %v2702
        %2754 = vmatpush.bf16.msra.mxu0 %v2699
        %2755 = vmatpush.bf16.msra.mxu0 %v2696
        %2756 = vmatpush.bf16.msra.mxu0 %v2693
        %2757 = vmatpush.bf16.msra.mxu0 %v2690
        %2758 = vmatmul.bf16.gmra.mxu0 %v2448
        %v2759 = vpop.f32.mrf.mxu0
        %v2760 = vadd.f32 %v2586, %v2759
        %v2761 = vpop.f32.mrf.mxu0
        %2762 = vdwg.mxu0
        %2763 = vmatpush.bf16.msra.mxu0 %v2712
        %2764 = vmatpush.bf16.msra.mxu0 %v2709
        %2765 = vmatpush.bf16.msra.mxu0 %v2706
        %2766 = vmatpush.bf16.msra.mxu0 %v2703
        %2767 = vmatpush.bf16.msra.mxu0 %v2700
        %2768 = vmatpush.bf16.msra.mxu0 %v2697
        %2769 = vmatpush.bf16.msra.mxu0 %v2694
        %2770 = vmatpush.bf16.msra.mxu0 %v2691
        %2771 = vmatmul.bf16.gmra.mxu0 %v2448
        %v2772 = vpop.f32.mrf.mxu0
        %v2773 = vadd.f32 %v2587, %v2772
        %v2774 = vpop.f32.mrf.mxu0
        %2775 = vdwg.mxu0
        %v2808 = vunpack.c.l.b16 %v2481
        %v2809 = vunpack.c.h.b16 %v2481
        %v2810 = vunpack.c.l.b16 %v2482
        %v2811 = vunpack.c.l.b16 %v2483
        %v2812 = vunpack.c.h.b16 %v2483
        %v2813 = vunpack.c.l.b16 %v2484
        %v2814 = vunpack.c.l.b16 %v2485
        %v2815 = vunpack.c.h.b16 %v2485
        %v2816 = vunpack.c.l.b16 %v2486
        %v2817 = vunpack.c.l.b16 %v2487
        %v2818 = vunpack.c.h.b16 %v2487
        %v2819 = vunpack.c.l.b16 %v2488
        %v2820 = vunpack.c.l.b16 %v2489
        %v2821 = vunpack.c.h.b16 %v2489
        %v2822 = vunpack.c.l.b16 %v2490
        %v2823 = vunpack.c.l.b16 %v2491
        %v2824 = vunpack.c.h.b16 %v2491
        %v2825 = vunpack.c.l.b16 %v2492
        %v2826 = vunpack.c.l.b16 %v2493
        %v2827 = vunpack.c.h.b16 %v2493
        %v2828 = vunpack.c.l.b16 %v2494
        %v2829 = vunpack.c.l.b16 %v2495
        %v2830 = vunpack.c.h.b16 %v2495
        %v2831 = vunpack.c.l.b16 %v2496
        %v2832 = vunpack.c.l.b16 %v2497
        %v2833 = vunpack.c.h.b16 %v2497
        %v2834 = vunpack.c.l.b16 %v2498
        %v2835 = vunpack.c.l.b16 %v2499
        %v2836 = vunpack.c.h.b16 %v2499
        %v2837 = vunpack.c.l.b16 %v2500
        %v2838 = vunpack.c.l.b16 %v2501
        %v2839 = vunpack.c.h.b16 %v2501
        %v2840 = vunpack.c.l.b16 %v2502
        %v2841 = vunpack.c.l.b16 %v2503
        %v2842 = vunpack.c.h.b16 %v2503
        %v2843 = vunpack.c.l.b16 %v2504
        %v2844 = vunpack.c.l.b16 %v2505
        %v2845 = vunpack.c.h.b16 %v2505
        %v2846 = vunpack.c.l.b16 %v2506
        %v2847 = vunpack.c.l.b16 %v2507
        %v2848 = vunpack.c.h.b16 %v2507
        %v2849 = vunpack.c.l.b16 %v2508
        %v2850 = vunpack.c.l.b16 %v2509
        %v2851 = vunpack.c.h.b16 %v2509
        %v2852 = vunpack.c.l.b16 %v2510
        %v2853 = vunpack.c.l.b16 %v2511
        %v2854 = vunpack.c.h.b16 %v2511
        %v2855 = vunpack.c.l.b16 %v2512
        %v2856 = vpack.c.b16 %v2811, %v2808
        %v2857 = vpack.c.b16 %v2812, %v2809
        %v2858 = vpack.c.b16 %v2813, %v2810
        %v2859 = vpack.c.b16 %v2817, %v2814
        %v2860 = vpack.c.b16 %v2818, %v2815
        %v2861 = vpack.c.b16 %v2819, %v2816
        %v2862 = vpack.c.b16 %v2823, %v2820
        %v2863 = vpack.c.b16 %v2824, %v2821
        %v2864 = vpack.c.b16 %v2825, %v2822
        %v2865 = vpack.c.b16 %v2829, %v2826
        %v2866 = vpack.c.b16 %v2830, %v2827
        %v2867 = vpack.c.b16 %v2831, %v2828
        %v2868 = vpack.c.b16 %v2835, %v2832
        %v2869 = vpack.c.b16 %v2836, %v2833
        %v2870 = vpack.c.b16 %v2837, %v2834
        %v2871 = vpack.c.b16 %v2841, %v2838
        %v2872 = vpack.c.b16 %v2842, %v2839
        %v2873 = vpack.c.b16 %v2843, %v2840
        %v2874 = vpack.c.b16 %v2847, %v2844
        %v2875 = vpack.c.b16 %v2848, %v2845
        %v2876 = vpack.c.b16 %v2849, %v2846
        %v2877 = vpack.c.b16 %v2853, %v2850
        %v2878 = vpack.c.b16 %v2854, %v2851
        %v2879 = vpack.c.b16 %v2855, %v2852
        %2904 = vmatpush.bf16.msra.mxu0 %v2877
        %2905 = vmatpush.bf16.msra.mxu0 %v2874
        %2906 = vmatpush.bf16.msra.mxu0 %v2871
        %2907 = vmatpush.bf16.msra.mxu0 %v2868
        %2908 = vmatpush.bf16.msra.mxu0 %v2865
        %2909 = vmatpush.bf16.msra.mxu0 %v2862
        %2910 = vmatpush.bf16.msra.mxu0 %v2859
        %2911 = vmatpush.bf16.msra.mxu0 %v2856
        %2912 = vmatmul.bf16.gmra.mxu0 %v2448
        %v2913 = vpop.f32.mrf.mxu0
        %v2914 = vadd.f32 %v2588, %v2913
        %v2915 = vpop.f32.mrf.mxu0
        %2916 = vdwg.mxu0
        %2917 = vmatpush.bf16.msra.mxu0 %v2878
        %2918 = vmatpush.bf16.msra.mxu0 %v2875
        %2919 = vmatpush.bf16.msra.mxu0 %v2872
        %2920 = vmatpush.bf16.msra.mxu0 %v2869
        %2921 = vmatpush.bf16.msra.mxu0 %v2866
        %2922 = vmatpush.bf16.msra.mxu0 %v2863
        %2923 = vmatpush.bf16.msra.mxu0 %v2860
        %2924 = vmatpush.bf16.msra.mxu0 %v2857
        %2925 = vmatmul.bf16.gmra.mxu0 %v2448
        %v2926 = vpop.f32.mrf.mxu0
        %v2927 = vadd.f32 %v2589, %v2926
        %v2928 = vpop.f32.mrf.mxu0
        %2929 = vdwg.mxu0
        %2930 = vmatpush.bf16.msra.mxu0 %v2879
        %2931 = vmatpush.bf16.msra.mxu0 %v2876
        %2932 = vmatpush.bf16.msra.mxu0 %v2873
        %2933 = vmatpush.bf16.msra.mxu0 %v2870
        %2934 = vmatpush.bf16.msra.mxu0 %v2867
        %2935 = vmatpush.bf16.msra.mxu0 %v2864
        %2936 = vmatpush.bf16.msra.mxu0 %v2861
        %2937 = vmatpush.bf16.msra.mxu0 %v2858
        %2938 = vmatmul.bf16.gmra.mxu0 %v2448
        %v2939 = vpop.f32.mrf.mxu0
        %v2940 = vadd.f32 %v2590, %v2939
        %v2941 = vpop.f32.mrf.mxu0
        %2942 = vdwg.mxu0
        %v2975 = vunpack.c.l.b16 %v2513
        %v2976 = vunpack.c.h.b16 %v2513
        %v2977 = vunpack.c.l.b16 %v2514
        %v2978 = vunpack.c.l.b16 %v2515
        %v2979 = vunpack.c.h.b16 %v2515
        %v2980 = vunpack.c.l.b16 %v2516
        %v2981 = vunpack.c.l.b16 %v2517
        %v2982 = vunpack.c.h.b16 %v2517
        %v2983 = vunpack.c.l.b16 %v2518
        %v2984 = vunpack.c.l.b16 %v2519
        %v2985 = vunpack.c.h.b16 %v2519
        %v2986 = vunpack.c.l.b16 %v2520
        %v2987 = vunpack.c.l.b16 %v2521
        %v2988 = vunpack.c.h.b16 %v2521
        %v2989 = vunpack.c.l.b16 %v2522
        %v2990 = vunpack.c.l.b16 %v2523
        %v2991 = vunpack.c.h.b16 %v2523
        %v2992 = vunpack.c.l.b16 %v2524
        %v2993 = vunpack.c.l.b16 %v2525
        %v2994 = vunpack.c.h.b16 %v2525
        %v2995 = vunpack.c.l.b16 %v2526
        %v2996 = vunpack.c.l.b16 %v2527
        %v2997 = vunpack.c.h.b16 %v2527
        %v2998 = vunpack.c.l.b16 %v2528
        %v2999 = vunpack.c.l.b16 %v2529
        %v3000 = vunpack.c.h.b16 %v2529
        %v3001 = vunpack.c.l.b16 %v2530
        %v3002 = vunpack.c.l.b16 %v2531
        %v3003 = vunpack.c.h.b16 %v2531
        %v3004 = vunpack.c.l.b16 %v2532
        %v3005 = vunpack.c.l.b16 %v2533
        %v3006 = vunpack.c.h.b16 %v2533
        %v3007 = vunpack.c.l.b16 %v2534
        %v3008 = vunpack.c.l.b16 %v2535
        %v3009 = vunpack.c.h.b16 %v2535
        %v3010 = vunpack.c.l.b16 %v2536
        %v3011 = vunpack.c.l.b16 %v2537
        %v3012 = vunpack.c.h.b16 %v2537
        %v3013 = vunpack.c.l.b16 %v2538
        %v3014 = vunpack.c.l.b16 %v2539
        %v3015 = vunpack.c.h.b16 %v2539
        %v3016 = vunpack.c.l.b16 %v2540
        %v3017 = vunpack.c.l.b16 %v2541
        %v3018 = vunpack.c.h.b16 %v2541
        %v3019 = vunpack.c.l.b16 %v2542
        %v3020 = vunpack.c.l.b16 %v2543
        %v3021 = vunpack.c.h.b16 %v2543
        %v3022 = vunpack.c.l.b16 %v2544
        %v3023 = vpack.c.b16 %v2978, %v2975
        %v3024 = vpack.c.b16 %v2979, %v2976
        %v3025 = vpack.c.b16 %v2980, %v2977
        %v3026 = vpack.c.b16 %v2984, %v2981
        %v3027 = vpack.c.b16 %v2985, %v2982
        %v3028 = vpack.c.b16 %v2986, %v2983
        %v3029 = vpack.c.b16 %v2990, %v2987
        %v3030 = vpack.c.b16 %v2991, %v2988
        %v3031 = vpack.c.b16 %v2992, %v2989
        %v3032 = vpack.c.b16 %v2996, %v2993
        %v3033 = vpack.c.b16 %v2997, %v2994
        %v3034 = vpack.c.b16 %v2998, %v2995
        %v3035 = vpack.c.b16 %v3002, %v2999
        %v3036 = vpack.c.b16 %v3003, %v3000
        %v3037 = vpack.c.b16 %v3004, %v3001
        %v3038 = vpack.c.b16 %v3008, %v3005
        %v3039 = vpack.c.b16 %v3009, %v3006
        %v3040 = vpack.c.b16 %v3010, %v3007
        %v3041 = vpack.c.b16 %v3014, %v3011
        %v3042 = vpack.c.b16 %v3015, %v3012
        %v3043 = vpack.c.b16 %v3016, %v3013
        %v3044 = vpack.c.b16 %v3020, %v3017
        %v3045 = vpack.c.b16 %v3021, %v3018
        %v3046 = vpack.c.b16 %v3022, %v3019
        %3071 = vmatpush.bf16.msra.mxu0 %v3044
        %3072 = vmatpush.bf16.msra.mxu0 %v3041
        %3073 = vmatpush.bf16.msra.mxu0 %v3038
        %3074 = vmatpush.bf16.msra.mxu0 %v3035
        %3075 = vmatpush.bf16.msra.mxu0 %v3032
        %3076 = vmatpush.bf16.msra.mxu0 %v3029
        %3077 = vmatpush.bf16.msra.mxu0 %v3026
        %3078 = vmatpush.bf16.msra.mxu0 %v3023
        %3079 = vmatmul.bf16.gmra.mxu0 %v2448
        %v3080 = vpop.f32.mrf.mxu0
        %v3081 = vadd.f32 %v2591, %v3080
        %v3082 = vpop.f32.mrf.mxu0
        %3083 = vdwg.mxu0
        %3084 = vmatpush.bf16.msra.mxu0 %v3045
        %3085 = vmatpush.bf16.msra.mxu0 %v3042
        %3086 = vmatpush.bf16.msra.mxu0 %v3039
        %3087 = vmatpush.bf16.msra.mxu0 %v3036
        %3088 = vmatpush.bf16.msra.mxu0 %v3033
        %3089 = vmatpush.bf16.msra.mxu0 %v3030
        %3090 = vmatpush.bf16.msra.mxu0 %v3027
        %3091 = vmatpush.bf16.msra.mxu0 %v3024
        %3092 = vmatmul.bf16.gmra.mxu0 %v2448
        %v3093 = vpop.f32.mrf.mxu0
        %v3094 = vadd.f32 %v2592, %v3093
        %v3095 = vpop.f32.mrf.mxu0
        %3096 = vdwg.mxu0
        %3097 = vmatpush.bf16.msra.mxu0 %v3046
        %3098 = vmatpush.bf16.msra.mxu0 %v3043
        %3099 = vmatpush.bf16.msra.mxu0 %v3040
        %3100 = vmatpush.bf16.msra.mxu0 %v3037
        %3101 = vmatpush.bf16.msra.mxu0 %v3034
        %3102 = vmatpush.bf16.msra.mxu0 %v3031
        %3103 = vmatpush.bf16.msra.mxu0 %v3028
        %3104 = vmatpush.bf16.msra.mxu0 %v3025
        %3105 = vmatmul.bf16.gmra.mxu0 %v2448
        %v3106 = vpop.f32.mrf.mxu0
        %v3107 = vadd.f32 %v2593, %v3106
        %v3108 = vpop.f32.mrf.mxu0
        %3109 = vdwg.mxu0
        %v3142 = vunpack.c.l.b16 %v2545
        %v3143 = vunpack.c.h.b16 %v2545
        %v3144 = vunpack.c.l.b16 %v2546
        %v3145 = vunpack.c.l.b16 %v2547
        %v3146 = vunpack.c.h.b16 %v2547
        %v3147 = vunpack.c.l.b16 %v2548
        %v3148 = vunpack.c.l.b16 %v2549
        %v3149 = vunpack.c.h.b16 %v2549
        %v3150 = vunpack.c.l.b16 %v2550
        %v3151 = vunpack.c.l.b16 %v2551
        %v3152 = vunpack.c.h.b16 %v2551
        %v3153 = vunpack.c.l.b16 %v2552
        %v3154 = vunpack.c.l.b16 %v2553
        %v3155 = vunpack.c.h.b16 %v2553
        %v3156 = vunpack.c.l.b16 %v2554
        %v3157 = vunpack.c.l.b16 %v2555
        %v3158 = vunpack.c.h.b16 %v2555
        %v3159 = vunpack.c.l.b16 %v2556
        %v3160 = vunpack.c.l.b16 %v2557
        %v3161 = vunpack.c.h.b16 %v2557
        %v3162 = vunpack.c.l.b16 %v2558
        %v3163 = vunpack.c.l.b16 %v2559
        %v3164 = vunpack.c.h.b16 %v2559
        %v3165 = vunpack.c.l.b16 %v2560
        %v3166 = vunpack.c.l.b16 %v2561
        %v3167 = vunpack.c.h.b16 %v2561
        %v3168 = vunpack.c.l.b16 %v2562
        %v3169 = vunpack.c.l.b16 %v2563
        %v3170 = vunpack.c.h.b16 %v2563
        %v3171 = vunpack.c.l.b16 %v2564
        %v3172 = vunpack.c.l.b16 %v2565
        %v3173 = vunpack.c.h.b16 %v2565
        %v3174 = vunpack.c.l.b16 %v2566
        %v3175 = vunpack.c.l.b16 %v2567
        %v3176 = vunpack.c.h.b16 %v2567
        %v3177 = vunpack.c.l.b16 %v2568
        %v3178 = vunpack.c.l.b16 %v2569
        %v3179 = vunpack.c.h.b16 %v2569
        %v3180 = vunpack.c.l.b16 %v2570
        %v3181 = vunpack.c.l.b16 %v2571
        %v3182 = vunpack.c.h.b16 %v2571
        %v3183 = vunpack.c.l.b16 %v2572
        %v3184 = vunpack.c.l.b16 %v2573
        %v3185 = vunpack.c.h.b16 %v2573
        %v3186 = vunpack.c.l.b16 %v2574
        %v3187 = vunpack.c.l.b16 %v2575
        %v3188 = vunpack.c.h.b16 %v2575
        %v3189 = vunpack.c.l.b16 %v2576
        %v3190 = vpack.c.b16 %v3145, %v3142
        %v3191 = vpack.c.b16 %v3146, %v3143
        %v3192 = vpack.c.b16 %v3147, %v3144
        %v3193 = vpack.c.b16 %v3151, %v3148
        %v3194 = vpack.c.b16 %v3152, %v3149
        %v3195 = vpack.c.b16 %v3153, %v3150
        %v3196 = vpack.c.b16 %v3157, %v3154
        %v3197 = vpack.c.b16 %v3158, %v3155
        %v3198 = vpack.c.b16 %v3159, %v3156
        %v3199 = vpack.c.b16 %v3163, %v3160
        %v3200 = vpack.c.b16 %v3164, %v3161
        %v3201 = vpack.c.b16 %v3165, %v3162
        %v3202 = vpack.c.b16 %v3169, %v3166
        %v3203 = vpack.c.b16 %v3170, %v3167
        %v3204 = vpack.c.b16 %v3171, %v3168
        %v3205 = vpack.c.b16 %v3175, %v3172
        %v3206 = vpack.c.b16 %v3176, %v3173
        %v3207 = vpack.c.b16 %v3177, %v3174
        %v3208 = vpack.c.b16 %v3181, %v3178
        %v3209 = vpack.c.b16 %v3182, %v3179
        %v3210 = vpack.c.b16 %v3183, %v3180
        %v3211 = vpack.c.b16 %v3187, %v3184
        %v3212 = vpack.c.b16 %v3188, %v3185
        %v3213 = vpack.c.b16 %v3189, %v3186
        %3238 = vmatpush.bf16.msra.mxu0 %v3211
        %3239 = vmatpush.bf16.msra.mxu0 %v3208
        %3240 = vmatpush.bf16.msra.mxu0 %v3205
        %3241 = vmatpush.bf16.msra.mxu0 %v3202
        %3242 = vmatpush.bf16.msra.mxu0 %v3199
        %3243 = vmatpush.bf16.msra.mxu0 %v3196
        %3244 = vmatpush.bf16.msra.mxu0 %v3193
        %3245 = vmatpush.bf16.msra.mxu0 %v3190
        %3246 = vmatmul.bf16.gmra.mxu0 %v2448
        %v3247 = vpop.f32.mrf.mxu0
        %v3248 = vadd.f32 %v2594, %v3247
        %v3249 = vpop.f32.mrf.mxu0
        %3250 = vdwg.mxu0
        %3251 = vmatpush.bf16.msra.mxu0 %v3212
        %3252 = vmatpush.bf16.msra.mxu0 %v3209
        %3253 = vmatpush.bf16.msra.mxu0 %v3206
        %3254 = vmatpush.bf16.msra.mxu0 %v3203
        %3255 = vmatpush.bf16.msra.mxu0 %v3200
        %3256 = vmatpush.bf16.msra.mxu0 %v3197
        %3257 = vmatpush.bf16.msra.mxu0 %v3194
        %3258 = vmatpush.bf16.msra.mxu0 %v3191
        %3259 = vmatmul.bf16.gmra.mxu0 %v2448
        %v3260 = vpop.f32.mrf.mxu0
        %v3261 = vadd.f32 %v2595, %v3260
        %v3262 = vpop.f32.mrf.mxu0
        %3263 = vdwg.mxu0
        %3264 = vmatpush.bf16.msra.mxu0 %v3213
        %3265 = vmatpush.bf16.msra.mxu0 %v3210
        %3266 = vmatpush.bf16.msra.mxu0 %v3207
        %3267 = vmatpush.bf16.msra.mxu0 %v3204
        %3268 = vmatpush.bf16.msra.mxu0 %v3201
        %3269 = vmatpush.bf16.msra.mxu0 %v3198
        %3270 = vmatpush.bf16.msra.mxu0 %v3195
        %3271 = vmatpush.bf16.msra.mxu0 %v3192
        %3272 = vmatmul.bf16.gmra.mxu0 %v2448
        %v3273 = vpop.f32.mrf.mxu0
        %v3274 = vadd.f32 %v2596, %v3273
        %v3275 = vpop.f32.mrf.mxu0
        %3276 = vdwg.mxu0
        %v3277 = vpack.c.bf16 %v2747, %v2747
        %v3278 = vpack.c.bf16 %v2914, %v2914
        %v3279 = vpack.c.bf16 %v3081, %v3081
        %v3280 = vpack.c.bf16 %v3248, %v3248
        %v3281 = vpack.c.bf16 %v2760, %v2760
        %v3282 = vpack.c.bf16 %v2927, %v2927
        %v3283 = vpack.c.bf16 %v3094, %v3094
        %v3284 = vpack.c.bf16 %v3261, %v3261
        %v3285 = vpack.c.bf16 %v2773, %v2773
        %v3286 = vpack.c.bf16 %v2940, %v2940
        %v3287 = vpack.c.bf16 %v3107, %v3107
        %v3288 = vpack.c.bf16 %v3274, %v3274
        %3289 = vmatpush.bf16.xpose.msra.mxu0 0
        %3290 = vmatpush.bf16.xpose.msra.mxu0 0
        %3291 = vmatpush.bf16.xpose.msra.mxu0 0
        %3292 = vmatpush.bf16.xpose.msra.mxu0 0
        %3293 = vmatpush.bf16.xpose.msra.mxu0 0
        %3294 = vmatpush.bf16.xpose.msra.mxu0 0
        %3295 = vmatpush.bf16.xpose.msra.mxu0 0
        %3296 = vmatpush.bf16.xpose.msra.mxu0 %v3281
        %3297 = vmatmul.bf16.gmra.mxu0 %v3277
        %v3298 = vpop.f32.mrf.mxu0
        %v3299 = vadd.f32 0.0, %v3298
        %v3300 = vpop.f32.mrf.mxu0
        %3301 = vdwg.mxu0
        %3302 = vmatpush.bf16.xpose.msra.mxu0 0
        %3303 = vmatpush.bf16.xpose.msra.mxu0 0
        %3304 = vmatpush.bf16.xpose.msra.mxu0 0
        %3305 = vmatpush.bf16.xpose.msra.mxu0 0
        %3306 = vmatpush.bf16.xpose.msra.mxu0 0
        %3307 = vmatpush.bf16.xpose.msra.mxu0 0
        %3308 = vmatpush.bf16.xpose.msra.mxu0 0
        %3309 = vmatpush.bf16.xpose.msra.mxu0 %v3282
        %3310 = vmatmul.bf16.gmra.mxu0 %v3278
        %v3311 = vpop.f32.mrf.mxu0
        %v3312 = vadd.f32 0.0, %v3311
        %v3313 = vpop.f32.mrf.mxu0
        %3314 = vdwg.mxu0
        %3315 = vmatpush.bf16.xpose.msra.mxu0 0
        %3316 = vmatpush.bf16.xpose.msra.mxu0 0
        %3317 = vmatpush.bf16.xpose.msra.mxu0 0
        %3318 = vmatpush.bf16.xpose.msra.mxu0 0
        %3319 = vmatpush.bf16.xpose.msra.mxu0 0
        %3320 = vmatpush.bf16.xpose.msra.mxu0 0
        %3321 = vmatpush.bf16.xpose.msra.mxu0 0
        %3322 = vmatpush.bf16.xpose.msra.mxu0 %v3283
        %3323 = vmatmul.bf16.gmra.mxu0 %v3279
        %v3324 = vpop.f32.mrf.mxu0
        %v3325 = vadd.f32 0.0, %v3324
        %v3326 = vpop.f32.mrf.mxu0
        %3327 = vdwg.mxu0
        %3328 = vmatpush.bf16.xpose.msra.mxu0 0
        %3329 = vmatpush.bf16.xpose.msra.mxu0 0
        %3330 = vmatpush.bf16.xpose.msra.mxu0 0
        %3331 = vmatpush.bf16.xpose.msra.mxu0 0
        %3332 = vmatpush.bf16.xpose.msra.mxu0 0
        %3333 = vmatpush.bf16.xpose.msra.mxu0 0
        %3334 = vmatpush.bf16.xpose.msra.mxu0 0
        %3335 = vmatpush.bf16.xpose.msra.mxu0 %v3284
        %3336 = vmatmul.bf16.gmra.mxu0 %v3280
        %v3337 = vpop.f32.mrf.mxu0
        %v3338 = vadd.f32 0.0, %v3337
        %v3339 = vpop.f32.mrf.mxu0
        %3340 = vdwg.mxu0
        %v3341 = vsel %vm1760, %v3299, -1e+30
        %v3342 = vsel %vm1760, %v3312, -1e+30
        %v3343 = vsel %vm1760, %v3325, -1e+30
        %v3344 = vsel %vm1760, %v3338, -1e+30
        %v3345 = vsel %vm1765, %v3341, -inf
        %3346 = vmax.xlane.f32.xlu0 %v3345
        %v3347 = vpop.xlane.xlu0 %3346
        %v3348 = vsel %vm1765, %v3342, -inf
        %3349 = vmax.xlane.f32.xlu0 %v3348
        %v3350 = vpop.xlane.xlu0 %3349
        %v3351 = vsel %vm1765, %v3343, -inf
        %3352 = vmax.xlane.f32.xlu0 %v3351
        %v3353 = vpop.xlane.xlu0 %3352
        %v3354 = vsel %vm1765, %v3344, -inf
        %3355 = vmax.xlane.f32.xlu0 %v3354
        %v3356 = vpop.xlane.xlu0 %3355
        %v3357 = vsub.f32 %v3341, %v3347
        %v3358 = vsub.f32 %v3342, %v3350
        %v3359 = vsub.f32 %v3343, %v3353
        %v3360 = vsub.f32 %v3344, %v3356
        %v3361 = vmul.f32 %v3357, 1.442695
        %v3362 = vpow.pop %v3361
        %v3363 = vmul.f32 %v3358, 1.442695
        %v3364 = vpow.pop %v3363
        %v3365 = vmul.f32 %v3359, 1.442695
        %v3366 = vpow.pop %v3365
        %v3367 = vmul.f32 %v3360, 1.442695
        %v3368 = vpow.pop %v3367
        %v3369 = vsel %vm1765, %v3362, 0.0
        %3370 = vadd.xlane.f32.xlu0 %v3369
        %v3371 = vpop.xlane.xlu0 %3370
        %v3372 = vsel %vm1765, %v3364, 0.0
        %3373 = vadd.xlane.f32.xlu0 %v3372
        %v3374 = vpop.xlane.xlu0 %3373
        %v3375 = vsel %vm1765, %v3366, 0.0
        %3376 = vadd.xlane.f32.xlu0 %v3375
        %v3377 = vpop.xlane.xlu0 %3376
        %v3378 = vsel %vm1765, %v3368, 0.0
        %3379 = vadd.xlane.f32.xlu0 %v3378
        %v3380 = vpop.xlane.xlu0 %3379
        %v3381 = vrcp.pop %v3371
        %v3382 = vrcp.pop %v3374
        %v3383 = vrcp.pop %v3377
        %v3384 = vrcp.pop %v3380
        %v3385 = vmul.f32 %v3362, %v3381
        %v3386 = vmul.f32 %v3364, %v3382
        %v3387 = vmul.f32 %v3366, %v3383
        %v3388 = vmul.f32 %v3368, %v3384
        %v3389 = vpack.c.bf16 %v3385, %v3385
        %v3390 = vpack.c.bf16 %v3386, %v3386
        %v3391 = vpack.c.bf16 %v3387, %v3387
        %v3392 = vpack.c.bf16 %v3388, %v3388
        %v3394 = vsel %vm1765, %v3389, 0
        %v3397 = vsel %vm1817, %v3285, 0
        %3399 = vmatpush.bf16.msra.mxu0 0
        %3400 = vmatpush.bf16.msra.mxu0 0
        %3401 = vmatpush.bf16.msra.mxu0 0
        %3402 = vmatpush.bf16.msra.mxu0 0
        %3403 = vmatpush.bf16.msra.mxu0 0
        %3404 = vmatpush.bf16.msra.mxu0 0
        %3405 = vmatpush.bf16.msra.mxu0 0
        %3406 = vmatpush.bf16.msra.mxu0 %v3397
        %3407 = vmatmul.bf16.gmra.mxu0 %v3394
        %v3408 = vpop.f32.mrf.mxu0
        %v3409 = vadd.f32 0.0, %v3408
        %v3410 = vpop.f32.mrf.mxu0
        %3411 = vdwg.mxu0
        %v3413 = vsel %vm1765, %v3390, 0
        %v3416 = vsel %vm1817, %v3286, 0
        %3418 = vmatpush.bf16.msra.mxu0 0
        %3419 = vmatpush.bf16.msra.mxu0 0
        %3420 = vmatpush.bf16.msra.mxu0 0
        %3421 = vmatpush.bf16.msra.mxu0 0
        %3422 = vmatpush.bf16.msra.mxu0 0
        %3423 = vmatpush.bf16.msra.mxu0 0
        %3424 = vmatpush.bf16.msra.mxu0 0
        %3425 = vmatpush.bf16.msra.mxu0 %v3416
        %3426 = vmatmul.bf16.gmra.mxu0 %v3413
        %v3427 = vpop.f32.mrf.mxu0
        %v3428 = vadd.f32 0.0, %v3427
        %v3429 = vpop.f32.mrf.mxu0
        %3430 = vdwg.mxu0
        %v3432 = vsel %vm1765, %v3391, 0
        %v3435 = vsel %vm1817, %v3287, 0
        %3437 = vmatpush.bf16.msra.mxu0 0
        %3438 = vmatpush.bf16.msra.mxu0 0
        %3439 = vmatpush.bf16.msra.mxu0 0
        %3440 = vmatpush.bf16.msra.mxu0 0
        %3441 = vmatpush.bf16.msra.mxu0 0
        %3442 = vmatpush.bf16.msra.mxu0 0
        %3443 = vmatpush.bf16.msra.mxu0 0
        %3444 = vmatpush.bf16.msra.mxu0 %v3435
        %3445 = vmatmul.bf16.gmra.mxu0 %v3432
        %v3446 = vpop.f32.mrf.mxu0
        %v3447 = vadd.f32 0.0, %v3446
        %v3448 = vpop.f32.mrf.mxu0
        %3449 = vdwg.mxu0
        %v3451 = vsel %vm1765, %v3392, 0
        %v3454 = vsel %vm1817, %v3288, 0
        %3456 = vmatpush.bf16.msra.mxu0 0
        %3457 = vmatpush.bf16.msra.mxu0 0
        %3458 = vmatpush.bf16.msra.mxu0 0
        %3459 = vmatpush.bf16.msra.mxu0 0
        %3460 = vmatpush.bf16.msra.mxu0 0
        %3461 = vmatpush.bf16.msra.mxu0 0
        %3462 = vmatpush.bf16.msra.mxu0 0
        %3463 = vmatpush.bf16.msra.mxu0 %v3454
        %3464 = vmatmul.bf16.gmra.mxu0 %v3451
        %v3465 = vpop.f32.mrf.mxu0
        %v3466 = vadd.f32 0.0, %v3465
        %v3467 = vpop.f32.mrf.mxu0
        %3468 = vdwg.mxu0
        %v3469 = vpack.c.bf16 %v3409, %v3409
        %v3470 = vpack.c.bf16 %v3428, %v3428
        %v3471 = vpack.c.bf16 %v3447, %v3447
        %v3472 = vpack.c.bf16 %v3466, %v3466
        %v3473 = vld [vmem:[%s697] sm:$0xf]
        %v3474 = vld [vmem:[%s697 + $0x4] sm:$0xf]
        %v3475 = vld [vmem:[%s697 + $0x8] sm:$0xf]
        %v3476 = vld [vmem:[%s697 + $0xc] sm:$0xf]
        %v3477 = vld [vmem:[%s697 + $0x10] sm:$0xf]
        %v3478 = vld [vmem:[%s697 + $0x14] sm:$0xf]
        %v3479 = vld [vmem:[%s697 + $0x18] sm:$0xf]
        %v3480 = vld [vmem:[%s697 + $0x1c] sm:$0xf]
        %v3481 = vld [vmem:[%s697 + $0x20] sm:$0xf]
        %v3482 = vld [vmem:[%s697 + $0x24] sm:$0xf]
        %v3483 = vld [vmem:[%s697 + $0x28] sm:$0xf]
        %v3484 = vld [vmem:[%s697 + $0x2c] sm:$0xf]
        %v3485 = vld [vmem:[%s697 + $0x30] sm:$0xf]
        %v3486 = vld [vmem:[%s697 + $0x34] sm:$0xf]
        %v3487 = vld [vmem:[%s697 + $0x38] sm:$0xf]
        %v3488 = vld [vmem:[%s697 + $0x3c] sm:$0xf]
        %v3489 = vld [vmem:[%s697 + $0x40] sm:$0xf]
        %v3490 = vld [vmem:[%s697 + $0x44] sm:$0xf]
        %v3491 = vld [vmem:[%s697 + $0x48] sm:$0xf]
        %v3492 = vld [vmem:[%s697 + $0x4c] sm:$0xf]
        %v3493 = vld [vmem:[%s697 + $0x50] sm:$0xf]
        %v3494 = vld [vmem:[%s697 + $0x54] sm:$0xf]
        %v3495 = vld [vmem:[%s697 + $0x58] sm:$0xf]
        %v3496 = vld [vmem:[%s697 + $0x5c] sm:$0xf]
        %v3497 = vld [vmem:[%s697 + $0x60] sm:$0xf]
        %v3498 = vld [vmem:[%s697 + $0x64] sm:$0xf]
        %v3499 = vld [vmem:[%s697 + $0x68] sm:$0xf]
        %v3500 = vld [vmem:[%s697 + $0x6c] sm:$0xf]
        %v3501 = vld [vmem:[%s697 + $0x70] sm:$0xf]
        %v3502 = vld [vmem:[%s697 + $0x74] sm:$0xf]
        %v3503 = vld [vmem:[%s697 + $0x78] sm:$0xf]
        %v3504 = vld [vmem:[%s697 + $0x7c] sm:$0xf]
        %v3505 = vld [vmem:[%s697 + $0x80] sm:$0xf]
        %v3506 = vld [vmem:[%s697 + $0x84] sm:$0xf]
        %v3507 = vld [vmem:[%s697 + $0x88] sm:$0xf]
        %v3508 = vld [vmem:[%s697 + $0x8c] sm:$0xf]
        %v3509 = vld [vmem:[%s697 + $0x90] sm:$0xf]
        %v3510 = vld [vmem:[%s697 + $0x94] sm:$0xf]
        %v3511 = vld [vmem:[%s697 + $0x98] sm:$0xf]
        %v3512 = vld [vmem:[%s697 + $0x9c] sm:$0xf]
        %v3513 = vld [vmem:[%s697 + $0xa0] sm:$0xf]
        %v3514 = vld [vmem:[%s697 + $0xa4] sm:$0xf]
        %v3515 = vld [vmem:[%s697 + $0xa8] sm:$0xf]
        %v3516 = vld [vmem:[%s697 + $0xac] sm:$0xf]
        %v3517 = vld [vmem:[%s697 + $0xb0] sm:$0xf]
        %v3518 = vld [vmem:[%s697 + $0xb4] sm:$0xf]
        %v3519 = vld [vmem:[%s697 + $0xb8] sm:$0xf]
        %v3520 = vld [vmem:[%s697 + $0xbc] sm:$0xf]
        %v3521 = vld [vmem:[%s697 + $0xc0] sm:$0xf]
        %v3522 = vld [vmem:[%s697 + $0xc4] sm:$0xf]
        %v3523 = vld [vmem:[%s697 + $0xc8] sm:$0xf]
        %v3524 = vld [vmem:[%s697 + $0xcc] sm:$0xf]
        %v3525 = vld [vmem:[%s697 + $0xd0] sm:$0xf]
        %v3526 = vld [vmem:[%s697 + $0xd4] sm:$0xf]
        %v3527 = vld [vmem:[%s697 + $0xd8] sm:$0xf]
        %v3528 = vld [vmem:[%s697 + $0xdc] sm:$0xf]
        %v3529 = vld [vmem:[%s697 + $0xe0] sm:$0xf]
        %v3530 = vld [vmem:[%s697 + $0xe4] sm:$0xf]
        %v3531 = vld [vmem:[%s697 + $0xe8] sm:$0xf]
        %v3532 = vld [vmem:[%s697 + $0xec] sm:$0xf]
        %v3533 = vld [vmem:[%s697 + $0xf0] sm:$0xf]
        %v3534 = vld [vmem:[%s697 + $0xf4] sm:$0xf]
        %v3535 = vld [vmem:[%s697 + $0xf8] sm:$0xf]
        %v3536 = vld [vmem:[%s697 + $0xfc] sm:$0xf]
        %v3553 = vunpack.c.l.b16 %v3473
        %v3554 = vunpack.c.l.b16 %v3474
        %v3555 = vunpack.c.l.b16 %v3475
        %v3556 = vunpack.c.l.b16 %v3476
        %v3557 = vunpack.c.l.b16 %v3477
        %v3558 = vunpack.c.l.b16 %v3478
        %v3559 = vunpack.c.l.b16 %v3479
        %v3560 = vunpack.c.l.b16 %v3480
        %v3561 = vunpack.c.l.b16 %v3481
        %v3562 = vunpack.c.l.b16 %v3482
        %v3563 = vunpack.c.l.b16 %v3483
        %v3564 = vunpack.c.l.b16 %v3484
        %v3565 = vunpack.c.l.b16 %v3485
        %v3566 = vunpack.c.l.b16 %v3486
        %v3567 = vunpack.c.l.b16 %v3487
        %v3568 = vunpack.c.l.b16 %v3488
        %v3569 = vpack.c.b16 %v3554, %v3553
        %v3570 = vpack.c.b16 %v3556, %v3555
        %v3571 = vpack.c.b16 %v3558, %v3557
        %v3572 = vpack.c.b16 %v3560, %v3559
        %v3573 = vpack.c.b16 %v3562, %v3561
        %v3574 = vpack.c.b16 %v3564, %v3563
        %v3575 = vpack.c.b16 %v3566, %v3565
        %v3576 = vpack.c.b16 %v3568, %v3567
        %3585 = vmatpush.bf16.msra.mxu0 %v3576
        %3586 = vmatpush.bf16.msra.mxu0 %v3575
        %3587 = vmatpush.bf16.msra.mxu0 %v3574
        %3588 = vmatpush.bf16.msra.mxu0 %v3573
        %3589 = vmatpush.bf16.msra.mxu0 %v3572
        %3590 = vmatpush.bf16.msra.mxu0 %v3571
        %3591 = vmatpush.bf16.msra.mxu0 %v3570
        %3592 = vmatpush.bf16.msra.mxu0 %v3569
        %3593 = vmatmul.bf16.gmra.mxu0 %v3469
        %v3594 = vpop.f32.mrf.mxu0
        %v3595 = vadd.f32 0.0, %v3594
        %v3596 = vpop.f32.mrf.mxu0
        %3597 = vdwg.mxu0
        %v3614 = vunpack.c.l.b16 %v3489
        %v3615 = vunpack.c.l.b16 %v3490
        %v3616 = vunpack.c.l.b16 %v3491
        %v3617 = vunpack.c.l.b16 %v3492
        %v3618 = vunpack.c.l.b16 %v3493
        %v3619 = vunpack.c.l.b16 %v3494
        %v3620 = vunpack.c.l.b16 %v3495
        %v3621 = vunpack.c.l.b16 %v3496
        %v3622 = vunpack.c.l.b16 %v3497
        %v3623 = vunpack.c.l.b16 %v3498
        %v3624 = vunpack.c.l.b16 %v3499
        %v3625 = vunpack.c.l.b16 %v3500
        %v3626 = vunpack.c.l.b16 %v3501
        %v3627 = vunpack.c.l.b16 %v3502
        %v3628 = vunpack.c.l.b16 %v3503
        %v3629 = vunpack.c.l.b16 %v3504
        %v3630 = vpack.c.b16 %v3615, %v3614
        %v3631 = vpack.c.b16 %v3617, %v3616
        %v3632 = vpack.c.b16 %v3619, %v3618
        %v3633 = vpack.c.b16 %v3621, %v3620
        %v3634 = vpack.c.b16 %v3623, %v3622
        %v3635 = vpack.c.b16 %v3625, %v3624
        %v3636 = vpack.c.b16 %v3627, %v3626
        %v3637 = vpack.c.b16 %v3629, %v3628
        %3646 = vmatpush.bf16.msra.mxu0 %v3637
        %3647 = vmatpush.bf16.msra.mxu0 %v3636
        %3648 = vmatpush.bf16.msra.mxu0 %v3635
        %3649 = vmatpush.bf16.msra.mxu0 %v3634
        %3650 = vmatpush.bf16.msra.mxu0 %v3633
        %3651 = vmatpush.bf16.msra.mxu0 %v3632
        %3652 = vmatpush.bf16.msra.mxu0 %v3631
        %3653 = vmatpush.bf16.msra.mxu0 %v3630
        %3654 = vmatmul.bf16.gmra.mxu0 %v3470
        %v3655 = vpop.f32.mrf.mxu0
        %v3656 = vadd.f32 0.0, %v3655
        %v3657 = vpop.f32.mrf.mxu0
        %3658 = vdwg.mxu0
        %v3675 = vunpack.c.l.b16 %v3505
        %v3676 = vunpack.c.l.b16 %v3506
        %v3677 = vunpack.c.l.b16 %v3507
        %v3678 = vunpack.c.l.b16 %v3508
        %v3679 = vunpack.c.l.b16 %v3509
        %v3680 = vunpack.c.l.b16 %v3510
        %v3681 = vunpack.c.l.b16 %v3511
        %v3682 = vunpack.c.l.b16 %v3512
        %v3683 = vunpack.c.l.b16 %v3513
        %v3684 = vunpack.c.l.b16 %v3514
        %v3685 = vunpack.c.l.b16 %v3515
        %v3686 = vunpack.c.l.b16 %v3516
        %v3687 = vunpack.c.l.b16 %v3517
        %v3688 = vunpack.c.l.b16 %v3518
        %v3689 = vunpack.c.l.b16 %v3519
        %v3690 = vunpack.c.l.b16 %v3520
        %v3691 = vpack.c.b16 %v3676, %v3675
        %v3692 = vpack.c.b16 %v3678, %v3677
        %v3693 = vpack.c.b16 %v3680, %v3679
        %v3694 = vpack.c.b16 %v3682, %v3681
        %v3695 = vpack.c.b16 %v3684, %v3683
        %v3696 = vpack.c.b16 %v3686, %v3685
        %v3697 = vpack.c.b16 %v3688, %v3687
        %v3698 = vpack.c.b16 %v3690, %v3689
        %3707 = vmatpush.bf16.msra.mxu0 %v3698
        %3708 = vmatpush.bf16.msra.mxu0 %v3697
        %3709 = vmatpush.bf16.msra.mxu0 %v3696
        %3710 = vmatpush.bf16.msra.mxu0 %v3695
        %3711 = vmatpush.bf16.msra.mxu0 %v3694
        %3712 = vmatpush.bf16.msra.mxu0 %v3693
        %3713 = vmatpush.bf16.msra.mxu0 %v3692
        %3714 = vmatpush.bf16.msra.mxu0 %v3691
        %3715 = vmatmul.bf16.gmra.mxu0 %v3471
        %v3716 = vpop.f32.mrf.mxu0
        %v3717 = vadd.f32 0.0, %v3716
        %v3718 = vpop.f32.mrf.mxu0
        %3719 = vdwg.mxu0
        %v3736 = vunpack.c.l.b16 %v3521
        %v3737 = vunpack.c.l.b16 %v3522
        %v3738 = vunpack.c.l.b16 %v3523
        %v3739 = vunpack.c.l.b16 %v3524
        %v3740 = vunpack.c.l.b16 %v3525
        %v3741 = vunpack.c.l.b16 %v3526
        %v3742 = vunpack.c.l.b16 %v3527
        %v3743 = vunpack.c.l.b16 %v3528
        %v3744 = vunpack.c.l.b16 %v3529
        %v3745 = vunpack.c.l.b16 %v3530
        %v3746 = vunpack.c.l.b16 %v3531
        %v3747 = vunpack.c.l.b16 %v3532
        %v3748 = vunpack.c.l.b16 %v3533
        %v3749 = vunpack.c.l.b16 %v3534
        %v3750 = vunpack.c.l.b16 %v3535
        %v3751 = vunpack.c.l.b16 %v3536
        %v3752 = vpack.c.b16 %v3737, %v3736
        %v3753 = vpack.c.b16 %v3739, %v3738
        %v3754 = vpack.c.b16 %v3741, %v3740
        %v3755 = vpack.c.b16 %v3743, %v3742
        %v3756 = vpack.c.b16 %v3745, %v3744
        %v3757 = vpack.c.b16 %v3747, %v3746
        %v3758 = vpack.c.b16 %v3749, %v3748
        %v3759 = vpack.c.b16 %v3751, %v3750
        %3768 = vmatpush.bf16.msra.mxu0 %v3759
        %3769 = vmatpush.bf16.msra.mxu0 %v3758
        %3770 = vmatpush.bf16.msra.mxu0 %v3757
        %3771 = vmatpush.bf16.msra.mxu0 %v3756
        %3772 = vmatpush.bf16.msra.mxu0 %v3755
        %3773 = vmatpush.bf16.msra.mxu0 %v3754
        %3774 = vmatpush.bf16.msra.mxu0 %v3753
        %3775 = vmatpush.bf16.msra.mxu0 %v3752
        %3776 = vmatmul.bf16.gmra.mxu0 %v3472
        %v3777 = vpop.f32.mrf.mxu0
        %v3778 = vadd.f32 0.0, %v3777
        %v3779 = vpop.f32.mrf.mxu0
        %3780 = vdwg.mxu0
        %v3781 = vadd.f32 %v3595, %v3656
        %v3782 = vadd.f32 %v3781, %v3717
        %v3783 = vadd.f32 %v3782, %v3778
        %v3784 = vadd.f32 %v2414, %v3783
        %v3785 = vld [vmem:[%s805] sm:$0x1]
        %v3787 = vperm.slane %v3785, 0
        %v3789 = vadd.f32 %v3784, %v3787
        %v3790 = vld [vmem:[%s808] sm:$0x1]
        %v3791 = vld [vmem:[%s811] sm:$0x1]
        %3792 = vadd.xlane.f32.xlu0 %v3789
        %v3793 = vpop.xlane.xlu0 %3792
        %v3794 = vmul.f32 %v3793, 0.03125
        %v3795 = vsub.f32 %v3789, %v3794
        %v3796 = vmul.f32 %v3795, %v3795
        %3797 = vadd.xlane.f32.xlu0 %v3796
        %v3798 = vpop.xlane.xlu0 %3797
        %v3799 = vmul.f32 %v3794, 96.0
        %v3800 = vmul.f32 %v3799, %v3794
        %v3801 = vsub.f32 %v3798, %v3800
        %v3802 = vmul.f32 %v3801, 0.03125
        %v3803 = vadd.f32 %v3802, 1e-05
        %v3804 = vrsqrt.pop %v3803
        %v3805 = vmul.f32 %v3804, %v3803
        %v3806 = vmul.f32 %v3805, %v3804
        %v3807 = vmul.f32 0.5, %v3806
        %v3808 = vsub.f32 1.5, %v3807
        %v3809 = vmul.f32 %v3804, %v3808
        %vm3810 = vweird.f32 %v3803
        %vm3811 = vweird.f32 %v3804
        %vm3812 = vmor %vm3810, %vm3811
        %v3813 = vsel %vm3812, %v3804, %v3809
        %v3814 = vmul.f32 %v3795, %v3813
        %v3816 = vperm.slane %v3790, 0
        %v3818 = vmul.f32 %v3814, %v3816
        %v3820 = vperm.slane %v3791, 0
        %v3822 = vadd.f32 %v3818, %v3820
        %v3823 = vpack.c.bf16 %v3822, %v3822
        %v3824 = vld [vmem:[%s707] sm:$0xf]
        %v3825 = vld [vmem:[%s707 + $0x4] sm:$0xf]
        %v3826 = vld [vmem:[%s707 + $0x8] sm:$0xf]
        %v3827 = vld [vmem:[%s707 + $0xc] sm:$0xf]
        %v3828 = vld [vmem:[%s707 + $0x10] sm:$0xf]
        %v3829 = vld [vmem:[%s707 + $0x14] sm:$0xf]
        %v3830 = vld [vmem:[%s707 + $0x18] sm:$0xf]
        %v3831 = vld [vmem:[%s707 + $0x1c] sm:$0xf]
        %v3832 = vld [vmem:[%s707 + $0x20] sm:$0xf]
        %v3833 = vld [vmem:[%s707 + $0x24] sm:$0xf]
        %v3834 = vld [vmem:[%s707 + $0x28] sm:$0xf]
        %v3835 = vld [vmem:[%s707 + $0x2c] sm:$0xf]
        %v3836 = vld [vmem:[%s707 + $0x30] sm:$0xf]
        %v3837 = vld [vmem:[%s707 + $0x34] sm:$0xf]
        %v3838 = vld [vmem:[%s707 + $0x38] sm:$0xf]
        %v3839 = vld [vmem:[%s707 + $0x3c] sm:$0xf]
        %v3840 = vld [vmem:[%s814] sm:$0x1]
        %v3842 = vperm.slane %v3840, 0
        %v3860 = vunpack.c.l.b16 %v3824
        %v3861 = vunpack.c.l.b16 %v3825
        %v3862 = vunpack.c.l.b16 %v3826
        %v3863 = vunpack.c.l.b16 %v3827
        %v3864 = vunpack.c.l.b16 %v3828
        %v3865 = vunpack.c.l.b16 %v3829
        %v3866 = vunpack.c.l.b16 %v3830
        %v3867 = vunpack.c.l.b16 %v3831
        %v3868 = vunpack.c.l.b16 %v3832
        %v3869 = vunpack.c.l.b16 %v3833
        %v3870 = vunpack.c.l.b16 %v3834
        %v3871 = vunpack.c.l.b16 %v3835
        %v3872 = vunpack.c.l.b16 %v3836
        %v3873 = vunpack.c.l.b16 %v3837
        %v3874 = vunpack.c.l.b16 %v3838
        %v3875 = vunpack.c.l.b16 %v3839
        %v3876 = vpack.c.b16 %v3861, %v3860
        %v3877 = vpack.c.b16 %v3863, %v3862
        %v3878 = vpack.c.b16 %v3865, %v3864
        %v3879 = vpack.c.b16 %v3867, %v3866
        %v3880 = vpack.c.b16 %v3869, %v3868
        %v3881 = vpack.c.b16 %v3871, %v3870
        %v3882 = vpack.c.b16 %v3873, %v3872
        %v3883 = vpack.c.b16 %v3875, %v3874
        %3892 = vmatpush.bf16.msra.mxu0 %v3883
        %3893 = vmatpush.bf16.msra.mxu0 %v3882
        %3894 = vmatpush.bf16.msra.mxu0 %v3881
        %3895 = vmatpush.bf16.msra.mxu0 %v3880
        %3896 = vmatpush.bf16.msra.mxu0 %v3879
        %3897 = vmatpush.bf16.msra.mxu0 %v3878
        %3898 = vmatpush.bf16.msra.mxu0 %v3877
        %3899 = vmatpush.bf16.msra.mxu0 %v3876
        %3900 = vmatmul.bf16.gmra.mxu0 %v3823
        %v3901 = vpop.f32.mrf.mxu0
        %v3902 = vadd.f32 %v3842, %v3901
        %v3903 = vpop.f32.mrf.mxu0
        %3904 = vdwg.mxu0
        %v3905 = vmax.f32 %v3902, 0.0
        %v3906 = vpack.c.bf16 %v3905, %v3905
        %v3907 = vld [vmem:[%s717] sm:$0xf]
        %v3908 = vld [vmem:[%s717 + $0x4] sm:$0xf]
        %v3909 = vld [vmem:[%s717 + $0x8] sm:$0xf]
        %v3910 = vld [vmem:[%s717 + $0xc] sm:$0xf]
        %v3911 = vld [vmem:[%s717 + $0x10] sm:$0xf]
        %v3912 = vld [vmem:[%s717 + $0x14] sm:$0xf]
        %v3913 = vld [vmem:[%s717 + $0x18] sm:$0xf]
        %v3914 = vld [vmem:[%s717 + $0x1c] sm:$0xf]
        %v3915 = vld [vmem:[%s717 + $0x20] sm:$0xf]
        %v3916 = vld [vmem:[%s717 + $0x24] sm:$0xf]
        %v3917 = vld [vmem:[%s717 + $0x28] sm:$0xf]
        %v3918 = vld [vmem:[%s717 + $0x2c] sm:$0xf]
        %v3919 = vld [vmem:[%s717 + $0x30] sm:$0xf]
        %v3920 = vld [vmem:[%s717 + $0x34] sm:$0xf]
        %v3921 = vld [vmem:[%s717 + $0x38] sm:$0xf]
        %v3922 = vld [vmem:[%s717 + $0x3c] sm:$0xf]
        %v3939 = vunpack.c.l.b16 %v3907
        %v3940 = vunpack.c.l.b16 %v3908
        %v3941 = vunpack.c.l.b16 %v3909
        %v3942 = vunpack.c.l.b16 %v3910
        %v3943 = vunpack.c.l.b16 %v3911
        %v3944 = vunpack.c.l.b16 %v3912
        %v3945 = vunpack.c.l.b16 %v3913
        %v3946 = vunpack.c.l.b16 %v3914
        %v3947 = vunpack.c.l.b16 %v3915
        %v3948 = vunpack.c.l.b16 %v3916
        %v3949 = vunpack.c.l.b16 %v3917
        %v3950 = vunpack.c.l.b16 %v3918
        %v3951 = vunpack.c.l.b16 %v3919
        %v3952 = vunpack.c.l.b16 %v3920
        %v3953 = vunpack.c.l.b16 %v3921
        %v3954 = vunpack.c.l.b16 %v3922
        %v3955 = vpack.c.b16 %v3940, %v3939
        %v3956 = vpack.c.b16 %v3942, %v3941
        %v3957 = vpack.c.b16 %v3944, %v3943
        %v3958 = vpack.c.b16 %v3946, %v3945
        %v3959 = vpack.c.b16 %v3948, %v3947
        %v3960 = vpack.c.b16 %v3950, %v3949
        %v3961 = vpack.c.b16 %v3952, %v3951
        %v3962 = vpack.c.b16 %v3954, %v3953
        %3971 = vmatpush.bf16.msra.mxu0 %v3962
        %3972 = vmatpush.bf16.msra.mxu0 %v3961
        %3973 = vmatpush.bf16.msra.mxu0 %v3960
        %3974 = vmatpush.bf16.msra.mxu0 %v3959
        %3975 = vmatpush.bf16.msra.mxu0 %v3958
        %3976 = vmatpush.bf16.msra.mxu0 %v3957
        %3977 = vmatpush.bf16.msra.mxu0 %v3956
        %3978 = vmatpush.bf16.msra.mxu0 %v3955
        %3979 = vmatmul.bf16.gmra.mxu0 %v3906
        %v3980 = vpop.f32.mrf.mxu0
        %v3981 = vadd.f32 0.0, %v3980
        %v3982 = vpop.f32.mrf.mxu0
        %3983 = vdwg.mxu0
        %v3984 = vadd.f32 %v3789, %v3981
        %v3985 = vld [vmem:[%s817] sm:$0x1]
        %v3987 = vperm.slane %v3985, 0
        %v3989 = vadd.f32 %v3984, %v3987
        %3990 = vst [vmem:[%s2413] sm:$0xff] %v3989
        %p3991 = scmp.eq.s32.totalorder %s40, 1
        // Predicated region
        $region117: #{tpu_custom_call.1} parent=79 // pred_check
          %p3992 = pneg %p3991
        $region118: #{tpu_custom_call.1} parent=79 // pred_check_branch
          %3994 = sbr.rel (%p3992) target = $region120
        $region119: #{tpu_custom_call.1} parent=79 // pred_region
          %v3995 = vld [vmem:[#allocation2] sm:$0xff]
          %v3996 = vld [vmem:[%s13] sm:$0x1]
          %v3997 = vld [vmem:[%s14] sm:$0x1]
          %3998 = vadd.xlane.f32.xlu0 %v3995
          %v3999 = vpop.xlane.xlu0 %3998
          %v4000 = vmul.f32 %v3999, 0.03125
          %v4001 = vsub.f32 %v3995, %v4000
          %v4002 = vmul.f32 %v4001, %v4001
          %4003 = vadd.xlane.f32.xlu0 %v4002
          %v4004 = vpop.xlane.xlu0 %4003
          %v4005 = vmul.f32 %v4000, 96.0
          %v4006 = vmul.f32 %v4005, %v4000
          %v4007 = vsub.f32 %v4004, %v4006
          %v4008 = vmul.f32 %v4007, 0.03125
          %v4009 = vadd.f32 %v4008, 1e-05
          %v4010 = vrsqrt.pop %v4009
          %v4011 = vmul.f32 %v4010, %v4009
          %v4012 = vmul.f32 %v4011, %v4010
          %v4013 = vmul.f32 0.5, %v4012
          %v4014 = vsub.f32 1.5, %v4013
          %v4015 = vmul.f32 %v4010, %v4014
          %vm4016 = vweird.f32 %v4009
          %vm4017 = vweird.f32 %v4010
          %vm4018 = vmor %vm4016, %vm4017
          %v4019 = vsel %vm4018, %v4010, %v4015
          %v4020 = vmul.f32 %v4001, %v4019
          %v4022 = vperm.slane %v3996, 0
          %v4024 = vmul.f32 %v4020, %v4022
          %v4026 = vperm.slane %v3997, 0
          %v4028 = vadd.f32 %v4024, %v4026
          %v4029 = vpack.c.bf16 %v4028, %v4028
          %4030 = vst [vmem:[#allocation17] sm:$0xf] %v4029
          %v4031 = vld [vmem:[%s2413] sm:$0xff]
          %v4032 = vld [vmem:[%s13] sm:$0x1]
          %v4033 = vld [vmem:[%s14] sm:$0x1]
          %4034 = vadd.xlane.f32.xlu0 %v4031
          %v4035 = vpop.xlane.xlu0 %4034
          %v4036 = vmul.f32 %v4035, 0.03125
          %v4037 = vsub.f32 %v4031, %v4036
          %v4038 = vmul.f32 %v4037, %v4037
          %4039 = vadd.xlane.f32.xlu0 %v4038
          %v4040 = vpop.xlane.xlu0 %4039
          %v4041 = vmul.f32 %v4036, 96.0
          %v4042 = vmul.f32 %v4041, %v4036
          %v4043 = vsub.f32 %v4040, %v4042
          %v4044 = vmul.f32 %v4043, 0.03125
          %v4045 = vadd.f32 %v4044, 1e-05
          %v4046 = vrsqrt.pop %v4045
          %v4047 = vmul.f32 %v4046, %v4045
          %v4048 = vmul.f32 %v4047, %v4046
          %v4049 = vmul.f32 0.5, %v4048
          %v4050 = vsub.f32 1.5, %v4049
          %v4051 = vmul.f32 %v4046, %v4050
          %vm4052 = vweird.f32 %v4045
          %vm4053 = vweird.f32 %v4046
          %vm4054 = vmor %vm4052, %vm4053
          %v4055 = vsel %vm4054, %v4046, %v4051
          %v4056 = vmul.f32 %v4037, %v4055
          %v4058 = vperm.slane %v4032, 0
          %v4060 = vmul.f32 %v4056, %v4058
          %v4062 = vperm.slane %v4033, 0
          %v4064 = vadd.f32 %v4060, %v4062
          %v4065 = vpack.c.bf16 %v4064, %v4064
          %s4066 = scalar_lea.vmem [#allocation17], 4
          %4067 = vst [vmem:[%s4066] sm:$0xf] %v4065
        $region120: #{tpu_custom_call.1} parent=79 // pred_fallthru
          _
        // Predicated region
        $region121: #{tpu_custom_call.1} parent=79 // pred_check
          %p4068 = pneg %p428
        $region122: #{tpu_custom_call.1} parent=79 // pred_check_branch
          %4070 = sbr.rel (%p4068) target = $region124
        $region123: #{tpu_custom_call.1} parent=79 // pred_region
          %4072 = vsyncadd [#allocation5], 0
          %s4073 = sshll.u32 [#allocation17], 4
          %s4074 = int_to_ptr.vmem [resolvable:$true] %s4073
          %s4075 = sshll.u32 %s15, 4
          %s4076 = int_to_ptr.hbm [resolvable:$true] %s4075
          %4081 = dma.vmem_to_hbm [thread:$0]  %s4074, 128, %s4076, [#allocation5], 64, 64, 4
        $region124: #{tpu_custom_call.1} parent=79 // pred_fallthru
          _
        // Predicated region
        $region125: #{tpu_custom_call.1} parent=79 // pred_check
          %p4082 = pneg %p428
        $region126: #{tpu_custom_call.1} parent=79 // pred_check_branch
          %4084 = sbr.rel (%p4082) target = $region128
        $region127: #{tpu_custom_call.1} parent=79 // pred_region
          %4086 = dma.done [#allocation5], 128
        $region128: #{tpu_custom_call.1} parent=79 // pred_fallthru
          _
      $region80: #{tpu_custom_call.1} parent=5 // pred_fallthru
        _
      %p4087 = scmp.le.s32.totalorder 2, %s35
      // Predicated region
      $region129: #{tpu_custom_call.1} parent=5 // pred_check
        %p4088 = pneg %p4087
      $region130: #{tpu_custom_call.1} parent=5 // pred_check_branch
        %4090 = sbr.rel (%p4088) target = $region132
      $region131: #{tpu_custom_call.1} parent=5 // pred_region
        %s4091 = ssub.s32 %s35, 2
      $region132: #{tpu_custom_call.1} parent=5 // pred_fallthru
        _
    $region6: #{tpu_custom_call.1} parent=1 // loop_footer
      %s39 = sadd.s32 1, %s35
    $region7: #{tpu_custom_call.1} parent=1 // loop_footer_branch
      %34 = sbr.rel target = $region3
    $region8: #{tpu_custom_call.1} parent=1 // loop_exit
      _
    %4092 = vsyncpa [#allocation4], 1
    %s4093 = scalar_lea.sflag [#allocation4], 1
    %4094 = vsyncpa %s4093, 1
    %4095 = vsyncpa [#allocation7], 1
    %s4096 = scalar_lea.sflag [#allocation7], 1
    %4097 = vsyncpa %s4096, 1
    %4098 = vsyncpa [#allocation10], 1
    %s4099 = scalar_lea.sflag [#allocation10], 1
    %4100 = vsyncpa %s4099, 1
    %4101 = vsyncpa [#allocation13], 1
    %s4102 = scalar_lea.sflag [#allocation13], 1
    %4103 = vsyncpa %s4102, 1
    %4104 = vsyncpa [#allocation16], 1
    %s4105 = scalar_lea.sflag [#allocation16], 1
    %4106 = vsyncpa %s4105, 1
    %4107 = vsyncpa [#allocation5], 1
    %s4108 = scalar_lea.sflag [#allocation5], 1
    %4109 = vsyncpa %s4108, 1

</llo_original>
